<compile_context>
chip_gen: v5e
topology: v5e:2x2
jax: 0.10.0
libtpu: 0.0.40
codegen_flags: <defaults>
</compile_context>

<pallas_src>
import jax
import jax.numpy as jnp
from jax.experimental import pallas as pl
from jax.experimental.pallas import tpu as pltpu

# ------------------------- "proj" hyper-parameters (small, synthetic) -------------------------
INPUT_SIZE = 16
RNN_SIZE = 32          # H
RNN_LAYERS = 2
FC_EXTRA_SIZE = 32
NUM_CLASSES = 10
SEQ_LEN = 8
BATCH = 2

THX = 0.1              # delta threshold on inputs
THH = 0.1              # delta threshold on hidden state
QA, AQI, AQF = True, 8, 8      # activation quantization (eval mode -> qa = self.qa)
QC, CQI, CQF = True, 8, 8      # classifier-output quantization
# qw / wqi / wqf / bw_acc only affect weight quantization / debug stats, not the returned output.

H = RNN_SIZE
GW = 128     # packed gate-block width: 3*H = 96 real lanes, padded to 128 (also padded input width)
FP = 128     # lane-padded fc_extra width (>= FC_EXTRA_SIZE)
CP = 128     # lane-padded classifier width (>= NUM_CLASSES)


def _quantize(x, qi, qf, enable):
    """util.quantize_tensor: round to Q(qi).(qf) fixed point with saturation (constant mul, no div)."""
    if not enable:
        return x
    scale = float(2.0 ** qf)
    inv_scale = float(2.0 ** (-qf))
    clip_hi = float(2.0 ** (qi + qf - 1) - 1.0)
    clip_lo = float(-(2.0 ** (qi + qf - 1)))
    v = jnp.round(x * scale)
    v = jnp.clip(v, clip_lo, clip_hi)
    return v * inv_scale


# ----------------------------------- fully fused forward kernel -----------------------------------
# TODO(synk): the exact DeltaGRU source is not shipped with the module; this implements the
# published DeltaGRU recurrence (thresholded deltas + persistent delta-memory accumulators +
# GRU gates) and returns reg = sum(|dx|) + sum(|dh|) as the sparsity regularizer.
def _fused_kernel(x_ref, wx0_ref, wh0_ref, b0_ref, b1_ref, fcb_ref, clb_ref,
                  wx1_hbm, wh1_hbm, fcw_hbm, clw_hbm,
                  out_ref, reg_ref,
                  wx1_buf, wh1_buf, fcw_buf, clw_buf, slab_scr, dma_sems):
    T, B, _ = x_ref.shape

    # ---- start prefetch of layer-1 / head weight matrices; hide the DMA behind layer-0 ----
    cp_wx1 = pltpu.make_async_copy(wx1_hbm, wx1_buf, dma_sems.at[0]); cp_wx1.start()
    cp_wh1 = pltpu.make_async_copy(wh1_hbm, wh1_buf, dma_sems.at[1]); cp_wh1.start()
    cp_fcw = pltpu.make_async_copy(fcw_hbm, fcw_buf, dma_sems.at[2]); cp_fcw.start()
    cp_clw = pltpu.make_async_copy(clw_hbm, clw_buf, dma_sems.at[3]); cp_clw.start()

    # mask of the real hidden lanes [0:H) of the packed 128-lane hidden vector
    lane = jax.lax.broadcasted_iota(jnp.int32, (B, GW), 1)
    h_mask = (lane < H).astype(jnp.float32)

    def run_layer(inputs, wx, wh, b, materialize_h):
        """One DeltaGRU layer over the full sequence.
        inputs: python list of T (B, GW) values (real lanes [0:Din), rest zero)."""
        # ------- hoisted input-delta path (depends only on the layer input) -------
        xp = jnp.zeros((B, GW), jnp.float32)
        abs_dx = jnp.zeros((B, GW), jnp.float32)
        for t in range(T):                                   # cheap VPU recurrence, unrolled
            x_q = _quantize(inputs[t], AQI, AQF, QA)
            dx = x_q - xp
            dx = jnp.where(jnp.abs(dx) >= THX, dx, 0.0)
            xp = xp + dx                                     # cumulative sum of kept deltas
            abs_dx = abs_dx + jnp.abs(dx)
            slab_scr[pl.ds(t * B, B), :] = xp
        # ONE matmul for the whole sequence: sum_{s<=t} dx[s] @ Wx == xp[t] @ Wx.
        # `pre` stays register-resident (T*B = 16 rows = 2 vregs) -> no loads in the recurrence.
        pre = jnp.dot(slab_scr[...], wx, preferred_element_type=jnp.float32) + b

        # ------- serial hidden recurrence: a single (B,128)@(128,128) MXU pass per step -------
        h = jnp.zeros((B, GW), jnp.float32)                  # real lanes [0:H), rest zero
        hp = jnp.zeros((B, GW), jnp.float32)
        dmh = jnp.zeros((B, GW), jnp.float32)                # cumulative hidden-path delta memory
        abs_dh = jnp.zeros((B, GW), jnp.float32)
        outs = []
        for t in range(T):                                   # statically unrolled (T = 8)
            dh = h - hp
            dh = jnp.where(jnp.abs(dh) >= THH, dh, 0.0)
            hp = hp + dh
            abs_dh = abs_dh + jnp.abs(dh)
            dmh = dmh + jnp.dot(dh, wh, preferred_element_type=jnp.float32)
            pre_t = pre[t * B:(t + 1) * B, :]                # static 2-row slice of a vreg value
            g = pre_t + dmh
            s = jax.nn.sigmoid(g)                            # r at [0:H), u at [H:2H)  (no hardsigmoid)
            r_c = pltpu.roll(s, shift=2 * H, axis=1)         # align r with the c-gate lanes [2H:3H)
            ct = jnp.tanh(pre_t + r_c * dmh)                 # c valid at [2H:3H)        (no hardtanh)
            u0 = pltpu.roll(s, shift=GW - H, axis=1)         # u aligned to [0:H)
            c0 = pltpu.roll(ct, shift=GW - 2 * H, axis=1)    # c aligned to [0:H)
            h = _quantize((1.0 - u0) * c0 + u0 * h, AQI, AQF, QA) * h_mask
            if materialize_h:                                # only the final layer's sequence is kept
                slab_scr[pl.ds(t * B, B), :] = h
            else:
                outs.append(h)                               # register-resident layer output
        reg = jnp.sum(abs_dx) + jnp.sum(abs_dh)              # single cross-lane drain per layer
        return outs, reg

    # ---------------- layer 0 (weights auto-DMA'd by BlockSpec) ----------------
    outs, reg0 = run_layer([x_ref[t] for t in range(T)],
                           wx0_ref[...], wh0_ref[...], b0_ref[...], materialize_h=False)

    # ---------------- layer 1 (weights prefetched while layer 0 ran) ----------------
    cp_wx1.wait()
    cp_wh1.wait()
    _, reg1 = run_layer(outs, wx1_buf[...], wh1_buf[...], b1_ref[...], materialize_h=True)
    # rnn_dropout is identity in eval mode

    # ---------------- fc_extra -> ReLU -> quant -> cl -> quant (lane-dense head) ----------------
    cp_fcw.wait()
    cp_clw.wait()
    h_flat = slab_scr[...]                                   # (T*B, GW), time-major rows
    fc = jnp.dot(h_flat, fcw_buf[...], preferred_element_type=jnp.float32) + fcb_ref[...]
    fc = _quantize(jnp.maximum(fc, 0.0), AQI, AQF, QA)       # ReLU; Dropout is identity in eval
    o = jnp.dot(fc, clw_buf[...], preferred_element_type=jnp.float32) + clb_ref[...]
    o = _quantize(o, CQI, CQF, QC)                           # qout_fc -> returned output
    out_ref[...] = o                                         # one lane-dense (T*B, 128) store

    reg_ref[...] = jnp.zeros_like(reg_ref) + (reg0 + reg1)


# --------------------------------------- host-side wrapper ---------------------------------------
def _full_block_spec(arr):
    zeros = (0,) * arr.ndim
    return pl.BlockSpec(arr.shape, lambda i, _z=zeros: _z)


def model_forward(x, params):
    """x: (T, B, INPUT_SIZE) time-major. Returns (output (B, T, num_classes), reg scalar)."""
    T, B, I = x.shape
    # Lane-pad the input once so every in-kernel load is lane-dense (128 wide).
    x_pad = jnp.pad(x, ((0, 0), (0, 0), (0, GW - I)))

    args = [x_pad, params["wx_0"], params["wh_0"], params["b_0"],
            params["b_1"], params["fc_b"], params["cl_b"],
            params["wx_1"], params["wh_1"], params["fc_w"], params["cl_w"]]
    in_specs = ([_full_block_spec(a) for a in args[:7]] +
                [pl.BlockSpec(memory_space=pl.ANY)] * 4)     # wx_1 / wh_1 / fc_w / cl_w: manual DMA

    out_flat, reg = pl.pallas_call(
        _fused_kernel,
        out_shape=(jax.ShapeDtypeStruct((T * B, CP), jnp.float32),
                   jax.ShapeDtypeStruct((1, 1), jnp.float32)),
        grid=(1,),
        in_specs=in_specs,
        out_specs=(pl.BlockSpec((T * B, CP), lambda i: (0, 0)),
                   pl.BlockSpec((1, 1), lambda i: (0, 0))),
        scratch_shapes=[
            pltpu.VMEM((GW, GW), jnp.float32),               # wx_1 prefetch buffer
            pltpu.VMEM((GW, GW), jnp.float32),               # wh_1 prefetch buffer
            pltpu.VMEM((GW, FP), jnp.float32),               # fc_w prefetch buffer
            pltpu.VMEM((FP, CP), jnp.float32),               # cl_w prefetch buffer
            pltpu.VMEM((T * B, GW), jnp.float32),            # reused slab: xp (both layers) -> h-seq
            pltpu.SemaphoreType.DMA((4,)),
        ],
        compiler_params=pltpu.CompilerParams(dimension_semantics=("arbitrary",)),
    )(*args)

    # Rows are time-major (t*B + b): the (8,2,10) reorder + class slice outside is essentially free.
    output = out_flat.reshape(T, B, CP).transpose(1, 0, 2)[:, :, :NUM_CLASSES]
    return output, reg[0, 0]


# --------------------------------------- parameter handling ---------------------------------------
def init_params(key):
    """Logical (unpadded) parameters, mirroring the PyTorch module's initialization."""
    params = {}
    std = 1.0 / jnp.sqrt(RNN_SIZE)
    for l in range(RNN_LAYERS):
        in_size = INPUT_SIZE if l == 0 else RNN_SIZE
        key, k1, k2, k3 = jax.random.split(key, 4)
        params[f"rnn_wx_{l}"] = jax.random.uniform(k1, (in_size, 3 * RNN_SIZE),
                                                   jnp.float32, -std, std)
        params[f"rnn_wh_{l}"] = jax.random.uniform(k2, (RNN_SIZE, 3 * RNN_SIZE),
                                                   jnp.float32, -std, std)
        params[f"rnn_b_{l}"] = jax.random.uniform(k3, (1, 3 * RNN_SIZE),
                                                  jnp.float32, -std, std)
    key, kf = jax.random.split(key)                          # fc_extra: xavier_uniform, zero bias
    bf = jnp.sqrt(6.0 / (RNN_SIZE + FC_EXTRA_SIZE))
    params["fc_w"] = jax.random.uniform(kf, (RNN_SIZE, FC_EXTRA_SIZE), jnp.float32, -bf, bf)
    params["fc_b"] = jnp.zeros((1, FC_EXTRA_SIZE), jnp.float32)
    key, kc = jax.random.split(key)                          # cl: xavier_uniform, zero bias
    bc = jnp.sqrt(6.0 / (FC_EXTRA_SIZE + NUM_CLASSES))
    params["cl_w"] = jax.random.uniform(kc, (FC_EXTRA_SIZE, NUM_CLASSES), jnp.float32, -bc, bc)
    params["cl_b"] = jnp.zeros((1, NUM_CLASSES), jnp.float32)
    return params


def _pad2d(w, rows, cols):
    out = jnp.zeros((rows, cols), jnp.float32)
    return out.at[:w.shape[0], :w.shape[1]].set(w)


def prepare_params(params):
    """One-time layout transform: packed-gate (3*H = 96 -> 128 lanes), lane-dense padded weights."""
    p = {}
    for l in range(RNN_LAYERS):
        p[f"wx_{l}"] = _pad2d(params[f"rnn_wx_{l}"], GW, GW)     # rows: padded input / hidden width
        p[f"wh_{l}"] = _pad2d(params[f"rnn_wh_{l}"], GW, GW)
        p[f"b_{l}"] = _pad2d(params[f"rnn_b_{l}"], 1, GW)
    p["fc_w"] = _pad2d(params["fc_w"], GW, FP)
    p["fc_b"] = _pad2d(params["fc_b"], 1, FP)
    p["cl_w"] = _pad2d(params["cl_w"], FP, CP)
    p["cl_b"] = _pad2d(params["cl_b"], 1, CP)
    return p


if __name__ == "__main__":
    key = jax.random.PRNGKey(0)
    key, kx = jax.random.split(key)
    x = jax.random.normal(kx, (SEQ_LEN, BATCH, INPUT_SIZE), jnp.float32)
    params = prepare_params(init_params(key))

    fwd = jax.jit(model_forward)
    output, reg = fwd(x, params)
    jax.block_until_ready((output, reg))

    assert output.shape == (BATCH, SEQ_LEN, NUM_CLASSES)
    assert output.dtype == jnp.float32
    assert bool(jnp.all(jnp.isfinite(output)))
    print("KERNEL_OK")
</pallas_src>

<mosaic_0001>
module attributes {stable_mosaic.version = 11 : i64} {
  func.func @_fused_kernel(%arg0: i32, %arg1: memref<8x2x128xf32, #tpu.memory_space<vmem>>, %arg2: memref<128x128xf32, #tpu.memory_space<vmem>>, %arg3: memref<128x128xf32, #tpu.memory_space<vmem>>, %arg4: memref<1x128xf32, #tpu.memory_space<vmem>>, %arg5: memref<1x128xf32, #tpu.memory_space<vmem>>, %arg6: memref<1x128xf32, #tpu.memory_space<vmem>>, %arg7: memref<1x128xf32, #tpu.memory_space<vmem>>, %arg8: memref<128x128xf32, #tpu.memory_space<any>>, %arg9: memref<128x128xf32, #tpu.memory_space<any>>, %arg10: memref<128x128xf32, #tpu.memory_space<any>>, %arg11: memref<128x128xf32, #tpu.memory_space<any>>, %arg12: memref<16x128xf32, #tpu.memory_space<vmem>>, %arg13: memref<1x1xf32, #tpu.memory_space<vmem>>, %arg14: memref<128x128xf32, #tpu.memory_space<vmem>>, %arg15: memref<128x128xf32, #tpu.memory_space<vmem>>, %arg16: memref<128x128xf32, #tpu.memory_space<vmem>>, %arg17: memref<128x128xf32, #tpu.memory_space<vmem>>, %arg18: memref<16x128xf32, #tpu.memory_space<vmem>>, %arg19: memref<4x!tpu.dma_semaphore, #tpu.memory_space<semaphore_mem>>) attributes {dimension_semantics = [#tpu.dimension_semantics<arbitrary>], iteration_bounds = array<i64: 1>, scalar_prefetch = 0 : i64, scratch_operands = 6 : i64, tpu.core_type = #tpu.core_type<tc>, window_params = [{pipeline_mode = #tpu.pipeline_mode<synchronous>, transform_indices = @transform_0, window_bounds = array<i64: 8, 2, 128>}, {pipeline_mode = #tpu.pipeline_mode<synchronous>, transform_indices = @transform_1, window_bounds = array<i64: 128, 128>}, {pipeline_mode = #tpu.pipeline_mode<synchronous>, transform_indices = @transform_2, window_bounds = array<i64: 128, 128>}, {pipeline_mode = #tpu.pipeline_mode<synchronous>, transform_indices = @transform_3, window_bounds = array<i64: 1, 128>}, {pipeline_mode = #tpu.pipeline_mode<synchronous>, transform_indices = @transform_4, window_bounds = array<i64: 1, 128>}, {pipeline_mode = #tpu.pipeline_mode<synchronous>, transform_indices = @transform_5, window_bounds = array<i64: 1, 128>}, {pipeline_mode = #tpu.pipeline_mode<synchronous>, transform_indices = @transform_6, window_bounds = array<i64: 1, 128>}, {}, {}, {}, {}, {pipeline_mode = #tpu.pipeline_mode<synchronous>, transform_indices = @transform_11, window_bounds = array<i64: 16, 128>}, {pipeline_mode = #tpu.pipeline_mode<synchronous>, transform_indices = @transform_12, window_bounds = array<i64: 1, 1>}]} {
    %c0_i32 = arith.constant 0 : i32
    %0 = tpu.memref_slice %arg19[%c0_i32] : memref<4x!tpu.dma_semaphore, #tpu.memory_space<semaphore_mem>> -> memref<1x!tpu.dma_semaphore, #tpu.memory_space<semaphore_mem>>
    %1 = tpu.memref_squeeze %0 : memref<1x!tpu.dma_semaphore, #tpu.memory_space<semaphore_mem>> -> memref<!tpu.dma_semaphore, #tpu.memory_space<semaphore_mem>>
    tpu.enqueue_dma source(%arg8 : memref<128x128xf32, #tpu.memory_space<any>>) target(%arg14 : memref<128x128xf32, #tpu.memory_space<vmem>>) target_semaphore(%1 : memref<!tpu.dma_semaphore, #tpu.memory_space<semaphore_mem>>)
    %c1_i32 = arith.constant 1 : i32
    %2 = tpu.memref_slice %arg19[%c1_i32] : memref<4x!tpu.dma_semaphore, #tpu.memory_space<semaphore_mem>> -> memref<1x!tpu.dma_semaphore, #tpu.memory_space<semaphore_mem>>
    %3 = tpu.memref_squeeze %2 : memref<1x!tpu.dma_semaphore, #tpu.memory_space<semaphore_mem>> -> memref<!tpu.dma_semaphore, #tpu.memory_space<semaphore_mem>>
    tpu.enqueue_dma source(%arg9 : memref<128x128xf32, #tpu.memory_space<any>>) target(%arg15 : memref<128x128xf32, #tpu.memory_space<vmem>>) target_semaphore(%3 : memref<!tpu.dma_semaphore, #tpu.memory_space<semaphore_mem>>)
    %c2_i32 = arith.constant 2 : i32
    %4 = tpu.memref_slice %arg19[%c2_i32] : memref<4x!tpu.dma_semaphore, #tpu.memory_space<semaphore_mem>> -> memref<1x!tpu.dma_semaphore, #tpu.memory_space<semaphore_mem>>
    %5 = tpu.memref_squeeze %4 : memref<1x!tpu.dma_semaphore, #tpu.memory_space<semaphore_mem>> -> memref<!tpu.dma_semaphore, #tpu.memory_space<semaphore_mem>>
    tpu.enqueue_dma source(%arg10 : memref<128x128xf32, #tpu.memory_space<any>>) target(%arg16 : memref<128x128xf32, #tpu.memory_space<vmem>>) target_semaphore(%5 : memref<!tpu.dma_semaphore, #tpu.memory_space<semaphore_mem>>)
    %c3_i32 = arith.constant 3 : i32
    %6 = tpu.memref_slice %arg19[%c3_i32] : memref<4x!tpu.dma_semaphore, #tpu.memory_space<semaphore_mem>> -> memref<1x!tpu.dma_semaphore, #tpu.memory_space<semaphore_mem>>
    %7 = tpu.memref_squeeze %6 : memref<1x!tpu.dma_semaphore, #tpu.memory_space<semaphore_mem>> -> memref<!tpu.dma_semaphore, #tpu.memory_space<semaphore_mem>>
    tpu.enqueue_dma source(%arg11 : memref<128x128xf32, #tpu.memory_space<any>>) target(%arg17 : memref<128x128xf32, #tpu.memory_space<vmem>>) target_semaphore(%7 : memref<!tpu.dma_semaphore, #tpu.memory_space<semaphore_mem>>)
    %8 = tpu.iota {dimensions = array<i32: 1>} : vector<2x128xi32>
    %c32_i32 = arith.constant 32 : i32
    %9 = vector.broadcast %c32_i32 : i32 to vector<2x128xi32>
    %10 = arith.cmpi slt, %8, %9 : vector<2x128xi32>
    %11 = arith.extui %10 : vector<2x128xi1> to vector<2x128xi32>
    %12 = arith.sitofp %11 : vector<2x128xi32> to vector<2x128xf32>
    %c0 = arith.constant 0 : index
    %c0_0 = arith.constant 0 : index
    %c0_1 = arith.constant 0 : index
    %13 = vector.load %arg1[%c0, %c0_0, %c0_1] : memref<8x2x128xf32, #tpu.memory_space<vmem>>, vector<1x2x128xf32>
    %14 = vector.shape_cast %13 : vector<1x2x128xf32> to vector<2x128xf32>
    %c1 = arith.constant 1 : index
    %c0_2 = arith.constant 0 : index
    %c0_3 = arith.constant 0 : index
    %15 = vector.load %arg1[%c1, %c0_2, %c0_3] : memref<8x2x128xf32, #tpu.memory_space<vmem>>, vector<1x2x128xf32>
    %16 = vector.shape_cast %15 : vector<1x2x128xf32> to vector<2x128xf32>
    %c2 = arith.constant 2 : index
    %c0_4 = arith.constant 0 : index
    %c0_5 = arith.constant 0 : index
    %17 = vector.load %arg1[%c2, %c0_4, %c0_5] : memref<8x2x128xf32, #tpu.memory_space<vmem>>, vector<1x2x128xf32>
    %18 = vector.shape_cast %17 : vector<1x2x128xf32> to vector<2x128xf32>
    %c3 = arith.constant 3 : index
    %c0_6 = arith.constant 0 : index
    %c0_7 = arith.constant 0 : index
    %19 = vector.load %arg1[%c3, %c0_6, %c0_7] : memref<8x2x128xf32, #tpu.memory_space<vmem>>, vector<1x2x128xf32>
    %20 = vector.shape_cast %19 : vector<1x2x128xf32> to vector<2x128xf32>
    %c4 = arith.constant 4 : index
    %c0_8 = arith.constant 0 : index
    %c0_9 = arith.constant 0 : index
    %21 = vector.load %arg1[%c4, %c0_8, %c0_9] : memref<8x2x128xf32, #tpu.memory_space<vmem>>, vector<1x2x128xf32>
    %22 = vector.shape_cast %21 : vector<1x2x128xf32> to vector<2x128xf32>
    %c5 = arith.constant 5 : index
    %c0_10 = arith.constant 0 : index
    %c0_11 = arith.constant 0 : index
    %23 = vector.load %arg1[%c5, %c0_10, %c0_11] : memref<8x2x128xf32, #tpu.memory_space<vmem>>, vector<1x2x128xf32>
    %24 = vector.shape_cast %23 : vector<1x2x128xf32> to vector<2x128xf32>
    %c6 = arith.constant 6 : index
    %c0_12 = arith.constant 0 : index
    %c0_13 = arith.constant 0 : index
    %25 = vector.load %arg1[%c6, %c0_12, %c0_13] : memref<8x2x128xf32, #tpu.memory_space<vmem>>, vector<1x2x128xf32>
    %26 = vector.shape_cast %25 : vector<1x2x128xf32> to vector<2x128xf32>
    %c7 = arith.constant 7 : index
    %c0_14 = arith.constant 0 : index
    %c0_15 = arith.constant 0 : index
    %27 = vector.load %arg1[%c7, %c0_14, %c0_15] : memref<8x2x128xf32, #tpu.memory_space<vmem>>, vector<1x2x128xf32>
    %28 = vector.shape_cast %27 : vector<1x2x128xf32> to vector<2x128xf32>
    %c0_16 = arith.constant 0 : index
    %c0_17 = arith.constant 0 : index
    %29 = vector.load %arg2[%c0_16, %c0_17] : memref<128x128xf32, #tpu.memory_space<vmem>>, vector<128x128xf32>
    %c0_18 = arith.constant 0 : index
    %c0_19 = arith.constant 0 : index
    %30 = vector.load %arg3[%c0_18, %c0_19] : memref<128x128xf32, #tpu.memory_space<vmem>>, vector<128x128xf32>
    %c0_20 = arith.constant 0 : index
    %c0_21 = arith.constant 0 : index
    %31 = vector.load %arg4[%c0_20, %c0_21] : memref<1x128xf32, #tpu.memory_space<vmem>>, vector<1x128xf32>
    %cst = arith.constant 0.000000e+00 : f32
    %32 = vector.broadcast %cst : f32 to vector<2x128xf32>
    %cst_22 = arith.constant 0.000000e+00 : f32
    %33 = vector.broadcast %cst_22 : f32 to vector<2x128xf32>
    %cst_23 = arith.constant 2.560000e+02 : f32
    %34 = vector.broadcast %cst_23 : f32 to vector<2x128xf32>
    %35 = arith.mulf %14, %34 : vector<2x128xf32>
    %36 = math.roundeven %35 : vector<2x128xf32>
    %cst_24 = arith.constant -3.276800e+04 : f32
    %cst_25 = arith.constant 3.276700e+04 : f32
    %37 = vector.broadcast %cst_24 : f32 to vector<2x128xf32>
    %38 = arith.maximumf %37, %36 : vector<2x128xf32>
    %39 = vector.broadcast %cst_25 : f32 to vector<2x128xf32>
    %40 = arith.minimumf %39, %38 : vector<2x128xf32>
    %cst_26 = arith.constant 3.906250e-03 : f32
    %41 = vector.broadcast %cst_26 : f32 to vector<2x128xf32>
    %42 = arith.mulf %40, %41 : vector<2x128xf32>
    %43 = arith.subf %42, %32 : vector<2x128xf32>
    %44 = math.absf %43 : vector<2x128xf32>
    %cst_27 = arith.constant 1.000000e-01 : f32
    %45 = vector.broadcast %cst_27 : f32 to vector<2x128xf32>
    %46 = arith.cmpf oge, %44, %45 : vector<2x128xf32>
    %cst_28 = arith.constant 0.000000e+00 : f32
    %47 = vector.broadcast %cst_28 : f32 to vector<2x128xf32>
    %48 = arith.select %46, %43, %47 : vector<2x128xi1>, vector<2x128xf32>
    %49 = arith.addf %32, %48 : vector<2x128xf32>
    %50 = math.absf %48 : vector<2x128xf32>
    %51 = arith.addf %33, %50 : vector<2x128xf32>
    %c0_29 = arith.constant 0 : index
    %c0_30 = arith.constant 0 : index
    %52 = vector.load %arg18[%c0_29, %c0_30] : memref<16x128xf32, #tpu.memory_space<vmem>>, vector<2x128xf32>
    tpu.vector_store %arg18[%c0_29, %c0_30], %49 {strides = array<i32>} : memref<16x128xf32, #tpu.memory_space<vmem>>, vector<2x128xf32>,
    %cst_31 = arith.constant 2.560000e+02 : f32
    %53 = vector.broadcast %cst_31 : f32 to vector<2x128xf32>
    %54 = arith.mulf %16, %53 : vector<2x128xf32>
    %55 = math.roundeven %54 : vector<2x128xf32>
    %cst_32 = arith.constant -3.276800e+04 : f32
    %cst_33 = arith.constant 3.276700e+04 : f32
    %56 = vector.broadcast %cst_32 : f32 to vector<2x128xf32>
    %57 = arith.maximumf %56, %55 : vector<2x128xf32>
    %58 = vector.broadcast %cst_33 : f32 to vector<2x128xf32>
    %59 = arith.minimumf %58, %57 : vector<2x128xf32>
    %cst_34 = arith.constant 3.906250e-03 : f32
    %60 = vector.broadcast %cst_34 : f32 to vector<2x128xf32>
    %61 = arith.mulf %59, %60 : vector<2x128xf32>
    %62 = arith.subf %61, %49 : vector<2x128xf32>
    %63 = math.absf %62 : vector<2x128xf32>
    %cst_35 = arith.constant 1.000000e-01 : f32
    %64 = vector.broadcast %cst_35 : f32 to vector<2x128xf32>
    %65 = arith.cmpf oge, %63, %64 : vector<2x128xf32>
    %cst_36 = arith.constant 0.000000e+00 : f32
    %66 = vector.broadcast %cst_36 : f32 to vector<2x128xf32>
    %67 = arith.select %65, %62, %66 : vector<2x128xi1>, vector<2x128xf32>
    %68 = arith.addf %49, %67 : vector<2x128xf32>
    %69 = math.absf %67 : vector<2x128xf32>
    %70 = arith.addf %51, %69 : vector<2x128xf32>
    %c2_37 = arith.constant 2 : index
    %c0_38 = arith.constant 0 : index
    %71 = vector.load %arg18[%c2_37, %c0_38] : memref<16x128xf32, #tpu.memory_space<vmem>>, vector<2x128xf32>
    tpu.vector_store %arg18[%c2_37, %c0_38], %68 {strides = array<i32>} : memref<16x128xf32, #tpu.memory_space<vmem>>, vector<2x128xf32>,
    %cst_39 = arith.constant 2.560000e+02 : f32
    %72 = vector.broadcast %cst_39 : f32 to vector<2x128xf32>
    %73 = arith.mulf %18, %72 : vector<2x128xf32>
    %74 = math.roundeven %73 : vector<2x128xf32>
    %cst_40 = arith.constant -3.276800e+04 : f32
    %cst_41 = arith.constant 3.276700e+04 : f32
    %75 = vector.broadcast %cst_40 : f32 to vector<2x128xf32>
    %76 = arith.maximumf %75, %74 : vector<2x128xf32>
    %77 = vector.broadcast %cst_41 : f32 to vector<2x128xf32>
    %78 = arith.minimumf %77, %76 : vector<2x128xf32>
    %cst_42 = arith.constant 3.906250e-03 : f32
    %79 = vector.broadcast %cst_42 : f32 to vector<2x128xf32>
    %80 = arith.mulf %78, %79 : vector<2x128xf32>
    %81 = arith.subf %80, %68 : vector<2x128xf32>
    %82 = math.absf %81 : vector<2x128xf32>
    %cst_43 = arith.constant 1.000000e-01 : f32
    %83 = vector.broadcast %cst_43 : f32 to vector<2x128xf32>
    %84 = arith.cmpf oge, %82, %83 : vector<2x128xf32>
    %cst_44 = arith.constant 0.000000e+00 : f32
    %85 = vector.broadcast %cst_44 : f32 to vector<2x128xf32>
    %86 = arith.select %84, %81, %85 : vector<2x128xi1>, vector<2x128xf32>
    %87 = arith.addf %68, %86 : vector<2x128xf32>
    %88 = math.absf %86 : vector<2x128xf32>
    %89 = arith.addf %70, %88 : vector<2x128xf32>
    %c4_45 = arith.constant 4 : index
    %c0_46 = arith.constant 0 : index
    %90 = vector.load %arg18[%c4_45, %c0_46] : memref<16x128xf32, #tpu.memory_space<vmem>>, vector<2x128xf32>
    tpu.vector_store %arg18[%c4_45, %c0_46], %87 {strides = array<i32>} : memref<16x128xf32, #tpu.memory_space<vmem>>, vector<2x128xf32>,
    %cst_47 = arith.constant 2.560000e+02 : f32
    %91 = vector.broadcast %cst_47 : f32 to vector<2x128xf32>
    %92 = arith.mulf %20, %91 : vector<2x128xf32>
    %93 = math.roundeven %92 : vector<2x128xf32>
    %cst_48 = arith.constant -3.276800e+04 : f32
    %cst_49 = arith.constant 3.276700e+04 : f32
    %94 = vector.broadcast %cst_48 : f32 to vector<2x128xf32>
    %95 = arith.maximumf %94, %93 : vector<2x128xf32>
    %96 = vector.broadcast %cst_49 : f32 to vector<2x128xf32>
    %97 = arith.minimumf %96, %95 : vector<2x128xf32>
    %cst_50 = arith.constant 3.906250e-03 : f32
    %98 = vector.broadcast %cst_50 : f32 to vector<2x128xf32>
    %99 = arith.mulf %97, %98 : vector<2x128xf32>
    %100 = arith.subf %99, %87 : vector<2x128xf32>
    %101 = math.absf %100 : vector<2x128xf32>
    %cst_51 = arith.constant 1.000000e-01 : f32
    %102 = vector.broadcast %cst_51 : f32 to vector<2x128xf32>
    %103 = arith.cmpf oge, %101, %102 : vector<2x128xf32>
    %cst_52 = arith.constant 0.000000e+00 : f32
    %104 = vector.broadcast %cst_52 : f32 to vector<2x128xf32>
    %105 = arith.select %103, %100, %104 : vector<2x128xi1>, vector<2x128xf32>
    %106 = arith.addf %87, %105 : vector<2x128xf32>
    %107 = math.absf %105 : vector<2x128xf32>
    %108 = arith.addf %89, %107 : vector<2x128xf32>
    %c6_53 = arith.constant 6 : index
    %c0_54 = arith.constant 0 : index
    %109 = vector.load %arg18[%c6_53, %c0_54] : memref<16x128xf32, #tpu.memory_space<vmem>>, vector<2x128xf32>
    tpu.vector_store %arg18[%c6_53, %c0_54], %106 {strides = array<i32>} : memref<16x128xf32, #tpu.memory_space<vmem>>, vector<2x128xf32>,
    %cst_55 = arith.constant 2.560000e+02 : f32
    %110 = vector.broadcast %cst_55 : f32 to vector<2x128xf32>
    %111 = arith.mulf %22, %110 : vector<2x128xf32>
    %112 = math.roundeven %111 : vector<2x128xf32>
    %cst_56 = arith.constant -3.276800e+04 : f32
    %cst_57 = arith.constant 3.276700e+04 : f32
    %113 = vector.broadcast %cst_56 : f32 to vector<2x128xf32>
    %114 = arith.maximumf %113, %112 : vector<2x128xf32>
    %115 = vector.broadcast %cst_57 : f32 to vector<2x128xf32>
    %116 = arith.minimumf %115, %114 : vector<2x128xf32>
    %cst_58 = arith.constant 3.906250e-03 : f32
    %117 = vector.broadcast %cst_58 : f32 to vector<2x128xf32>
    %118 = arith.mulf %116, %117 : vector<2x128xf32>
    %119 = arith.subf %118, %106 : vector<2x128xf32>
    %120 = math.absf %119 : vector<2x128xf32>
    %cst_59 = arith.constant 1.000000e-01 : f32
    %121 = vector.broadcast %cst_59 : f32 to vector<2x128xf32>
    %122 = arith.cmpf oge, %120, %121 : vector<2x128xf32>
    %cst_60 = arith.constant 0.000000e+00 : f32
    %123 = vector.broadcast %cst_60 : f32 to vector<2x128xf32>
    %124 = arith.select %122, %119, %123 : vector<2x128xi1>, vector<2x128xf32>
    %125 = arith.addf %106, %124 : vector<2x128xf32>
    %126 = math.absf %124 : vector<2x128xf32>
    %127 = arith.addf %108, %126 : vector<2x128xf32>
    %c8 = arith.constant 8 : index
    %c0_61 = arith.constant 0 : index
    %128 = vector.load %arg18[%c8, %c0_61] : memref<16x128xf32, #tpu.memory_space<vmem>>, vector<2x128xf32>
    tpu.vector_store %arg18[%c8, %c0_61], %125 {strides = array<i32>} : memref<16x128xf32, #tpu.memory_space<vmem>>, vector<2x128xf32>,
    %cst_62 = arith.constant 2.560000e+02 : f32
    %129 = vector.broadcast %cst_62 : f32 to vector<2x128xf32>
    %130 = arith.mulf %24, %129 : vector<2x128xf32>
    %131 = math.roundeven %130 : vector<2x128xf32>
    %cst_63 = arith.constant -3.276800e+04 : f32
    %cst_64 = arith.constant 3.276700e+04 : f32
    %132 = vector.broadcast %cst_63 : f32 to vector<2x128xf32>
    %133 = arith.maximumf %132, %131 : vector<2x128xf32>
    %134 = vector.broadcast %cst_64 : f32 to vector<2x128xf32>
    %135 = arith.minimumf %134, %133 : vector<2x128xf32>
    %cst_65 = arith.constant 3.906250e-03 : f32
    %136 = vector.broadcast %cst_65 : f32 to vector<2x128xf32>
    %137 = arith.mulf %135, %136 : vector<2x128xf32>
    %138 = arith.subf %137, %125 : vector<2x128xf32>
    %139 = math.absf %138 : vector<2x128xf32>
    %cst_66 = arith.constant 1.000000e-01 : f32
    %140 = vector.broadcast %cst_66 : f32 to vector<2x128xf32>
    %141 = arith.cmpf oge, %139, %140 : vector<2x128xf32>
    %cst_67 = arith.constant 0.000000e+00 : f32
    %142 = vector.broadcast %cst_67 : f32 to vector<2x128xf32>
    %143 = arith.select %141, %138, %142 : vector<2x128xi1>, vector<2x128xf32>
    %144 = arith.addf %125, %143 : vector<2x128xf32>
    %145 = math.absf %143 : vector<2x128xf32>
    %146 = arith.addf %127, %145 : vector<2x128xf32>
    %c10 = arith.constant 10 : index
    %c0_68 = arith.constant 0 : index
    %147 = vector.load %arg18[%c10, %c0_68] : memref<16x128xf32, #tpu.memory_space<vmem>>, vector<2x128xf32>
    tpu.vector_store %arg18[%c10, %c0_68], %144 {strides = array<i32>} : memref<16x128xf32, #tpu.memory_space<vmem>>, vector<2x128xf32>,
    %cst_69 = arith.constant 2.560000e+02 : f32
    %148 = vector.broadcast %cst_69 : f32 to vector<2x128xf32>
    %149 = arith.mulf %26, %148 : vector<2x128xf32>
    %150 = math.roundeven %149 : vector<2x128xf32>
    %cst_70 = arith.constant -3.276800e+04 : f32
    %cst_71 = arith.constant 3.276700e+04 : f32
    %151 = vector.broadcast %cst_70 : f32 to vector<2x128xf32>
    %152 = arith.maximumf %151, %150 : vector<2x128xf32>
    %153 = vector.broadcast %cst_71 : f32 to vector<2x128xf32>
    %154 = arith.minimumf %153, %152 : vector<2x128xf32>
    %cst_72 = arith.constant 3.906250e-03 : f32
    %155 = vector.broadcast %cst_72 : f32 to vector<2x128xf32>
    %156 = arith.mulf %154, %155 : vector<2x128xf32>
    %157 = arith.subf %156, %144 : vector<2x128xf32>
    %158 = math.absf %157 : vector<2x128xf32>
    %cst_73 = arith.constant 1.000000e-01 : f32
    %159 = vector.broadcast %cst_73 : f32 to vector<2x128xf32>
    %160 = arith.cmpf oge, %158, %159 : vector<2x128xf32>
    %cst_74 = arith.constant 0.000000e+00 : f32
    %161 = vector.broadcast %cst_74 : f32 to vector<2x128xf32>
    %162 = arith.select %160, %157, %161 : vector<2x128xi1>, vector<2x128xf32>
    %163 = arith.addf %144, %162 : vector<2x128xf32>
    %164 = math.absf %162 : vector<2x128xf32>
    %165 = arith.addf %146, %164 : vector<2x128xf32>
    %c12 = arith.constant 12 : index
    %c0_75 = arith.constant 0 : index
    %166 = vector.load %arg18[%c12, %c0_75] : memref<16x128xf32, #tpu.memory_space<vmem>>, vector<2x128xf32>
    tpu.vector_store %arg18[%c12, %c0_75], %163 {strides = array<i32>} : memref<16x128xf32, #tpu.memory_space<vmem>>, vector<2x128xf32>,
    %cst_76 = arith.constant 2.560000e+02 : f32
    %167 = vector.broadcast %cst_76 : f32 to vector<2x128xf32>
    %168 = arith.mulf %28, %167 : vector<2x128xf32>
    %169 = math.roundeven %168 : vector<2x128xf32>
    %cst_77 = arith.constant -3.276800e+04 : f32
    %cst_78 = arith.constant 3.276700e+04 : f32
    %170 = vector.broadcast %cst_77 : f32 to vector<2x128xf32>
    %171 = arith.maximumf %170, %169 : vector<2x128xf32>
    %172 = vector.broadcast %cst_78 : f32 to vector<2x128xf32>
    %173 = arith.minimumf %172, %171 : vector<2x128xf32>
    %cst_79 = arith.constant 3.906250e-03 : f32
    %174 = vector.broadcast %cst_79 : f32 to vector<2x128xf32>
    %175 = arith.mulf %173, %174 : vector<2x128xf32>
    %176 = arith.subf %175, %163 : vector<2x128xf32>
    %177 = math.absf %176 : vector<2x128xf32>
    %cst_80 = arith.constant 1.000000e-01 : f32
    %178 = vector.broadcast %cst_80 : f32 to vector<2x128xf32>
    %179 = arith.cmpf oge, %177, %178 : vector<2x128xf32>
    %cst_81 = arith.constant 0.000000e+00 : f32
    %180 = vector.broadcast %cst_81 : f32 to vector<2x128xf32>
    %181 = arith.select %179, %176, %180 : vector<2x128xi1>, vector<2x128xf32>
    %182 = arith.addf %163, %181 : vector<2x128xf32>
    %183 = math.absf %181 : vector<2x128xf32>
    %184 = arith.addf %165, %183 : vector<2x128xf32>
    %c14 = arith.constant 14 : index
    %c0_82 = arith.constant 0 : index
    %185 = vector.load %arg18[%c14, %c0_82] : memref<16x128xf32, #tpu.memory_space<vmem>>, vector<2x128xf32>
    tpu.vector_store %arg18[%c14, %c0_82], %182 {strides = array<i32>} : memref<16x128xf32, #tpu.memory_space<vmem>>, vector<2x128xf32>,
    %c0_83 = arith.constant 0 : index
    %c0_84 = arith.constant 0 : index
    %186 = vector.load %arg18[%c0_83, %c0_84] : memref<16x128xf32, #tpu.memory_space<vmem>>, vector<16x128xf32>
    %cst_85 = arith.constant dense<0.000000e+00> : vector<16x128xf32>
    %187 = tpu.matmul %186, %29, %cst_85 {dimension_numbers = #tpu.dot_dimension_numbers<[1], [0], [0], [1], [0, 0, 1, 1], [], []>} : vector<16x128xf32>, vector<128x128xf32>, vector<16x128xf32> -> vector<16x128xf32>
    %188 = vector.broadcast %31 : vector<1x128xf32> to vector<16x128xf32>
    %189 = arith.addf %187, %188 : vector<16x128xf32>
    %cst_86 = arith.constant 0.000000e+00 : f32
    %190 = vector.broadcast %cst_86 : f32 to vector<2x128xf32>
    %cst_87 = arith.constant 0.000000e+00 : f32
    %191 = vector.broadcast %cst_87 : f32 to vector<2x128xf32>
    %cst_88 = arith.constant 0.000000e+00 : f32
    %192 = vector.broadcast %cst_88 : f32 to vector<2x128xf32>
    %cst_89 = arith.constant 0.000000e+00 : f32
    %193 = vector.broadcast %cst_89 : f32 to vector<2x128xf32>
    %194 = arith.subf %190, %191 : vector<2x128xf32>
    %195 = math.absf %194 : vector<2x128xf32>
    %cst_90 = arith.constant 1.000000e-01 : f32
    %196 = vector.broadcast %cst_90 : f32 to vector<2x128xf32>
    %197 = arith.cmpf oge, %195, %196 : vector<2x128xf32>
    %cst_91 = arith.constant 0.000000e+00 : f32
    %198 = vector.broadcast %cst_91 : f32 to vector<2x128xf32>
    %199 = arith.select %197, %194, %198 : vector<2x128xi1>, vector<2x128xf32>
    %200 = arith.addf %191, %199 : vector<2x128xf32>
    %201 = math.absf %199 : vector<2x128xf32>
    %202 = arith.addf %193, %201 : vector<2x128xf32>
    %cst_92 = arith.constant dense<0.000000e+00> : vector<2x128xf32>
    %203 = tpu.matmul %199, %30, %cst_92 {dimension_numbers = #tpu.dot_dimension_numbers<[1], [0], [0], [1], [0, 0, 1, 1], [], []>} : vector<2x128xf32>, vector<128x128xf32>, vector<2x128xf32> -> vector<2x128xf32>
    %204 = arith.addf %192, %203 : vector<2x128xf32>
    %205 = vector.extract_strided_slice %189 {offsets = [0, 0], sizes = [2, 128], strides = [1, 1]} : vector<16x128xf32> to vector<2x128xf32>
    %206 = arith.addf %205, %204 : vector<2x128xf32>
    %207 = arith.negf %206 : vector<2x128xf32>
    %208 = math.exp %207 : vector<2x128xf32>
    %cst_93 = arith.constant 1.000000e+00 : f32
    %209 = vector.broadcast %cst_93 : f32 to vector<2x128xf32>
    %210 = arith.addf %209, %208 : vector<2x128xf32>
    %211 = arith.divf %209, %210 : vector<2x128xf32>
    %c64_i32 = arith.constant 64 : i32
    %212 = tpu.dynamic_rotate %211 by %c64_i32 dim 1 : vector<2x128xf32>, i32 -> vector<2x128xf32>
    %213 = arith.mulf %212, %204 : vector<2x128xf32>
    %214 = arith.addf %205, %213 : vector<2x128xf32>
    %215 = math.tanh %214 : vector<2x128xf32>
    %c96_i32 = arith.constant 96 : i32
    %216 = tpu.dynamic_rotate %211 by %c96_i32 dim 1 : vector<2x128xf32>, i32 -> vector<2x128xf32>
    %c64_i32_94 = arith.constant 64 : i32
    %217 = tpu.dynamic_rotate %215 by %c64_i32_94 dim 1 : vector<2x128xf32>, i32 -> vector<2x128xf32>
    %cst_95 = arith.constant 1.000000e+00 : f32
    %218 = vector.broadcast %cst_95 : f32 to vector<2x128xf32>
    %219 = arith.subf %218, %216 : vector<2x128xf32>
    %220 = arith.mulf %219, %217 : vector<2x128xf32>
    %221 = arith.mulf %216, %190 : vector<2x128xf32>
    %222 = arith.addf %220, %221 : vector<2x128xf32>
    %cst_96 = arith.constant 2.560000e+02 : f32
    %223 = vector.broadcast %cst_96 : f32 to vector<2x128xf32>
    %224 = arith.mulf %222, %223 : vector<2x128xf32>
    %225 = math.roundeven %224 : vector<2x128xf32>
    %cst_97 = arith.constant -3.276800e+04 : f32
    %cst_98 = arith.constant 3.276700e+04 : f32
    %226 = vector.broadcast %cst_97 : f32 to vector<2x128xf32>
    %227 = arith.maximumf %226, %225 : vector<2x128xf32>
    %228 = vector.broadcast %cst_98 : f32 to vector<2x128xf32>
    %229 = arith.minimumf %228, %227 : vector<2x128xf32>
    %cst_99 = arith.constant 3.906250e-03 : f32
    %230 = vector.broadcast %cst_99 : f32 to vector<2x128xf32>
    %231 = arith.mulf %229, %230 : vector<2x128xf32>
    %232 = arith.mulf %231, %12 : vector<2x128xf32>
    %233 = arith.subf %232, %200 : vector<2x128xf32>
    %234 = math.absf %233 : vector<2x128xf32>
    %cst_100 = arith.constant 1.000000e-01 : f32
    %235 = vector.broadcast %cst_100 : f32 to vector<2x128xf32>
    %236 = arith.cmpf oge, %234, %235 : vector<2x128xf32>
    %cst_101 = arith.constant 0.000000e+00 : f32
    %237 = vector.broadcast %cst_101 : f32 to vector<2x128xf32>
    %238 = arith.select %236, %233, %237 : vector<2x128xi1>, vector<2x128xf32>
    %239 = arith.addf %200, %238 : vector<2x128xf32>
    %240 = math.absf %238 : vector<2x128xf32>
    %241 = arith.addf %202, %240 : vector<2x128xf32>
    %cst_102 = arith.constant dense<0.000000e+00> : vector<2x128xf32>
    %242 = tpu.matmul %238, %30, %cst_102 {dimension_numbers = #tpu.dot_dimension_numbers<[1], [0], [0], [1], [0, 0, 1, 1], [], []>} : vector<2x128xf32>, vector<128x128xf32>, vector<2x128xf32> -> vector<2x128xf32>
    %243 = arith.addf %204, %242 : vector<2x128xf32>
    %244 = vector.extract_strided_slice %189 {offsets = [2, 0], sizes = [2, 128], strides = [1, 1]} : vector<16x128xf32> to vector<2x128xf32>
    %245 = arith.addf %244, %243 : vector<2x128xf32>
    %246 = arith.negf %245 : vector<2x128xf32>
    %247 = math.exp %246 : vector<2x128xf32>
    %cst_103 = arith.constant 1.000000e+00 : f32
    %248 = vector.broadcast %cst_103 : f32 to vector<2x128xf32>
    %249 = arith.addf %248, %247 : vector<2x128xf32>
    %250 = arith.divf %248, %249 : vector<2x128xf32>
    %c64_i32_104 = arith.constant 64 : i32
    %251 = tpu.dynamic_rotate %250 by %c64_i32_104 dim 1 : vector<2x128xf32>, i32 -> vector<2x128xf32>
    %252 = arith.mulf %251, %243 : vector<2x128xf32>
    %253 = arith.addf %244, %252 : vector<2x128xf32>
    %254 = math.tanh %253 : vector<2x128xf32>
    %c96_i32_105 = arith.constant 96 : i32
    %255 = tpu.dynamic_rotate %250 by %c96_i32_105 dim 1 : vector<2x128xf32>, i32 -> vector<2x128xf32>
    %c64_i32_106 = arith.constant 64 : i32
    %256 = tpu.dynamic_rotate %254 by %c64_i32_106 dim 1 : vector<2x128xf32>, i32 -> vector<2x128xf32>
    %cst_107 = arith.constant 1.000000e+00 : f32
    %257 = vector.broadcast %cst_107 : f32 to vector<2x128xf32>
    %258 = arith.subf %257, %255 : vector<2x128xf32>
    %259 = arith.mulf %258, %256 : vector<2x128xf32>
    %260 = arith.mulf %255, %232 : vector<2x128xf32>
    %261 = arith.addf %259, %260 : vector<2x128xf32>
    %cst_108 = arith.constant 2.560000e+02 : f32
    %262 = vector.broadcast %cst_108 : f32 to vector<2x128xf32>
    %263 = arith.mulf %261, %262 : vector<2x128xf32>
    %264 = math.roundeven %263 : vector<2x128xf32>
    %cst_109 = arith.constant -3.276800e+04 : f32
    %cst_110 = arith.constant 3.276700e+04 : f32
    %265 = vector.broadcast %cst_109 : f32 to vector<2x128xf32>
    %266 = arith.maximumf %265, %264 : vector<2x128xf32>
    %267 = vector.broadcast %cst_110 : f32 to vector<2x128xf32>
    %268 = arith.minimumf %267, %266 : vector<2x128xf32>
    %cst_111 = arith.constant 3.906250e-03 : f32
    %269 = vector.broadcast %cst_111 : f32 to vector<2x128xf32>
    %270 = arith.mulf %268, %269 : vector<2x128xf32>
    %271 = arith.mulf %270, %12 : vector<2x128xf32>
    %272 = arith.subf %271, %239 : vector<2x128xf32>
    %273 = math.absf %272 : vector<2x128xf32>
    %cst_112 = arith.constant 1.000000e-01 : f32
    %274 = vector.broadcast %cst_112 : f32 to vector<2x128xf32>
    %275 = arith.cmpf oge, %273, %274 : vector<2x128xf32>
    %cst_113 = arith.constant 0.000000e+00 : f32
    %276 = vector.broadcast %cst_113 : f32 to vector<2x128xf32>
    %277 = arith.select %275, %272, %276 : vector<2x128xi1>, vector<2x128xf32>
    %278 = arith.addf %239, %277 : vector<2x128xf32>
    %279 = math.absf %277 : vector<2x128xf32>
    %280 = arith.addf %241, %279 : vector<2x128xf32>
    %cst_114 = arith.constant dense<0.000000e+00> : vector<2x128xf32>
    %281 = tpu.matmul %277, %30, %cst_114 {dimension_numbers = #tpu.dot_dimension_numbers<[1], [0], [0], [1], [0, 0, 1, 1], [], []>} : vector<2x128xf32>, vector<128x128xf32>, vector<2x128xf32> -> vector<2x128xf32>
    %282 = arith.addf %243, %281 : vector<2x128xf32>
    %283 = vector.extract_strided_slice %189 {offsets = [4, 0], sizes = [2, 128], strides = [1, 1]} : vector<16x128xf32> to vector<2x128xf32>
    %284 = arith.addf %283, %282 : vector<2x128xf32>
    %285 = arith.negf %284 : vector<2x128xf32>
    %286 = math.exp %285 : vector<2x128xf32>
    %cst_115 = arith.constant 1.000000e+00 : f32
    %287 = vector.broadcast %cst_115 : f32 to vector<2x128xf32>
    %288 = arith.addf %287, %286 : vector<2x128xf32>
    %289 = arith.divf %287, %288 : vector<2x128xf32>
    %c64_i32_116 = arith.constant 64 : i32
    %290 = tpu.dynamic_rotate %289 by %c64_i32_116 dim 1 : vector<2x128xf32>, i32 -> vector<2x128xf32>
    %291 = arith.mulf %290, %282 : vector<2x128xf32>
    %292 = arith.addf %283, %291 : vector<2x128xf32>
    %293 = math.tanh %292 : vector<2x128xf32>
    %c96_i32_117 = arith.constant 96 : i32
    %294 = tpu.dynamic_rotate %289 by %c96_i32_117 dim 1 : vector<2x128xf32>, i32 -> vector<2x128xf32>
    %c64_i32_118 = arith.constant 64 : i32
    %295 = tpu.dynamic_rotate %293 by %c64_i32_118 dim 1 : vector<2x128xf32>, i32 -> vector<2x128xf32>
    %cst_119 = arith.constant 1.000000e+00 : f32
    %296 = vector.broadcast %cst_119 : f32 to vector<2x128xf32>
    %297 = arith.subf %296, %294 : vector<2x128xf32>
    %298 = arith.mulf %297, %295 : vector<2x128xf32>
    %299 = arith.mulf %294, %271 : vector<2x128xf32>
    %300 = arith.addf %298, %299 : vector<2x128xf32>
    %cst_120 = arith.constant 2.560000e+02 : f32
    %301 = vector.broadcast %cst_120 : f32 to vector<2x128xf32>
    %302 = arith.mulf %300, %301 : vector<2x128xf32>
    %303 = math.roundeven %302 : vector<2x128xf32>
    %cst_121 = arith.constant -3.276800e+04 : f32
    %cst_122 = arith.constant 3.276700e+04 : f32
    %304 = vector.broadcast %cst_121 : f32 to vector<2x128xf32>
    %305 = arith.maximumf %304, %303 : vector<2x128xf32>
    %306 = vector.broadcast %cst_122 : f32 to vector<2x128xf32>
    %307 = arith.minimumf %306, %305 : vector<2x128xf32>
    %cst_123 = arith.constant 3.906250e-03 : f32
    %308 = vector.broadcast %cst_123 : f32 to vector<2x128xf32>
    %309 = arith.mulf %307, %308 : vector<2x128xf32>
    %310 = arith.mulf %309, %12 : vector<2x128xf32>
    %311 = arith.subf %310, %278 : vector<2x128xf32>
    %312 = math.absf %311 : vector<2x128xf32>
    %cst_124 = arith.constant 1.000000e-01 : f32
    %313 = vector.broadcast %cst_124 : f32 to vector<2x128xf32>
    %314 = arith.cmpf oge, %312, %313 : vector<2x128xf32>
    %cst_125 = arith.constant 0.000000e+00 : f32
    %315 = vector.broadcast %cst_125 : f32 to vector<2x128xf32>
    %316 = arith.select %314, %311, %315 : vector<2x128xi1>, vector<2x128xf32>
    %317 = arith.addf %278, %316 : vector<2x128xf32>
    %318 = math.absf %316 : vector<2x128xf32>
    %319 = arith.addf %280, %318 : vector<2x128xf32>
    %cst_126 = arith.constant dense<0.000000e+00> : vector<2x128xf32>
    %320 = tpu.matmul %316, %30, %cst_126 {dimension_numbers = #tpu.dot_dimension_numbers<[1], [0], [0], [1], [0, 0, 1, 1], [], []>} : vector<2x128xf32>, vector<128x128xf32>, vector<2x128xf32> -> vector<2x128xf32>
    %321 = arith.addf %282, %320 : vector<2x128xf32>
    %322 = vector.extract_strided_slice %189 {offsets = [6, 0], sizes = [2, 128], strides = [1, 1]} : vector<16x128xf32> to vector<2x128xf32>
    %323 = arith.addf %322, %321 : vector<2x128xf32>
    %324 = arith.negf %323 : vector<2x128xf32>
    %325 = math.exp %324 : vector<2x128xf32>
    %cst_127 = arith.constant 1.000000e+00 : f32
    %326 = vector.broadcast %cst_127 : f32 to vector<2x128xf32>
    %327 = arith.addf %326, %325 : vector<2x128xf32>
    %328 = arith.divf %326, %327 : vector<2x128xf32>
    %c64_i32_128 = arith.constant 64 : i32
    %329 = tpu.dynamic_rotate %328 by %c64_i32_128 dim 1 : vector<2x128xf32>, i32 -> vector<2x128xf32>
    %330 = arith.mulf %329, %321 : vector<2x128xf32>
    %331 = arith.addf %322, %330 : vector<2x128xf32>
    %332 = math.tanh %331 : vector<2x128xf32>
    %c96_i32_129 = arith.constant 96 : i32
    %333 = tpu.dynamic_rotate %328 by %c96_i32_129 dim 1 : vector<2x128xf32>, i32 -> vector<2x128xf32>
    %c64_i32_130 = arith.constant 64 : i32
    %334 = tpu.dynamic_rotate %332 by %c64_i32_130 dim 1 : vector<2x128xf32>, i32 -> vector<2x128xf32>
    %cst_131 = arith.constant 1.000000e+00 : f32
    %335 = vector.broadcast %cst_131 : f32 to vector<2x128xf32>
    %336 = arith.subf %335, %333 : vector<2x128xf32>
    %337 = arith.mulf %336, %334 : vector<2x128xf32>
    %338 = arith.mulf %333, %310 : vector<2x128xf32>
    %339 = arith.addf %337, %338 : vector<2x128xf32>
    %cst_132 = arith.constant 2.560000e+02 : f32
    %340 = vector.broadcast %cst_132 : f32 to vector<2x128xf32>
    %341 = arith.mulf %339, %340 : vector<2x128xf32>
    %342 = math.roundeven %341 : vector<2x128xf32>
    %cst_133 = arith.constant -3.276800e+04 : f32
    %cst_134 = arith.constant 3.276700e+04 : f32
    %343 = vector.broadcast %cst_133 : f32 to vector<2x128xf32>
    %344 = arith.maximumf %343, %342 : vector<2x128xf32>
    %345 = vector.broadcast %cst_134 : f32 to vector<2x128xf32>
    %346 = arith.minimumf %345, %344 : vector<2x128xf32>
    %cst_135 = arith.constant 3.906250e-03 : f32
    %347 = vector.broadcast %cst_135 : f32 to vector<2x128xf32>
    %348 = arith.mulf %346, %347 : vector<2x128xf32>
    %349 = arith.mulf %348, %12 : vector<2x128xf32>
    %350 = arith.subf %349, %317 : vector<2x128xf32>
    %351 = math.absf %350 : vector<2x128xf32>
    %cst_136 = arith.constant 1.000000e-01 : f32
    %352 = vector.broadcast %cst_136 : f32 to vector<2x128xf32>
    %353 = arith.cmpf oge, %351, %352 : vector<2x128xf32>
    %cst_137 = arith.constant 0.000000e+00 : f32
    %354 = vector.broadcast %cst_137 : f32 to vector<2x128xf32>
    %355 = arith.select %353, %350, %354 : vector<2x128xi1>, vector<2x128xf32>
    %356 = arith.addf %317, %355 : vector<2x128xf32>
    %357 = math.absf %355 : vector<2x128xf32>
    %358 = arith.addf %319, %357 : vector<2x128xf32>
    %cst_138 = arith.constant dense<0.000000e+00> : vector<2x128xf32>
    %359 = tpu.matmul %355, %30, %cst_138 {dimension_numbers = #tpu.dot_dimension_numbers<[1], [0], [0], [1], [0, 0, 1, 1], [], []>} : vector<2x128xf32>, vector<128x128xf32>, vector<2x128xf32> -> vector<2x128xf32>
    %360 = arith.addf %321, %359 : vector<2x128xf32>
    %361 = vector.extract_strided_slice %189 {offsets = [8, 0], sizes = [2, 128], strides = [1, 1]} : vector<16x128xf32> to vector<2x128xf32>
    %362 = arith.addf %361, %360 : vector<2x128xf32>
    %363 = arith.negf %362 : vector<2x128xf32>
    %364 = math.exp %363 : vector<2x128xf32>
    %cst_139 = arith.constant 1.000000e+00 : f32
    %365 = vector.broadcast %cst_139 : f32 to vector<2x128xf32>
    %366 = arith.addf %365, %364 : vector<2x128xf32>
    %367 = arith.divf %365, %366 : vector<2x128xf32>
    %c64_i32_140 = arith.constant 64 : i32
    %368 = tpu.dynamic_rotate %367 by %c64_i32_140 dim 1 : vector<2x128xf32>, i32 -> vector<2x128xf32>
    %369 = arith.mulf %368, %360 : vector<2x128xf32>
    %370 = arith.addf %361, %369 : vector<2x128xf32>
    %371 = math.tanh %370 : vector<2x128xf32>
    %c96_i32_141 = arith.constant 96 : i32
    %372 = tpu.dynamic_rotate %367 by %c96_i32_141 dim 1 : vector<2x128xf32>, i32 -> vector<2x128xf32>
    %c64_i32_142 = arith.constant 64 : i32
    %373 = tpu.dynamic_rotate %371 by %c64_i32_142 dim 1 : vector<2x128xf32>, i32 -> vector<2x128xf32>
    %cst_143 = arith.constant 1.000000e+00 : f32
    %374 = vector.broadcast %cst_143 : f32 to vector<2x128xf32>
    %375 = arith.subf %374, %372 : vector<2x128xf32>
    %376 = arith.mulf %375, %373 : vector<2x128xf32>
    %377 = arith.mulf %372, %349 : vector<2x128xf32>
    %378 = arith.addf %376, %377 : vector<2x128xf32>
    %cst_144 = arith.constant 2.560000e+02 : f32
    %379 = vector.broadcast %cst_144 : f32 to vector<2x128xf32>
    %380 = arith.mulf %378, %379 : vector<2x128xf32>
    %381 = math.roundeven %380 : vector<2x128xf32>
    %cst_145 = arith.constant -3.276800e+04 : f32
    %cst_146 = arith.constant 3.276700e+04 : f32
    %382 = vector.broadcast %cst_145 : f32 to vector<2x128xf32>
    %383 = arith.maximumf %382, %381 : vector<2x128xf32>
    %384 = vector.broadcast %cst_146 : f32 to vector<2x128xf32>
    %385 = arith.minimumf %384, %383 : vector<2x128xf32>
    %cst_147 = arith.constant 3.906250e-03 : f32
    %386 = vector.broadcast %cst_147 : f32 to vector<2x128xf32>
    %387 = arith.mulf %385, %386 : vector<2x128xf32>
    %388 = arith.mulf %387, %12 : vector<2x128xf32>
    %389 = arith.subf %388, %356 : vector<2x128xf32>
    %390 = math.absf %389 : vector<2x128xf32>
    %cst_148 = arith.constant 1.000000e-01 : f32
    %391 = vector.broadcast %cst_148 : f32 to vector<2x128xf32>
    %392 = arith.cmpf oge, %390, %391 : vector<2x128xf32>
    %cst_149 = arith.constant 0.000000e+00 : f32
    %393 = vector.broadcast %cst_149 : f32 to vector<2x128xf32>
    %394 = arith.select %392, %389, %393 : vector<2x128xi1>, vector<2x128xf32>
    %395 = arith.addf %356, %394 : vector<2x128xf32>
    %396 = math.absf %394 : vector<2x128xf32>
    %397 = arith.addf %358, %396 : vector<2x128xf32>
    %cst_150 = arith.constant dense<0.000000e+00> : vector<2x128xf32>
    %398 = tpu.matmul %394, %30, %cst_150 {dimension_numbers = #tpu.dot_dimension_numbers<[1], [0], [0], [1], [0, 0, 1, 1], [], []>} : vector<2x128xf32>, vector<128x128xf32>, vector<2x128xf32> -> vector<2x128xf32>
    %399 = arith.addf %360, %398 : vector<2x128xf32>
    %400 = vector.extract_strided_slice %189 {offsets = [10, 0], sizes = [2, 128], strides = [1, 1]} : vector<16x128xf32> to vector<2x128xf32>
    %401 = arith.addf %400, %399 : vector<2x128xf32>
    %402 = arith.negf %401 : vector<2x128xf32>
    %403 = math.exp %402 : vector<2x128xf32>
    %cst_151 = arith.constant 1.000000e+00 : f32
    %404 = vector.broadcast %cst_151 : f32 to vector<2x128xf32>
    %405 = arith.addf %404, %403 : vector<2x128xf32>
    %406 = arith.divf %404, %405 : vector<2x128xf32>
    %c64_i32_152 = arith.constant 64 : i32
    %407 = tpu.dynamic_rotate %406 by %c64_i32_152 dim 1 : vector<2x128xf32>, i32 -> vector<2x128xf32>
    %408 = arith.mulf %407, %399 : vector<2x128xf32>
    %409 = arith.addf %400, %408 : vector<2x128xf32>
    %410 = math.tanh %409 : vector<2x128xf32>
    %c96_i32_153 = arith.constant 96 : i32
    %411 = tpu.dynamic_rotate %406 by %c96_i32_153 dim 1 : vector<2x128xf32>, i32 -> vector<2x128xf32>
    %c64_i32_154 = arith.constant 64 : i32
    %412 = tpu.dynamic_rotate %410 by %c64_i32_154 dim 1 : vector<2x128xf32>, i32 -> vector<2x128xf32>
    %cst_155 = arith.constant 1.000000e+00 : f32
    %413 = vector.broadcast %cst_155 : f32 to vector<2x128xf32>
    %414 = arith.subf %413, %411 : vector<2x128xf32>
    %415 = arith.mulf %414, %412 : vector<2x128xf32>
    %416 = arith.mulf %411, %388 : vector<2x128xf32>
    %417 = arith.addf %415, %416 : vector<2x128xf32>
    %cst_156 = arith.constant 2.560000e+02 : f32
    %418 = vector.broadcast %cst_156 : f32 to vector<2x128xf32>
    %419 = arith.mulf %417, %418 : vector<2x128xf32>
    %420 = math.roundeven %419 : vector<2x128xf32>
    %cst_157 = arith.constant -3.276800e+04 : f32
    %cst_158 = arith.constant 3.276700e+04 : f32
    %421 = vector.broadcast %cst_157 : f32 to vector<2x128xf32>
    %422 = arith.maximumf %421, %420 : vector<2x128xf32>
    %423 = vector.broadcast %cst_158 : f32 to vector<2x128xf32>
    %424 = arith.minimumf %423, %422 : vector<2x128xf32>
    %cst_159 = arith.constant 3.906250e-03 : f32
    %425 = vector.broadcast %cst_159 : f32 to vector<2x128xf32>
    %426 = arith.mulf %424, %425 : vector<2x128xf32>
    %427 = arith.mulf %426, %12 : vector<2x128xf32>
    %428 = arith.subf %427, %395 : vector<2x128xf32>
    %429 = math.absf %428 : vector<2x128xf32>
    %cst_160 = arith.constant 1.000000e-01 : f32
    %430 = vector.broadcast %cst_160 : f32 to vector<2x128xf32>
    %431 = arith.cmpf oge, %429, %430 : vector<2x128xf32>
    %cst_161 = arith.constant 0.000000e+00 : f32
    %432 = vector.broadcast %cst_161 : f32 to vector<2x128xf32>
    %433 = arith.select %431, %428, %432 : vector<2x128xi1>, vector<2x128xf32>
    %434 = arith.addf %395, %433 : vector<2x128xf32>
    %435 = math.absf %433 : vector<2x128xf32>
    %436 = arith.addf %397, %435 : vector<2x128xf32>
    %cst_162 = arith.constant dense<0.000000e+00> : vector<2x128xf32>
    %437 = tpu.matmul %433, %30, %cst_162 {dimension_numbers = #tpu.dot_dimension_numbers<[1], [0], [0], [1], [0, 0, 1, 1], [], []>} : vector<2x128xf32>, vector<128x128xf32>, vector<2x128xf32> -> vector<2x128xf32>
    %438 = arith.addf %399, %437 : vector<2x128xf32>
    %439 = vector.extract_strided_slice %189 {offsets = [12, 0], sizes = [2, 128], strides = [1, 1]} : vector<16x128xf32> to vector<2x128xf32>
    %440 = arith.addf %439, %438 : vector<2x128xf32>
    %441 = arith.negf %440 : vector<2x128xf32>
    %442 = math.exp %441 : vector<2x128xf32>
    %cst_163 = arith.constant 1.000000e+00 : f32
    %443 = vector.broadcast %cst_163 : f32 to vector<2x128xf32>
    %444 = arith.addf %443, %442 : vector<2x128xf32>
    %445 = arith.divf %443, %444 : vector<2x128xf32>
    %c64_i32_164 = arith.constant 64 : i32
    %446 = tpu.dynamic_rotate %445 by %c64_i32_164 dim 1 : vector<2x128xf32>, i32 -> vector<2x128xf32>
    %447 = arith.mulf %446, %438 : vector<2x128xf32>
    %448 = arith.addf %439, %447 : vector<2x128xf32>
    %449 = math.tanh %448 : vector<2x128xf32>
    %c96_i32_165 = arith.constant 96 : i32
    %450 = tpu.dynamic_rotate %445 by %c96_i32_165 dim 1 : vector<2x128xf32>, i32 -> vector<2x128xf32>
    %c64_i32_166 = arith.constant 64 : i32
    %451 = tpu.dynamic_rotate %449 by %c64_i32_166 dim 1 : vector<2x128xf32>, i32 -> vector<2x128xf32>
    %cst_167 = arith.constant 1.000000e+00 : f32
    %452 = vector.broadcast %cst_167 : f32 to vector<2x128xf32>
    %453 = arith.subf %452, %450 : vector<2x128xf32>
    %454 = arith.mulf %453, %451 : vector<2x128xf32>
    %455 = arith.mulf %450, %427 : vector<2x128xf32>
    %456 = arith.addf %454, %455 : vector<2x128xf32>
    %cst_168 = arith.constant 2.560000e+02 : f32
    %457 = vector.broadcast %cst_168 : f32 to vector<2x128xf32>
    %458 = arith.mulf %456, %457 : vector<2x128xf32>
    %459 = math.roundeven %458 : vector<2x128xf32>
    %cst_169 = arith.constant -3.276800e+04 : f32
    %cst_170 = arith.constant 3.276700e+04 : f32
    %460 = vector.broadcast %cst_169 : f32 to vector<2x128xf32>
    %461 = arith.maximumf %460, %459 : vector<2x128xf32>
    %462 = vector.broadcast %cst_170 : f32 to vector<2x128xf32>
    %463 = arith.minimumf %462, %461 : vector<2x128xf32>
    %cst_171 = arith.constant 3.906250e-03 : f32
    %464 = vector.broadcast %cst_171 : f32 to vector<2x128xf32>
    %465 = arith.mulf %463, %464 : vector<2x128xf32>
    %466 = arith.mulf %465, %12 : vector<2x128xf32>
    %467 = arith.subf %466, %434 : vector<2x128xf32>
    %468 = math.absf %467 : vector<2x128xf32>
    %cst_172 = arith.constant 1.000000e-01 : f32
    %469 = vector.broadcast %cst_172 : f32 to vector<2x128xf32>
    %470 = arith.cmpf oge, %468, %469 : vector<2x128xf32>
    %cst_173 = arith.constant 0.000000e+00 : f32
    %471 = vector.broadcast %cst_173 : f32 to vector<2x128xf32>
    %472 = arith.select %470, %467, %471 : vector<2x128xi1>, vector<2x128xf32>
    %473 = math.absf %472 : vector<2x128xf32>
    %474 = arith.addf %436, %473 : vector<2x128xf32>
    %cst_174 = arith.constant dense<0.000000e+00> : vector<2x128xf32>
    %475 = tpu.matmul %472, %30, %cst_174 {dimension_numbers = #tpu.dot_dimension_numbers<[1], [0], [0], [1], [0, 0, 1, 1], [], []>} : vector<2x128xf32>, vector<128x128xf32>, vector<2x128xf32> -> vector<2x128xf32>
    %476 = arith.addf %438, %475 : vector<2x128xf32>
    %477 = vector.extract_strided_slice %189 {offsets = [14, 0], sizes = [2, 128], strides = [1, 1]} : vector<16x128xf32> to vector<2x128xf32>
    %478 = arith.addf %477, %476 : vector<2x128xf32>
    %479 = arith.negf %478 : vector<2x128xf32>
    %480 = math.exp %479 : vector<2x128xf32>
    %cst_175 = arith.constant 1.000000e+00 : f32
    %481 = vector.broadcast %cst_175 : f32 to vector<2x128xf32>
    %482 = arith.addf %481, %480 : vector<2x128xf32>
    %483 = arith.divf %481, %482 : vector<2x128xf32>
    %c64_i32_176 = arith.constant 64 : i32
    %484 = tpu.dynamic_rotate %483 by %c64_i32_176 dim 1 : vector<2x128xf32>, i32 -> vector<2x128xf32>
    %485 = arith.mulf %484, %476 : vector<2x128xf32>
    %486 = arith.addf %477, %485 : vector<2x128xf32>
    %487 = math.tanh %486 : vector<2x128xf32>
    %c96_i32_177 = arith.constant 96 : i32
    %488 = tpu.dynamic_rotate %483 by %c96_i32_177 dim 1 : vector<2x128xf32>, i32 -> vector<2x128xf32>
    %c64_i32_178 = arith.constant 64 : i32
    %489 = tpu.dynamic_rotate %487 by %c64_i32_178 dim 1 : vector<2x128xf32>, i32 -> vector<2x128xf32>
    %cst_179 = arith.constant 1.000000e+00 : f32
    %490 = vector.broadcast %cst_179 : f32 to vector<2x128xf32>
    %491 = arith.subf %490, %488 : vector<2x128xf32>
    %492 = arith.mulf %491, %489 : vector<2x128xf32>
    %493 = arith.mulf %488, %466 : vector<2x128xf32>
    %494 = arith.addf %492, %493 : vector<2x128xf32>
    %cst_180 = arith.constant 2.560000e+02 : f32
    %495 = vector.broadcast %cst_180 : f32 to vector<2x128xf32>
    %496 = arith.mulf %494, %495 : vector<2x128xf32>
    %497 = math.roundeven %496 : vector<2x128xf32>
    %cst_181 = arith.constant -3.276800e+04 : f32
    %cst_182 = arith.constant 3.276700e+04 : f32
    %498 = vector.broadcast %cst_181 : f32 to vector<2x128xf32>
    %499 = arith.maximumf %498, %497 : vector<2x128xf32>
    %500 = vector.broadcast %cst_182 : f32 to vector<2x128xf32>
    %501 = arith.minimumf %500, %499 : vector<2x128xf32>
    %cst_183 = arith.constant 3.906250e-03 : f32
    %502 = vector.broadcast %cst_183 : f32 to vector<2x128xf32>
    %503 = arith.mulf %501, %502 : vector<2x128xf32>
    %504 = arith.mulf %503, %12 : vector<2x128xf32>
    %505 = vector.shape_cast %184 : vector<2x128xf32> to vector<1x2x128xf32>
    %cst_184 = arith.constant dense<0.000000e+00> : vector<1xf32>
    %506 = vector.multi_reduction <add>, %505, %cst_184 [1, 2] : vector<1x2x128xf32> to vector<1xf32>
    %507 = vector.shape_cast %506 : vector<1xf32> to vector<1x1x1xf32>
    %508 = vector.extract %507[0, 0, 0] : f32 from vector<1x1x1xf32>
    %509 = vector.shape_cast %474 : vector<2x128xf32> to vector<1x2x128xf32>
    %cst_185 = arith.constant dense<0.000000e+00> : vector<1xf32>
    %510 = vector.multi_reduction <add>, %509, %cst_185 [1, 2] : vector<1x2x128xf32> to vector<1xf32>
    %511 = vector.shape_cast %510 : vector<1xf32> to vector<1x1x1xf32>
    %512 = vector.extract %511[0, 0, 0] : f32 from vector<1x1x1xf32>
    %513 = arith.addf %508, %512 : f32
    %c0_i32_186 = arith.constant 0 : i32
    %514 = tpu.memref_slice %arg19[%c0_i32_186] : memref<4x!tpu.dma_semaphore, #tpu.memory_space<semaphore_mem>> -> memref<1x!tpu.dma_semaphore, #tpu.memory_space<semaphore_mem>>
    %515 = tpu.memref_squeeze %514 : memref<1x!tpu.dma_semaphore, #tpu.memory_space<semaphore_mem>> -> memref<!tpu.dma_semaphore, #tpu.memory_space<semaphore_mem>>
    tpu.wait_dma2 semaphore(%515 : memref<!tpu.dma_semaphore, #tpu.memory_space<semaphore_mem>>) src(%arg8 : memref<128x128xf32, #tpu.memory_space<any>>) dst(%arg14 : memref<128x128xf32, #tpu.memory_space<vmem>>)
    %c1_i32_187 = arith.constant 1 : i32
    %516 = tpu.memref_slice %arg19[%c1_i32_187] : memref<4x!tpu.dma_semaphore, #tpu.memory_space<semaphore_mem>> -> memref<1x!tpu.dma_semaphore, #tpu.memory_space<semaphore_mem>>
    %517 = tpu.memref_squeeze %516 : memref<1x!tpu.dma_semaphore, #tpu.memory_space<semaphore_mem>> -> memref<!tpu.dma_semaphore, #tpu.memory_space<semaphore_mem>>
    tpu.wait_dma2 semaphore(%517 : memref<!tpu.dma_semaphore, #tpu.memory_space<semaphore_mem>>) src(%arg9 : memref<128x128xf32, #tpu.memory_space<any>>) dst(%arg15 : memref<128x128xf32, #tpu.memory_space<vmem>>)
    %c0_188 = arith.constant 0 : index
    %c0_189 = arith.constant 0 : index
    %518 = vector.load %arg14[%c0_188, %c0_189] : memref<128x128xf32, #tpu.memory_space<vmem>>, vector<128x128xf32>
    %c0_190 = arith.constant 0 : index
    %c0_191 = arith.constant 0 : index
    %519 = vector.load %arg15[%c0_190, %c0_191] : memref<128x128xf32, #tpu.memory_space<vmem>>, vector<128x128xf32>
    %c0_192 = arith.constant 0 : index
    %c0_193 = arith.constant 0 : index
    %520 = vector.load %arg5[%c0_192, %c0_193] : memref<1x128xf32, #tpu.memory_space<vmem>>, vector<1x128xf32>
    %cst_194 = arith.constant 0.000000e+00 : f32
    %521 = vector.broadcast %cst_194 : f32 to vector<2x128xf32>
    %cst_195 = arith.constant 0.000000e+00 : f32
    %522 = vector.broadcast %cst_195 : f32 to vector<2x128xf32>
    %cst_196 = arith.constant 2.560000e+02 : f32
    %523 = vector.broadcast %cst_196 : f32 to vector<2x128xf32>
    %524 = arith.mulf %232, %523 : vector<2x128xf32>
    %525 = math.roundeven %524 : vector<2x128xf32>
    %cst_197 = arith.constant -3.276800e+04 : f32
    %cst_198 = arith.constant 3.276700e+04 : f32
    %526 = vector.broadcast %cst_197 : f32 to vector<2x128xf32>
    %527 = arith.maximumf %526, %525 : vector<2x128xf32>
    %528 = vector.broadcast %cst_198 : f32 to vector<2x128xf32>
    %529 = arith.minimumf %528, %527 : vector<2x128xf32>
    %cst_199 = arith.constant 3.906250e-03 : f32
    %530 = vector.broadcast %cst_199 : f32 to vector<2x128xf32>
    %531 = arith.mulf %529, %530 : vector<2x128xf32>
    %532 = arith.subf %531, %521 : vector<2x128xf32>
    %533 = math.absf %532 : vector<2x128xf32>
    %cst_200 = arith.constant 1.000000e-01 : f32
    %534 = vector.broadcast %cst_200 : f32 to vector<2x128xf32>
    %535 = arith.cmpf oge, %533, %534 : vector<2x128xf32>
    %cst_201 = arith.constant 0.000000e+00 : f32
    %536 = vector.broadcast %cst_201 : f32 to vector<2x128xf32>
    %537 = arith.select %535, %532, %536 : vector<2x128xi1>, vector<2x128xf32>
    %538 = arith.addf %521, %537 : vector<2x128xf32>
    %539 = math.absf %537 : vector<2x128xf32>
    %540 = arith.addf %522, %539 : vector<2x128xf32>
    %c0_202 = arith.constant 0 : index
    %c0_203 = arith.constant 0 : index
    %541 = vector.load %arg18[%c0_202, %c0_203] : memref<16x128xf32, #tpu.memory_space<vmem>>, vector<2x128xf32>
    tpu.vector_store %arg18[%c0_202, %c0_203], %538 {strides = array<i32>} : memref<16x128xf32, #tpu.memory_space<vmem>>, vector<2x128xf32>,
    %cst_204 = arith.constant 2.560000e+02 : f32
    %542 = vector.broadcast %cst_204 : f32 to vector<2x128xf32>
    %543 = arith.mulf %271, %542 : vector<2x128xf32>
    %544 = math.roundeven %543 : vector<2x128xf32>
    %cst_205 = arith.constant -3.276800e+04 : f32
    %cst_206 = arith.constant 3.276700e+04 : f32
    %545 = vector.broadcast %cst_205 : f32 to vector<2x128xf32>
    %546 = arith.maximumf %545, %544 : vector<2x128xf32>
    %547 = vector.broadcast %cst_206 : f32 to vector<2x128xf32>
    %548 = arith.minimumf %547, %546 : vector<2x128xf32>
    %cst_207 = arith.constant 3.906250e-03 : f32
    %549 = vector.broadcast %cst_207 : f32 to vector<2x128xf32>
    %550 = arith.mulf %548, %549 : vector<2x128xf32>
    %551 = arith.subf %550, %538 : vector<2x128xf32>
    %552 = math.absf %551 : vector<2x128xf32>
    %cst_208 = arith.constant 1.000000e-01 : f32
    %553 = vector.broadcast %cst_208 : f32 to vector<2x128xf32>
    %554 = arith.cmpf oge, %552, %553 : vector<2x128xf32>
    %cst_209 = arith.constant 0.000000e+00 : f32
    %555 = vector.broadcast %cst_209 : f32 to vector<2x128xf32>
    %556 = arith.select %554, %551, %555 : vector<2x128xi1>, vector<2x128xf32>
    %557 = arith.addf %538, %556 : vector<2x128xf32>
    %558 = math.absf %556 : vector<2x128xf32>
    %559 = arith.addf %540, %558 : vector<2x128xf32>
    %c2_210 = arith.constant 2 : index
    %c0_211 = arith.constant 0 : index
    %560 = vector.load %arg18[%c2_210, %c0_211] : memref<16x128xf32, #tpu.memory_space<vmem>>, vector<2x128xf32>
    tpu.vector_store %arg18[%c2_210, %c0_211], %557 {strides = array<i32>} : memref<16x128xf32, #tpu.memory_space<vmem>>, vector<2x128xf32>,
    %cst_212 = arith.constant 2.560000e+02 : f32
    %561 = vector.broadcast %cst_212 : f32 to vector<2x128xf32>
    %562 = arith.mulf %310, %561 : vector<2x128xf32>
    %563 = math.roundeven %562 : vector<2x128xf32>
    %cst_213 = arith.constant -3.276800e+04 : f32
    %cst_214 = arith.constant 3.276700e+04 : f32
    %564 = vector.broadcast %cst_213 : f32 to vector<2x128xf32>
    %565 = arith.maximumf %564, %563 : vector<2x128xf32>
    %566 = vector.broadcast %cst_214 : f32 to vector<2x128xf32>
    %567 = arith.minimumf %566, %565 : vector<2x128xf32>
    %cst_215 = arith.constant 3.906250e-03 : f32
    %568 = vector.broadcast %cst_215 : f32 to vector<2x128xf32>
    %569 = arith.mulf %567, %568 : vector<2x128xf32>
    %570 = arith.subf %569, %557 : vector<2x128xf32>
    %571 = math.absf %570 : vector<2x128xf32>
    %cst_216 = arith.constant 1.000000e-01 : f32
    %572 = vector.broadcast %cst_216 : f32 to vector<2x128xf32>
    %573 = arith.cmpf oge, %571, %572 : vector<2x128xf32>
    %cst_217 = arith.constant 0.000000e+00 : f32
    %574 = vector.broadcast %cst_217 : f32 to vector<2x128xf32>
    %575 = arith.select %573, %570, %574 : vector<2x128xi1>, vector<2x128xf32>
    %576 = arith.addf %557, %575 : vector<2x128xf32>
    %577 = math.absf %575 : vector<2x128xf32>
    %578 = arith.addf %559, %577 : vector<2x128xf32>
    %c4_218 = arith.constant 4 : index
    %c0_219 = arith.constant 0 : index
    %579 = vector.load %arg18[%c4_218, %c0_219] : memref<16x128xf32, #tpu.memory_space<vmem>>, vector<2x128xf32>
    tpu.vector_store %arg18[%c4_218, %c0_219], %576 {strides = array<i32>} : memref<16x128xf32, #tpu.memory_space<vmem>>, vector<2x128xf32>,
    %cst_220 = arith.constant 2.560000e+02 : f32
    %580 = vector.broadcast %cst_220 : f32 to vector<2x128xf32>
    %581 = arith.mulf %349, %580 : vector<2x128xf32>
    %582 = math.roundeven %581 : vector<2x128xf32>
    %cst_221 = arith.constant -3.276800e+04 : f32
    %cst_222 = arith.constant 3.276700e+04 : f32
    %583 = vector.broadcast %cst_221 : f32 to vector<2x128xf32>
    %584 = arith.maximumf %583, %582 : vector<2x128xf32>
    %585 = vector.broadcast %cst_222 : f32 to vector<2x128xf32>
    %586 = arith.minimumf %585, %584 : vector<2x128xf32>
    %cst_223 = arith.constant 3.906250e-03 : f32
    %587 = vector.broadcast %cst_223 : f32 to vector<2x128xf32>
    %588 = arith.mulf %586, %587 : vector<2x128xf32>
    %589 = arith.subf %588, %576 : vector<2x128xf32>
    %590 = math.absf %589 : vector<2x128xf32>
    %cst_224 = arith.constant 1.000000e-01 : f32
    %591 = vector.broadcast %cst_224 : f32 to vector<2x128xf32>
    %592 = arith.cmpf oge, %590, %591 : vector<2x128xf32>
    %cst_225 = arith.constant 0.000000e+00 : f32
    %593 = vector.broadcast %cst_225 : f32 to vector<2x128xf32>
    %594 = arith.select %592, %589, %593 : vector<2x128xi1>, vector<2x128xf32>
    %595 = arith.addf %576, %594 : vector<2x128xf32>
    %596 = math.absf %594 : vector<2x128xf32>
    %597 = arith.addf %578, %596 : vector<2x128xf32>
    %c6_226 = arith.constant 6 : index
    %c0_227 = arith.constant 0 : index
    %598 = vector.load %arg18[%c6_226, %c0_227] : memref<16x128xf32, #tpu.memory_space<vmem>>, vector<2x128xf32>
    tpu.vector_store %arg18[%c6_226, %c0_227], %595 {strides = array<i32>} : memref<16x128xf32, #tpu.memory_space<vmem>>, vector<2x128xf32>,
    %cst_228 = arith.constant 2.560000e+02 : f32
    %599 = vector.broadcast %cst_228 : f32 to vector<2x128xf32>
    %600 = arith.mulf %388, %599 : vector<2x128xf32>
    %601 = math.roundeven %600 : vector<2x128xf32>
    %cst_229 = arith.constant -3.276800e+04 : f32
    %cst_230 = arith.constant 3.276700e+04 : f32
    %602 = vector.broadcast %cst_229 : f32 to vector<2x128xf32>
    %603 = arith.maximumf %602, %601 : vector<2x128xf32>
    %604 = vector.broadcast %cst_230 : f32 to vector<2x128xf32>
    %605 = arith.minimumf %604, %603 : vector<2x128xf32>
    %cst_231 = arith.constant 3.906250e-03 : f32
    %606 = vector.broadcast %cst_231 : f32 to vector<2x128xf32>
    %607 = arith.mulf %605, %606 : vector<2x128xf32>
    %608 = arith.subf %607, %595 : vector<2x128xf32>
    %609 = math.absf %608 : vector<2x128xf32>
    %cst_232 = arith.constant 1.000000e-01 : f32
    %610 = vector.broadcast %cst_232 : f32 to vector<2x128xf32>
    %611 = arith.cmpf oge, %609, %610 : vector<2x128xf32>
    %cst_233 = arith.constant 0.000000e+00 : f32
    %612 = vector.broadcast %cst_233 : f32 to vector<2x128xf32>
    %613 = arith.select %611, %608, %612 : vector<2x128xi1>, vector<2x128xf32>
    %614 = arith.addf %595, %613 : vector<2x128xf32>
    %615 = math.absf %613 : vector<2x128xf32>
    %616 = arith.addf %597, %615 : vector<2x128xf32>
    %c8_234 = arith.constant 8 : index
    %c0_235 = arith.constant 0 : index
    %617 = vector.load %arg18[%c8_234, %c0_235] : memref<16x128xf32, #tpu.memory_space<vmem>>, vector<2x128xf32>
    tpu.vector_store %arg18[%c8_234, %c0_235], %614 {strides = array<i32>} : memref<16x128xf32, #tpu.memory_space<vmem>>, vector<2x128xf32>,
    %cst_236 = arith.constant 2.560000e+02 : f32
    %618 = vector.broadcast %cst_236 : f32 to vector<2x128xf32>
    %619 = arith.mulf %427, %618 : vector<2x128xf32>
    %620 = math.roundeven %619 : vector<2x128xf32>
    %cst_237 = arith.constant -3.276800e+04 : f32
    %cst_238 = arith.constant 3.276700e+04 : f32
    %621 = vector.broadcast %cst_237 : f32 to vector<2x128xf32>
    %622 = arith.maximumf %621, %620 : vector<2x128xf32>
    %623 = vector.broadcast %cst_238 : f32 to vector<2x128xf32>
    %624 = arith.minimumf %623, %622 : vector<2x128xf32>
    %cst_239 = arith.constant 3.906250e-03 : f32
    %625 = vector.broadcast %cst_239 : f32 to vector<2x128xf32>
    %626 = arith.mulf %624, %625 : vector<2x128xf32>
    %627 = arith.subf %626, %614 : vector<2x128xf32>
    %628 = math.absf %627 : vector<2x128xf32>
    %cst_240 = arith.constant 1.000000e-01 : f32
    %629 = vector.broadcast %cst_240 : f32 to vector<2x128xf32>
    %630 = arith.cmpf oge, %628, %629 : vector<2x128xf32>
    %cst_241 = arith.constant 0.000000e+00 : f32
    %631 = vector.broadcast %cst_241 : f32 to vector<2x128xf32>
    %632 = arith.select %630, %627, %631 : vector<2x128xi1>, vector<2x128xf32>
    %633 = arith.addf %614, %632 : vector<2x128xf32>
    %634 = math.absf %632 : vector<2x128xf32>
    %635 = arith.addf %616, %634 : vector<2x128xf32>
    %c10_242 = arith.constant 10 : index
    %c0_243 = arith.constant 0 : index
    %636 = vector.load %arg18[%c10_242, %c0_243] : memref<16x128xf32, #tpu.memory_space<vmem>>, vector<2x128xf32>
    tpu.vector_store %arg18[%c10_242, %c0_243], %633 {strides = array<i32>} : memref<16x128xf32, #tpu.memory_space<vmem>>, vector<2x128xf32>,
    %cst_244 = arith.constant 2.560000e+02 : f32
    %637 = vector.broadcast %cst_244 : f32 to vector<2x128xf32>
    %638 = arith.mulf %466, %637 : vector<2x128xf32>
    %639 = math.roundeven %638 : vector<2x128xf32>
    %cst_245 = arith.constant -3.276800e+04 : f32
    %cst_246 = arith.constant 3.276700e+04 : f32
    %640 = vector.broadcast %cst_245 : f32 to vector<2x128xf32>
    %641 = arith.maximumf %640, %639 : vector<2x128xf32>
    %642 = vector.broadcast %cst_246 : f32 to vector<2x128xf32>
    %643 = arith.minimumf %642, %641 : vector<2x128xf32>
    %cst_247 = arith.constant 3.906250e-03 : f32
    %644 = vector.broadcast %cst_247 : f32 to vector<2x128xf32>
    %645 = arith.mulf %643, %644 : vector<2x128xf32>
    %646 = arith.subf %645, %633 : vector<2x128xf32>
    %647 = math.absf %646 : vector<2x128xf32>
    %cst_248 = arith.constant 1.000000e-01 : f32
    %648 = vector.broadcast %cst_248 : f32 to vector<2x128xf32>
    %649 = arith.cmpf oge, %647, %648 : vector<2x128xf32>
    %cst_249 = arith.constant 0.000000e+00 : f32
    %650 = vector.broadcast %cst_249 : f32 to vector<2x128xf32>
    %651 = arith.select %649, %646, %650 : vector<2x128xi1>, vector<2x128xf32>
    %652 = arith.addf %633, %651 : vector<2x128xf32>
    %653 = math.absf %651 : vector<2x128xf32>
    %654 = arith.addf %635, %653 : vector<2x128xf32>
    %c12_250 = arith.constant 12 : index
    %c0_251 = arith.constant 0 : index
    %655 = vector.load %arg18[%c12_250, %c0_251] : memref<16x128xf32, #tpu.memory_space<vmem>>, vector<2x128xf32>
    tpu.vector_store %arg18[%c12_250, %c0_251], %652 {strides = array<i32>} : memref<16x128xf32, #tpu.memory_space<vmem>>, vector<2x128xf32>,
    %cst_252 = arith.constant 2.560000e+02 : f32
    %656 = vector.broadcast %cst_252 : f32 to vector<2x128xf32>
    %657 = arith.mulf %504, %656 : vector<2x128xf32>
    %658 = math.roundeven %657 : vector<2x128xf32>
    %cst_253 = arith.constant -3.276800e+04 : f32
    %cst_254 = arith.constant 3.276700e+04 : f32
    %659 = vector.broadcast %cst_253 : f32 to vector<2x128xf32>
    %660 = arith.maximumf %659, %658 : vector<2x128xf32>
    %661 = vector.broadcast %cst_254 : f32 to vector<2x128xf32>
    %662 = arith.minimumf %661, %660 : vector<2x128xf32>
    %cst_255 = arith.constant 3.906250e-03 : f32
    %663 = vector.broadcast %cst_255 : f32 to vector<2x128xf32>
    %664 = arith.mulf %662, %663 : vector<2x128xf32>
    %665 = arith.subf %664, %652 : vector<2x128xf32>
    %666 = math.absf %665 : vector<2x128xf32>
    %cst_256 = arith.constant 1.000000e-01 : f32
    %667 = vector.broadcast %cst_256 : f32 to vector<2x128xf32>
    %668 = arith.cmpf oge, %666, %667 : vector<2x128xf32>
    %cst_257 = arith.constant 0.000000e+00 : f32
    %669 = vector.broadcast %cst_257 : f32 to vector<2x128xf32>
    %670 = arith.select %668, %665, %669 : vector<2x128xi1>, vector<2x128xf32>
    %671 = arith.addf %652, %670 : vector<2x128xf32>
    %672 = math.absf %670 : vector<2x128xf32>
    %673 = arith.addf %654, %672 : vector<2x128xf32>
    %c14_258 = arith.constant 14 : index
    %c0_259 = arith.constant 0 : index
    %674 = vector.load %arg18[%c14_258, %c0_259] : memref<16x128xf32, #tpu.memory_space<vmem>>, vector<2x128xf32>
    tpu.vector_store %arg18[%c14_258, %c0_259], %671 {strides = array<i32>} : memref<16x128xf32, #tpu.memory_space<vmem>>, vector<2x128xf32>,
    %c0_260 = arith.constant 0 : index
    %c0_261 = arith.constant 0 : index
    %675 = vector.load %arg18[%c0_260, %c0_261] : memref<16x128xf32, #tpu.memory_space<vmem>>, vector<16x128xf32>
    %cst_262 = arith.constant dense<0.000000e+00> : vector<16x128xf32>
    %676 = tpu.matmul %675, %518, %cst_262 {dimension_numbers = #tpu.dot_dimension_numbers<[1], [0], [0], [1], [0, 0, 1, 1], [], []>} : vector<16x128xf32>, vector<128x128xf32>, vector<16x128xf32> -> vector<16x128xf32>
    %677 = vector.broadcast %520 : vector<1x128xf32> to vector<16x128xf32>
    %678 = arith.addf %676, %677 : vector<16x128xf32>
    %cst_263 = arith.constant 0.000000e+00 : f32
    %679 = vector.broadcast %cst_263 : f32 to vector<2x128xf32>
    %cst_264 = arith.constant 0.000000e+00 : f32
    %680 = vector.broadcast %cst_264 : f32 to vector<2x128xf32>
    %cst_265 = arith.constant 0.000000e+00 : f32
    %681 = vector.broadcast %cst_265 : f32 to vector<2x128xf32>
    %cst_266 = arith.constant 0.000000e+00 : f32
    %682 = vector.broadcast %cst_266 : f32 to vector<2x128xf32>
    %683 = arith.subf %679, %680 : vector<2x128xf32>
    %684 = math.absf %683 : vector<2x128xf32>
    %cst_267 = arith.constant 1.000000e-01 : f32
    %685 = vector.broadcast %cst_267 : f32 to vector<2x128xf32>
    %686 = arith.cmpf oge, %684, %685 : vector<2x128xf32>
    %cst_268 = arith.constant 0.000000e+00 : f32
    %687 = vector.broadcast %cst_268 : f32 to vector<2x128xf32>
    %688 = arith.select %686, %683, %687 : vector<2x128xi1>, vector<2x128xf32>
    %689 = arith.addf %680, %688 : vector<2x128xf32>
    %690 = math.absf %688 : vector<2x128xf32>
    %691 = arith.addf %682, %690 : vector<2x128xf32>
    %cst_269 = arith.constant dense<0.000000e+00> : vector<2x128xf32>
    %692 = tpu.matmul %688, %519, %cst_269 {dimension_numbers = #tpu.dot_dimension_numbers<[1], [0], [0], [1], [0, 0, 1, 1], [], []>} : vector<2x128xf32>, vector<128x128xf32>, vector<2x128xf32> -> vector<2x128xf32>
    %693 = arith.addf %681, %692 : vector<2x128xf32>
    %694 = vector.extract_strided_slice %678 {offsets = [0, 0], sizes = [2, 128], strides = [1, 1]} : vector<16x128xf32> to vector<2x128xf32>
    %695 = arith.addf %694, %693 : vector<2x128xf32>
    %696 = arith.negf %695 : vector<2x128xf32>
    %697 = math.exp %696 : vector<2x128xf32>
    %cst_270 = arith.constant 1.000000e+00 : f32
    %698 = vector.broadcast %cst_270 : f32 to vector<2x128xf32>
    %699 = arith.addf %698, %697 : vector<2x128xf32>
    %700 = arith.divf %698, %699 : vector<2x128xf32>
    %c64_i32_271 = arith.constant 64 : i32
    %701 = tpu.dynamic_rotate %700 by %c64_i32_271 dim 1 : vector<2x128xf32>, i32 -> vector<2x128xf32>
    %702 = arith.mulf %701, %693 : vector<2x128xf32>
    %703 = arith.addf %694, %702 : vector<2x128xf32>
    %704 = math.tanh %703 : vector<2x128xf32>
    %c96_i32_272 = arith.constant 96 : i32
    %705 = tpu.dynamic_rotate %700 by %c96_i32_272 dim 1 : vector<2x128xf32>, i32 -> vector<2x128xf32>
    %c64_i32_273 = arith.constant 64 : i32
    %706 = tpu.dynamic_rotate %704 by %c64_i32_273 dim 1 : vector<2x128xf32>, i32 -> vector<2x128xf32>
    %cst_274 = arith.constant 1.000000e+00 : f32
    %707 = vector.broadcast %cst_274 : f32 to vector<2x128xf32>
    %708 = arith.subf %707, %705 : vector<2x128xf32>
    %709 = arith.mulf %708, %706 : vector<2x128xf32>
    %710 = arith.mulf %705, %679 : vector<2x128xf32>
    %711 = arith.addf %709, %710 : vector<2x128xf32>
    %cst_275 = arith.constant 2.560000e+02 : f32
    %712 = vector.broadcast %cst_275 : f32 to vector<2x128xf32>
    %713 = arith.mulf %711, %712 : vector<2x128xf32>
    %714 = math.roundeven %713 : vector<2x128xf32>
    %cst_276 = arith.constant -3.276800e+04 : f32
    %cst_277 = arith.constant 3.276700e+04 : f32
    %715 = vector.broadcast %cst_276 : f32 to vector<2x128xf32>
    %716 = arith.maximumf %715, %714 : vector<2x128xf32>
    %717 = vector.broadcast %cst_277 : f32 to vector<2x128xf32>
    %718 = arith.minimumf %717, %716 : vector<2x128xf32>
    %cst_278 = arith.constant 3.906250e-03 : f32
    %719 = vector.broadcast %cst_278 : f32 to vector<2x128xf32>
    %720 = arith.mulf %718, %719 : vector<2x128xf32>
    %721 = arith.mulf %720, %12 : vector<2x128xf32>
    %c0_279 = arith.constant 0 : index
    %c0_280 = arith.constant 0 : index
    %722 = vector.load %arg18[%c0_279, %c0_280] : memref<16x128xf32, #tpu.memory_space<vmem>>, vector<2x128xf32>
    tpu.vector_store %arg18[%c0_279, %c0_280], %721 {strides = array<i32>} : memref<16x128xf32, #tpu.memory_space<vmem>>, vector<2x128xf32>,
    %723 = arith.subf %721, %689 : vector<2x128xf32>
    %724 = math.absf %723 : vector<2x128xf32>
    %cst_281 = arith.constant 1.000000e-01 : f32
    %725 = vector.broadcast %cst_281 : f32 to vector<2x128xf32>
    %726 = arith.cmpf oge, %724, %725 : vector<2x128xf32>
    %cst_282 = arith.constant 0.000000e+00 : f32
    %727 = vector.broadcast %cst_282 : f32 to vector<2x128xf32>
    %728 = arith.select %726, %723, %727 : vector<2x128xi1>, vector<2x128xf32>
    %729 = arith.addf %689, %728 : vector<2x128xf32>
    %730 = math.absf %728 : vector<2x128xf32>
    %731 = arith.addf %691, %730 : vector<2x128xf32>
    %cst_283 = arith.constant dense<0.000000e+00> : vector<2x128xf32>
    %732 = tpu.matmul %728, %519, %cst_283 {dimension_numbers = #tpu.dot_dimension_numbers<[1], [0], [0], [1], [0, 0, 1, 1], [], []>} : vector<2x128xf32>, vector<128x128xf32>, vector<2x128xf32> -> vector<2x128xf32>
    %733 = arith.addf %693, %732 : vector<2x128xf32>
    %734 = vector.extract_strided_slice %678 {offsets = [2, 0], sizes = [2, 128], strides = [1, 1]} : vector<16x128xf32> to vector<2x128xf32>
    %735 = arith.addf %734, %733 : vector<2x128xf32>
    %736 = arith.negf %735 : vector<2x128xf32>
    %737 = math.exp %736 : vector<2x128xf32>
    %cst_284 = arith.constant 1.000000e+00 : f32
    %738 = vector.broadcast %cst_284 : f32 to vector<2x128xf32>
    %739 = arith.addf %738, %737 : vector<2x128xf32>
    %740 = arith.divf %738, %739 : vector<2x128xf32>
    %c64_i32_285 = arith.constant 64 : i32
    %741 = tpu.dynamic_rotate %740 by %c64_i32_285 dim 1 : vector<2x128xf32>, i32 -> vector<2x128xf32>
    %742 = arith.mulf %741, %733 : vector<2x128xf32>
    %743 = arith.addf %734, %742 : vector<2x128xf32>
    %744 = math.tanh %743 : vector<2x128xf32>
    %c96_i32_286 = arith.constant 96 : i32
    %745 = tpu.dynamic_rotate %740 by %c96_i32_286 dim 1 : vector<2x128xf32>, i32 -> vector<2x128xf32>
    %c64_i32_287 = arith.constant 64 : i32
    %746 = tpu.dynamic_rotate %744 by %c64_i32_287 dim 1 : vector<2x128xf32>, i32 -> vector<2x128xf32>
    %cst_288 = arith.constant 1.000000e+00 : f32
    %747 = vector.broadcast %cst_288 : f32 to vector<2x128xf32>
    %748 = arith.subf %747, %745 : vector<2x128xf32>
    %749 = arith.mulf %748, %746 : vector<2x128xf32>
    %750 = arith.mulf %745, %721 : vector<2x128xf32>
    %751 = arith.addf %749, %750 : vector<2x128xf32>
    %cst_289 = arith.constant 2.560000e+02 : f32
    %752 = vector.broadcast %cst_289 : f32 to vector<2x128xf32>
    %753 = arith.mulf %751, %752 : vector<2x128xf32>
    %754 = math.roundeven %753 : vector<2x128xf32>
    %cst_290 = arith.constant -3.276800e+04 : f32
    %cst_291 = arith.constant 3.276700e+04 : f32
    %755 = vector.broadcast %cst_290 : f32 to vector<2x128xf32>
    %756 = arith.maximumf %755, %754 : vector<2x128xf32>
    %757 = vector.broadcast %cst_291 : f32 to vector<2x128xf32>
    %758 = arith.minimumf %757, %756 : vector<2x128xf32>
    %cst_292 = arith.constant 3.906250e-03 : f32
    %759 = vector.broadcast %cst_292 : f32 to vector<2x128xf32>
    %760 = arith.mulf %758, %759 : vector<2x128xf32>
    %761 = arith.mulf %760, %12 : vector<2x128xf32>
    %c2_293 = arith.constant 2 : index
    %c0_294 = arith.constant 0 : index
    %762 = vector.load %arg18[%c2_293, %c0_294] : memref<16x128xf32, #tpu.memory_space<vmem>>, vector<2x128xf32>
    tpu.vector_store %arg18[%c2_293, %c0_294], %761 {strides = array<i32>} : memref<16x128xf32, #tpu.memory_space<vmem>>, vector<2x128xf32>,
    %763 = arith.subf %761, %729 : vector<2x128xf32>
    %764 = math.absf %763 : vector<2x128xf32>
    %cst_295 = arith.constant 1.000000e-01 : f32
    %765 = vector.broadcast %cst_295 : f32 to vector<2x128xf32>
    %766 = arith.cmpf oge, %764, %765 : vector<2x128xf32>
    %cst_296 = arith.constant 0.000000e+00 : f32
    %767 = vector.broadcast %cst_296 : f32 to vector<2x128xf32>
    %768 = arith.select %766, %763, %767 : vector<2x128xi1>, vector<2x128xf32>
    %769 = arith.addf %729, %768 : vector<2x128xf32>
    %770 = math.absf %768 : vector<2x128xf32>
    %771 = arith.addf %731, %770 : vector<2x128xf32>
    %cst_297 = arith.constant dense<0.000000e+00> : vector<2x128xf32>
    %772 = tpu.matmul %768, %519, %cst_297 {dimension_numbers = #tpu.dot_dimension_numbers<[1], [0], [0], [1], [0, 0, 1, 1], [], []>} : vector<2x128xf32>, vector<128x128xf32>, vector<2x128xf32> -> vector<2x128xf32>
    %773 = arith.addf %733, %772 : vector<2x128xf32>
    %774 = vector.extract_strided_slice %678 {offsets = [4, 0], sizes = [2, 128], strides = [1, 1]} : vector<16x128xf32> to vector<2x128xf32>
    %775 = arith.addf %774, %773 : vector<2x128xf32>
    %776 = arith.negf %775 : vector<2x128xf32>
    %777 = math.exp %776 : vector<2x128xf32>
    %cst_298 = arith.constant 1.000000e+00 : f32
    %778 = vector.broadcast %cst_298 : f32 to vector<2x128xf32>
    %779 = arith.addf %778, %777 : vector<2x128xf32>
    %780 = arith.divf %778, %779 : vector<2x128xf32>
    %c64_i32_299 = arith.constant 64 : i32
    %781 = tpu.dynamic_rotate %780 by %c64_i32_299 dim 1 : vector<2x128xf32>, i32 -> vector<2x128xf32>
    %782 = arith.mulf %781, %773 : vector<2x128xf32>
    %783 = arith.addf %774, %782 : vector<2x128xf32>
    %784 = math.tanh %783 : vector<2x128xf32>
    %c96_i32_300 = arith.constant 96 : i32
    %785 = tpu.dynamic_rotate %780 by %c96_i32_300 dim 1 : vector<2x128xf32>, i32 -> vector<2x128xf32>
    %c64_i32_301 = arith.constant 64 : i32
    %786 = tpu.dynamic_rotate %784 by %c64_i32_301 dim 1 : vector<2x128xf32>, i32 -> vector<2x128xf32>
    %cst_302 = arith.constant 1.000000e+00 : f32
    %787 = vector.broadcast %cst_302 : f32 to vector<2x128xf32>
    %788 = arith.subf %787, %785 : vector<2x128xf32>
    %789 = arith.mulf %788, %786 : vector<2x128xf32>
    %790 = arith.mulf %785, %761 : vector<2x128xf32>
    %791 = arith.addf %789, %790 : vector<2x128xf32>
    %cst_303 = arith.constant 2.560000e+02 : f32
    %792 = vector.broadcast %cst_303 : f32 to vector<2x128xf32>
    %793 = arith.mulf %791, %792 : vector<2x128xf32>
    %794 = math.roundeven %793 : vector<2x128xf32>
    %cst_304 = arith.constant -3.276800e+04 : f32
    %cst_305 = arith.constant 3.276700e+04 : f32
    %795 = vector.broadcast %cst_304 : f32 to vector<2x128xf32>
    %796 = arith.maximumf %795, %794 : vector<2x128xf32>
    %797 = vector.broadcast %cst_305 : f32 to vector<2x128xf32>
    %798 = arith.minimumf %797, %796 : vector<2x128xf32>
    %cst_306 = arith.constant 3.906250e-03 : f32
    %799 = vector.broadcast %cst_306 : f32 to vector<2x128xf32>
    %800 = arith.mulf %798, %799 : vector<2x128xf32>
    %801 = arith.mulf %800, %12 : vector<2x128xf32>
    %c4_307 = arith.constant 4 : index
    %c0_308 = arith.constant 0 : index
    %802 = vector.load %arg18[%c4_307, %c0_308] : memref<16x128xf32, #tpu.memory_space<vmem>>, vector<2x128xf32>
    tpu.vector_store %arg18[%c4_307, %c0_308], %801 {strides = array<i32>} : memref<16x128xf32, #tpu.memory_space<vmem>>, vector<2x128xf32>,
    %803 = arith.subf %801, %769 : vector<2x128xf32>
    %804 = math.absf %803 : vector<2x128xf32>
    %cst_309 = arith.constant 1.000000e-01 : f32
    %805 = vector.broadcast %cst_309 : f32 to vector<2x128xf32>
    %806 = arith.cmpf oge, %804, %805 : vector<2x128xf32>
    %cst_310 = arith.constant 0.000000e+00 : f32
    %807 = vector.broadcast %cst_310 : f32 to vector<2x128xf32>
    %808 = arith.select %806, %803, %807 : vector<2x128xi1>, vector<2x128xf32>
    %809 = arith.addf %769, %808 : vector<2x128xf32>
    %810 = math.absf %808 : vector<2x128xf32>
    %811 = arith.addf %771, %810 : vector<2x128xf32>
    %cst_311 = arith.constant dense<0.000000e+00> : vector<2x128xf32>
    %812 = tpu.matmul %808, %519, %cst_311 {dimension_numbers = #tpu.dot_dimension_numbers<[1], [0], [0], [1], [0, 0, 1, 1], [], []>} : vector<2x128xf32>, vector<128x128xf32>, vector<2x128xf32> -> vector<2x128xf32>
    %813 = arith.addf %773, %812 : vector<2x128xf32>
    %814 = vector.extract_strided_slice %678 {offsets = [6, 0], sizes = [2, 128], strides = [1, 1]} : vector<16x128xf32> to vector<2x128xf32>
    %815 = arith.addf %814, %813 : vector<2x128xf32>
    %816 = arith.negf %815 : vector<2x128xf32>
    %817 = math.exp %816 : vector<2x128xf32>
    %cst_312 = arith.constant 1.000000e+00 : f32
    %818 = vector.broadcast %cst_312 : f32 to vector<2x128xf32>
    %819 = arith.addf %818, %817 : vector<2x128xf32>
    %820 = arith.divf %818, %819 : vector<2x128xf32>
    %c64_i32_313 = arith.constant 64 : i32
    %821 = tpu.dynamic_rotate %820 by %c64_i32_313 dim 1 : vector<2x128xf32>, i32 -> vector<2x128xf32>
    %822 = arith.mulf %821, %813 : vector<2x128xf32>
    %823 = arith.addf %814, %822 : vector<2x128xf32>
    %824 = math.tanh %823 : vector<2x128xf32>
    %c96_i32_314 = arith.constant 96 : i32
    %825 = tpu.dynamic_rotate %820 by %c96_i32_314 dim 1 : vector<2x128xf32>, i32 -> vector<2x128xf32>
    %c64_i32_315 = arith.constant 64 : i32
    %826 = tpu.dynamic_rotate %824 by %c64_i32_315 dim 1 : vector<2x128xf32>, i32 -> vector<2x128xf32>
    %cst_316 = arith.constant 1.000000e+00 : f32
    %827 = vector.broadcast %cst_316 : f32 to vector<2x128xf32>
    %828 = arith.subf %827, %825 : vector<2x128xf32>
    %829 = arith.mulf %828, %826 : vector<2x128xf32>
    %830 = arith.mulf %825, %801 : vector<2x128xf32>
    %831 = arith.addf %829, %830 : vector<2x128xf32>
    %cst_317 = arith.constant 2.560000e+02 : f32
    %832 = vector.broadcast %cst_317 : f32 to vector<2x128xf32>
    %833 = arith.mulf %831, %832 : vector<2x128xf32>
    %834 = math.roundeven %833 : vector<2x128xf32>
    %cst_318 = arith.constant -3.276800e+04 : f32
    %cst_319 = arith.constant 3.276700e+04 : f32
    %835 = vector.broadcast %cst_318 : f32 to vector<2x128xf32>
    %836 = arith.maximumf %835, %834 : vector<2x128xf32>
    %837 = vector.broadcast %cst_319 : f32 to vector<2x128xf32>
    %838 = arith.minimumf %837, %836 : vector<2x128xf32>
    %cst_320 = arith.constant 3.906250e-03 : f32
    %839 = vector.broadcast %cst_320 : f32 to vector<2x128xf32>
    %840 = arith.mulf %838, %839 : vector<2x128xf32>
    %841 = arith.mulf %840, %12 : vector<2x128xf32>
    %c6_321 = arith.constant 6 : index
    %c0_322 = arith.constant 0 : index
    %842 = vector.load %arg18[%c6_321, %c0_322] : memref<16x128xf32, #tpu.memory_space<vmem>>, vector<2x128xf32>
    tpu.vector_store %arg18[%c6_321, %c0_322], %841 {strides = array<i32>} : memref<16x128xf32, #tpu.memory_space<vmem>>, vector<2x128xf32>,
    %843 = arith.subf %841, %809 : vector<2x128xf32>
    %844 = math.absf %843 : vector<2x128xf32>
    %cst_323 = arith.constant 1.000000e-01 : f32
    %845 = vector.broadcast %cst_323 : f32 to vector<2x128xf32>
    %846 = arith.cmpf oge, %844, %845 : vector<2x128xf32>
    %cst_324 = arith.constant 0.000000e+00 : f32
    %847 = vector.broadcast %cst_324 : f32 to vector<2x128xf32>
    %848 = arith.select %846, %843, %847 : vector<2x128xi1>, vector<2x128xf32>
    %849 = arith.addf %809, %848 : vector<2x128xf32>
    %850 = math.absf %848 : vector<2x128xf32>
    %851 = arith.addf %811, %850 : vector<2x128xf32>
    %cst_325 = arith.constant dense<0.000000e+00> : vector<2x128xf32>
    %852 = tpu.matmul %848, %519, %cst_325 {dimension_numbers = #tpu.dot_dimension_numbers<[1], [0], [0], [1], [0, 0, 1, 1], [], []>} : vector<2x128xf32>, vector<128x128xf32>, vector<2x128xf32> -> vector<2x128xf32>
    %853 = arith.addf %813, %852 : vector<2x128xf32>
    %854 = vector.extract_strided_slice %678 {offsets = [8, 0], sizes = [2, 128], strides = [1, 1]} : vector<16x128xf32> to vector<2x128xf32>
    %855 = arith.addf %854, %853 : vector<2x128xf32>
    %856 = arith.negf %855 : vector<2x128xf32>
    %857 = math.exp %856 : vector<2x128xf32>
    %cst_326 = arith.constant 1.000000e+00 : f32
    %858 = vector.broadcast %cst_326 : f32 to vector<2x128xf32>
    %859 = arith.addf %858, %857 : vector<2x128xf32>
    %860 = arith.divf %858, %859 : vector<2x128xf32>
    %c64_i32_327 = arith.constant 64 : i32
    %861 = tpu.dynamic_rotate %860 by %c64_i32_327 dim 1 : vector<2x128xf32>, i32 -> vector<2x128xf32>
    %862 = arith.mulf %861, %853 : vector<2x128xf32>
    %863 = arith.addf %854, %862 : vector<2x128xf32>
    %864 = math.tanh %863 : vector<2x128xf32>
    %c96_i32_328 = arith.constant 96 : i32
    %865 = tpu.dynamic_rotate %860 by %c96_i32_328 dim 1 : vector<2x128xf32>, i32 -> vector<2x128xf32>
    %c64_i32_329 = arith.constant 64 : i32
    %866 = tpu.dynamic_rotate %864 by %c64_i32_329 dim 1 : vector<2x128xf32>, i32 -> vector<2x128xf32>
    %cst_330 = arith.constant 1.000000e+00 : f32
    %867 = vector.broadcast %cst_330 : f32 to vector<2x128xf32>
    %868 = arith.subf %867, %865 : vector<2x128xf32>
    %869 = arith.mulf %868, %866 : vector<2x128xf32>
    %870 = arith.mulf %865, %841 : vector<2x128xf32>
    %871 = arith.addf %869, %870 : vector<2x128xf32>
    %cst_331 = arith.constant 2.560000e+02 : f32
    %872 = vector.broadcast %cst_331 : f32 to vector<2x128xf32>
    %873 = arith.mulf %871, %872 : vector<2x128xf32>
    %874 = math.roundeven %873 : vector<2x128xf32>
    %cst_332 = arith.constant -3.276800e+04 : f32
    %cst_333 = arith.constant 3.276700e+04 : f32
    %875 = vector.broadcast %cst_332 : f32 to vector<2x128xf32>
    %876 = arith.maximumf %875, %874 : vector<2x128xf32>
    %877 = vector.broadcast %cst_333 : f32 to vector<2x128xf32>
    %878 = arith.minimumf %877, %876 : vector<2x128xf32>
    %cst_334 = arith.constant 3.906250e-03 : f32
    %879 = vector.broadcast %cst_334 : f32 to vector<2x128xf32>
    %880 = arith.mulf %878, %879 : vector<2x128xf32>
    %881 = arith.mulf %880, %12 : vector<2x128xf32>
    %c8_335 = arith.constant 8 : index
    %c0_336 = arith.constant 0 : index
    %882 = vector.load %arg18[%c8_335, %c0_336] : memref<16x128xf32, #tpu.memory_space<vmem>>, vector<2x128xf32>
    tpu.vector_store %arg18[%c8_335, %c0_336], %881 {strides = array<i32>} : memref<16x128xf32, #tpu.memory_space<vmem>>, vector<2x128xf32>,
    %883 = arith.subf %881, %849 : vector<2x128xf32>
    %884 = math.absf %883 : vector<2x128xf32>
    %cst_337 = arith.constant 1.000000e-01 : f32
    %885 = vector.broadcast %cst_337 : f32 to vector<2x128xf32>
    %886 = arith.cmpf oge, %884, %885 : vector<2x128xf32>
    %cst_338 = arith.constant 0.000000e+00 : f32
    %887 = vector.broadcast %cst_338 : f32 to vector<2x128xf32>
    %888 = arith.select %886, %883, %887 : vector<2x128xi1>, vector<2x128xf32>
    %889 = arith.addf %849, %888 : vector<2x128xf32>
    %890 = math.absf %888 : vector<2x128xf32>
    %891 = arith.addf %851, %890 : vector<2x128xf32>
    %cst_339 = arith.constant dense<0.000000e+00> : vector<2x128xf32>
    %892 = tpu.matmul %888, %519, %cst_339 {dimension_numbers = #tpu.dot_dimension_numbers<[1], [0], [0], [1], [0, 0, 1, 1], [], []>} : vector<2x128xf32>, vector<128x128xf32>, vector<2x128xf32> -> vector<2x128xf32>
    %893 = arith.addf %853, %892 : vector<2x128xf32>
    %894 = vector.extract_strided_slice %678 {offsets = [10, 0], sizes = [2, 128], strides = [1, 1]} : vector<16x128xf32> to vector<2x128xf32>
    %895 = arith.addf %894, %893 : vector<2x128xf32>
    %896 = arith.negf %895 : vector<2x128xf32>
    %897 = math.exp %896 : vector<2x128xf32>
    %cst_340 = arith.constant 1.000000e+00 : f32
    %898 = vector.broadcast %cst_340 : f32 to vector<2x128xf32>
    %899 = arith.addf %898, %897 : vector<2x128xf32>
    %900 = arith.divf %898, %899 : vector<2x128xf32>
    %c64_i32_341 = arith.constant 64 : i32
    %901 = tpu.dynamic_rotate %900 by %c64_i32_341 dim 1 : vector<2x128xf32>, i32 -> vector<2x128xf32>
    %902 = arith.mulf %901, %893 : vector<2x128xf32>
    %903 = arith.addf %894, %902 : vector<2x128xf32>
    %904 = math.tanh %903 : vector<2x128xf32>
    %c96_i32_342 = arith.constant 96 : i32
    %905 = tpu.dynamic_rotate %900 by %c96_i32_342 dim 1 : vector<2x128xf32>, i32 -> vector<2x128xf32>
    %c64_i32_343 = arith.constant 64 : i32
    %906 = tpu.dynamic_rotate %904 by %c64_i32_343 dim 1 : vector<2x128xf32>, i32 -> vector<2x128xf32>
    %cst_344 = arith.constant 1.000000e+00 : f32
    %907 = vector.broadcast %cst_344 : f32 to vector<2x128xf32>
    %908 = arith.subf %907, %905 : vector<2x128xf32>
    %909 = arith.mulf %908, %906 : vector<2x128xf32>
    %910 = arith.mulf %905, %881 : vector<2x128xf32>
    %911 = arith.addf %909, %910 : vector<2x128xf32>
    %cst_345 = arith.constant 2.560000e+02 : f32
    %912 = vector.broadcast %cst_345 : f32 to vector<2x128xf32>
    %913 = arith.mulf %911, %912 : vector<2x128xf32>
    %914 = math.roundeven %913 : vector<2x128xf32>
    %cst_346 = arith.constant -3.276800e+04 : f32
    %cst_347 = arith.constant 3.276700e+04 : f32
    %915 = vector.broadcast %cst_346 : f32 to vector<2x128xf32>
    %916 = arith.maximumf %915, %914 : vector<2x128xf32>
    %917 = vector.broadcast %cst_347 : f32 to vector<2x128xf32>
    %918 = arith.minimumf %917, %916 : vector<2x128xf32>
    %cst_348 = arith.constant 3.906250e-03 : f32
    %919 = vector.broadcast %cst_348 : f32 to vector<2x128xf32>
    %920 = arith.mulf %918, %919 : vector<2x128xf32>
    %921 = arith.mulf %920, %12 : vector<2x128xf32>
    %c10_349 = arith.constant 10 : index
    %c0_350 = arith.constant 0 : index
    %922 = vector.load %arg18[%c10_349, %c0_350] : memref<16x128xf32, #tpu.memory_space<vmem>>, vector<2x128xf32>
    tpu.vector_store %arg18[%c10_349, %c0_350], %921 {strides = array<i32>} : memref<16x128xf32, #tpu.memory_space<vmem>>, vector<2x128xf32>,
    %923 = arith.subf %921, %889 : vector<2x128xf32>
    %924 = math.absf %923 : vector<2x128xf32>
    %cst_351 = arith.constant 1.000000e-01 : f32
    %925 = vector.broadcast %cst_351 : f32 to vector<2x128xf32>
    %926 = arith.cmpf oge, %924, %925 : vector<2x128xf32>
    %cst_352 = arith.constant 0.000000e+00 : f32
    %927 = vector.broadcast %cst_352 : f32 to vector<2x128xf32>
    %928 = arith.select %926, %923, %927 : vector<2x128xi1>, vector<2x128xf32>
    %929 = arith.addf %889, %928 : vector<2x128xf32>
    %930 = math.absf %928 : vector<2x128xf32>
    %931 = arith.addf %891, %930 : vector<2x128xf32>
    %cst_353 = arith.constant dense<0.000000e+00> : vector<2x128xf32>
    %932 = tpu.matmul %928, %519, %cst_353 {dimension_numbers = #tpu.dot_dimension_numbers<[1], [0], [0], [1], [0, 0, 1, 1], [], []>} : vector<2x128xf32>, vector<128x128xf32>, vector<2x128xf32> -> vector<2x128xf32>
    %933 = arith.addf %893, %932 : vector<2x128xf32>
    %934 = vector.extract_strided_slice %678 {offsets = [12, 0], sizes = [2, 128], strides = [1, 1]} : vector<16x128xf32> to vector<2x128xf32>
    %935 = arith.addf %934, %933 : vector<2x128xf32>
    %936 = arith.negf %935 : vector<2x128xf32>
    %937 = math.exp %936 : vector<2x128xf32>
    %cst_354 = arith.constant 1.000000e+00 : f32
    %938 = vector.broadcast %cst_354 : f32 to vector<2x128xf32>
    %939 = arith.addf %938, %937 : vector<2x128xf32>
    %940 = arith.divf %938, %939 : vector<2x128xf32>
    %c64_i32_355 = arith.constant 64 : i32
    %941 = tpu.dynamic_rotate %940 by %c64_i32_355 dim 1 : vector<2x128xf32>, i32 -> vector<2x128xf32>
    %942 = arith.mulf %941, %933 : vector<2x128xf32>
    %943 = arith.addf %934, %942 : vector<2x128xf32>
    %944 = math.tanh %943 : vector<2x128xf32>
    %c96_i32_356 = arith.constant 96 : i32
    %945 = tpu.dynamic_rotate %940 by %c96_i32_356 dim 1 : vector<2x128xf32>, i32 -> vector<2x128xf32>
    %c64_i32_357 = arith.constant 64 : i32
    %946 = tpu.dynamic_rotate %944 by %c64_i32_357 dim 1 : vector<2x128xf32>, i32 -> vector<2x128xf32>
    %cst_358 = arith.constant 1.000000e+00 : f32
    %947 = vector.broadcast %cst_358 : f32 to vector<2x128xf32>
    %948 = arith.subf %947, %945 : vector<2x128xf32>
    %949 = arith.mulf %948, %946 : vector<2x128xf32>
    %950 = arith.mulf %945, %921 : vector<2x128xf32>
    %951 = arith.addf %949, %950 : vector<2x128xf32>
    %cst_359 = arith.constant 2.560000e+02 : f32
    %952 = vector.broadcast %cst_359 : f32 to vector<2x128xf32>
    %953 = arith.mulf %951, %952 : vector<2x128xf32>
    %954 = math.roundeven %953 : vector<2x128xf32>
    %cst_360 = arith.constant -3.276800e+04 : f32
    %cst_361 = arith.constant 3.276700e+04 : f32
    %955 = vector.broadcast %cst_360 : f32 to vector<2x128xf32>
    %956 = arith.maximumf %955, %954 : vector<2x128xf32>
    %957 = vector.broadcast %cst_361 : f32 to vector<2x128xf32>
    %958 = arith.minimumf %957, %956 : vector<2x128xf32>
    %cst_362 = arith.constant 3.906250e-03 : f32
    %959 = vector.broadcast %cst_362 : f32 to vector<2x128xf32>
    %960 = arith.mulf %958, %959 : vector<2x128xf32>
    %961 = arith.mulf %960, %12 : vector<2x128xf32>
    %c12_363 = arith.constant 12 : index
    %c0_364 = arith.constant 0 : index
    %962 = vector.load %arg18[%c12_363, %c0_364] : memref<16x128xf32, #tpu.memory_space<vmem>>, vector<2x128xf32>
    tpu.vector_store %arg18[%c12_363, %c0_364], %961 {strides = array<i32>} : memref<16x128xf32, #tpu.memory_space<vmem>>, vector<2x128xf32>,
    %963 = arith.subf %961, %929 : vector<2x128xf32>
    %964 = math.absf %963 : vector<2x128xf32>
    %cst_365 = arith.constant 1.000000e-01 : f32
    %965 = vector.broadcast %cst_365 : f32 to vector<2x128xf32>
    %966 = arith.cmpf oge, %964, %965 : vector<2x128xf32>
    %cst_366 = arith.constant 0.000000e+00 : f32
    %967 = vector.broadcast %cst_366 : f32 to vector<2x128xf32>
    %968 = arith.select %966, %963, %967 : vector<2x128xi1>, vector<2x128xf32>
    %969 = math.absf %968 : vector<2x128xf32>
    %970 = arith.addf %931, %969 : vector<2x128xf32>
    %cst_367 = arith.constant dense<0.000000e+00> : vector<2x128xf32>
    %971 = tpu.matmul %968, %519, %cst_367 {dimension_numbers = #tpu.dot_dimension_numbers<[1], [0], [0], [1], [0, 0, 1, 1], [], []>} : vector<2x128xf32>, vector<128x128xf32>, vector<2x128xf32> -> vector<2x128xf32>
    %972 = arith.addf %933, %971 : vector<2x128xf32>
    %973 = vector.extract_strided_slice %678 {offsets = [14, 0], sizes = [2, 128], strides = [1, 1]} : vector<16x128xf32> to vector<2x128xf32>
    %974 = arith.addf %973, %972 : vector<2x128xf32>
    %975 = arith.negf %974 : vector<2x128xf32>
    %976 = math.exp %975 : vector<2x128xf32>
    %cst_368 = arith.constant 1.000000e+00 : f32
    %977 = vector.broadcast %cst_368 : f32 to vector<2x128xf32>
    %978 = arith.addf %977, %976 : vector<2x128xf32>
    %979 = arith.divf %977, %978 : vector<2x128xf32>
    %c64_i32_369 = arith.constant 64 : i32
    %980 = tpu.dynamic_rotate %979 by %c64_i32_369 dim 1 : vector<2x128xf32>, i32 -> vector<2x128xf32>
    %981 = arith.mulf %980, %972 : vector<2x128xf32>
    %982 = arith.addf %973, %981 : vector<2x128xf32>
    %983 = math.tanh %982 : vector<2x128xf32>
    %c96_i32_370 = arith.constant 96 : i32
    %984 = tpu.dynamic_rotate %979 by %c96_i32_370 dim 1 : vector<2x128xf32>, i32 -> vector<2x128xf32>
    %c64_i32_371 = arith.constant 64 : i32
    %985 = tpu.dynamic_rotate %983 by %c64_i32_371 dim 1 : vector<2x128xf32>, i32 -> vector<2x128xf32>
    %cst_372 = arith.constant 1.000000e+00 : f32
    %986 = vector.broadcast %cst_372 : f32 to vector<2x128xf32>
    %987 = arith.subf %986, %984 : vector<2x128xf32>
    %988 = arith.mulf %987, %985 : vector<2x128xf32>
    %989 = arith.mulf %984, %961 : vector<2x128xf32>
    %990 = arith.addf %988, %989 : vector<2x128xf32>
    %cst_373 = arith.constant 2.560000e+02 : f32
    %991 = vector.broadcast %cst_373 : f32 to vector<2x128xf32>
    %992 = arith.mulf %990, %991 : vector<2x128xf32>
    %993 = math.roundeven %992 : vector<2x128xf32>
    %cst_374 = arith.constant -3.276800e+04 : f32
    %cst_375 = arith.constant 3.276700e+04 : f32
    %994 = vector.broadcast %cst_374 : f32 to vector<2x128xf32>
    %995 = arith.maximumf %994, %993 : vector<2x128xf32>
    %996 = vector.broadcast %cst_375 : f32 to vector<2x128xf32>
    %997 = arith.minimumf %996, %995 : vector<2x128xf32>
    %cst_376 = arith.constant 3.906250e-03 : f32
    %998 = vector.broadcast %cst_376 : f32 to vector<2x128xf32>
    %999 = arith.mulf %997, %998 : vector<2x128xf32>
    %1000 = arith.mulf %999, %12 : vector<2x128xf32>
    %c14_377 = arith.constant 14 : index
    %c0_378 = arith.constant 0 : index
    %1001 = vector.load %arg18[%c14_377, %c0_378] : memref<16x128xf32, #tpu.memory_space<vmem>>, vector<2x128xf32>
    tpu.vector_store %arg18[%c14_377, %c0_378], %1000 {strides = array<i32>} : memref<16x128xf32, #tpu.memory_space<vmem>>, vector<2x128xf32>,
    %1002 = vector.shape_cast %673 : vector<2x128xf32> to vector<1x2x128xf32>
    %cst_379 = arith.constant dense<0.000000e+00> : vector<1xf32>
    %1003 = vector.multi_reduction <add>, %1002, %cst_379 [1, 2] : vector<1x2x128xf32> to vector<1xf32>
    %1004 = vector.shape_cast %1003 : vector<1xf32> to vector<1x1x1xf32>
    %1005 = vector.extract %1004[0, 0, 0] : f32 from vector<1x1x1xf32>
    %1006 = vector.shape_cast %970 : vector<2x128xf32> to vector<1x2x128xf32>
    %cst_380 = arith.constant dense<0.000000e+00> : vector<1xf32>
    %1007 = vector.multi_reduction <add>, %1006, %cst_380 [1, 2] : vector<1x2x128xf32> to vector<1xf32>
    %1008 = vector.shape_cast %1007 : vector<1xf32> to vector<1x1x1xf32>
    %1009 = vector.extract %1008[0, 0, 0] : f32 from vector<1x1x1xf32>
    %1010 = arith.addf %1005, %1009 : f32
    %c2_i32_381 = arith.constant 2 : i32
    %1011 = tpu.memref_slice %arg19[%c2_i32_381] : memref<4x!tpu.dma_semaphore, #tpu.memory_space<semaphore_mem>> -> memref<1x!tpu.dma_semaphore, #tpu.memory_space<semaphore_mem>>
    %1012 = tpu.memref_squeeze %1011 : memref<1x!tpu.dma_semaphore, #tpu.memory_space<semaphore_mem>> -> memref<!tpu.dma_semaphore, #tpu.memory_space<semaphore_mem>>
    tpu.wait_dma2 semaphore(%1012 : memref<!tpu.dma_semaphore, #tpu.memory_space<semaphore_mem>>) src(%arg10 : memref<128x128xf32, #tpu.memory_space<any>>) dst(%arg16 : memref<128x128xf32, #tpu.memory_space<vmem>>)
    %c3_i32_382 = arith.constant 3 : i32
    %1013 = tpu.memref_slice %arg19[%c3_i32_382] : memref<4x!tpu.dma_semaphore, #tpu.memory_space<semaphore_mem>> -> memref<1x!tpu.dma_semaphore, #tpu.memory_space<semaphore_mem>>
    %1014 = tpu.memref_squeeze %1013 : memref<1x!tpu.dma_semaphore, #tpu.memory_space<semaphore_mem>> -> memref<!tpu.dma_semaphore, #tpu.memory_space<semaphore_mem>>
    tpu.wait_dma2 semaphore(%1014 : memref<!tpu.dma_semaphore, #tpu.memory_space<semaphore_mem>>) src(%arg11 : memref<128x128xf32, #tpu.memory_space<any>>) dst(%arg17 : memref<128x128xf32, #tpu.memory_space<vmem>>)
    %c0_383 = arith.constant 0 : index
    %c0_384 = arith.constant 0 : index
    %1015 = vector.load %arg18[%c0_383, %c0_384] : memref<16x128xf32, #tpu.memory_space<vmem>>, vector<16x128xf32>
    %c0_385 = arith.constant 0 : index
    %c0_386 = arith.constant 0 : index
    %1016 = vector.load %arg16[%c0_385, %c0_386] : memref<128x128xf32, #tpu.memory_space<vmem>>, vector<128x128xf32>
    %cst_387 = arith.constant dense<0.000000e+00> : vector<16x128xf32>
    %1017 = tpu.matmul %1015, %1016, %cst_387 {dimension_numbers = #tpu.dot_dimension_numbers<[1], [0], [0], [1], [0, 0, 1, 1], [], []>} : vector<16x128xf32>, vector<128x128xf32>, vector<16x128xf32> -> vector<16x128xf32>
    %c0_388 = arith.constant 0 : index
    %c0_389 = arith.constant 0 : index
    %1018 = vector.load %arg6[%c0_388, %c0_389] : memref<1x128xf32, #tpu.memory_space<vmem>>, vector<1x128xf32>
    %1019 = vector.broadcast %1018 : vector<1x128xf32> to vector<16x128xf32>
    %1020 = arith.addf %1017, %1019 : vector<16x128xf32>
    %cst_390 = arith.constant 0.000000e+00 : f32
    %1021 = vector.broadcast %cst_390 : f32 to vector<16x128xf32>
    %1022 = arith.maximumf %1020, %1021 : vector<16x128xf32>
    %cst_391 = arith.constant 2.560000e+02 : f32
    %1023 = vector.broadcast %cst_391 : f32 to vector<16x128xf32>
    %1024 = arith.mulf %1022, %1023 : vector<16x128xf32>
    %1025 = math.roundeven %1024 : vector<16x128xf32>
    %cst_392 = arith.constant -3.276800e+04 : f32
    %cst_393 = arith.constant 3.276700e+04 : f32
    %1026 = vector.broadcast %cst_392 : f32 to vector<16x128xf32>
    %1027 = arith.maximumf %1026, %1025 : vector<16x128xf32>
    %1028 = vector.broadcast %cst_393 : f32 to vector<16x128xf32>
    %1029 = arith.minimumf %1028, %1027 : vector<16x128xf32>
    %cst_394 = arith.constant 3.906250e-03 : f32
    %1030 = vector.broadcast %cst_394 : f32 to vector<16x128xf32>
    %1031 = arith.mulf %1029, %1030 : vector<16x128xf32>
    %c0_395 = arith.constant 0 : index
    %c0_396 = arith.constant 0 : index
    %1032 = vector.load %arg17[%c0_395, %c0_396] : memref<128x128xf32, #tpu.memory_space<vmem>>, vector<128x128xf32>
    %cst_397 = arith.constant dense<0.000000e+00> : vector<16x128xf32>
    %1033 = tpu.matmul %1031, %1032, %cst_397 {dimension_numbers = #tpu.dot_dimension_numbers<[1], [0], [0], [1], [0, 0, 1, 1], [], []>} : vector<16x128xf32>, vector<128x128xf32>, vector<16x128xf32> -> vector<16x128xf32>
    %c0_398 = arith.constant 0 : index
    %c0_399 = arith.constant 0 : index
    %1034 = vector.load %arg7[%c0_398, %c0_399] : memref<1x128xf32, #tpu.memory_space<vmem>>, vector<1x128xf32>
    %1035 = vector.broadcast %1034 : vector<1x128xf32> to vector<16x128xf32>
    %1036 = arith.addf %1033, %1035 : vector<16x128xf32>
    %cst_400 = arith.constant 2.560000e+02 : f32
    %1037 = vector.broadcast %cst_400 : f32 to vector<16x128xf32>
    %1038 = arith.mulf %1036, %1037 : vector<16x128xf32>
    %1039 = math.roundeven %1038 : vector<16x128xf32>
    %cst_401 = arith.constant -3.276800e+04 : f32
    %cst_402 = arith.constant 3.276700e+04 : f32
    %1040 = vector.broadcast %cst_401 : f32 to vector<16x128xf32>
    %1041 = arith.maximumf %1040, %1039 : vector<16x128xf32>
    %1042 = vector.broadcast %cst_402 : f32 to vector<16x128xf32>
    %1043 = arith.minimumf %1042, %1041 : vector<16x128xf32>
    %cst_403 = arith.constant 3.906250e-03 : f32
    %1044 = vector.broadcast %cst_403 : f32 to vector<16x128xf32>
    %1045 = arith.mulf %1043, %1044 : vector<16x128xf32>
    %c0_404 = arith.constant 0 : index
    %c0_405 = arith.constant 0 : index
    %1046 = vector.load %arg12[%c0_404, %c0_405] : memref<16x128xf32, #tpu.memory_space<vmem>>, vector<16x128xf32>
    tpu.vector_store %arg12[%c0_404, %c0_405], %1045 {strides = array<i32>} : memref<16x128xf32, #tpu.memory_space<vmem>>, vector<16x128xf32>,
    %cst_406 = arith.constant 0.000000e+00 : f32
    %1047 = vector.broadcast %cst_406 : f32 to vector<1x1xf32>
    %1048 = arith.addf %513, %1010 : f32
    %1049 = vector.broadcast %1048 : f32 to vector<1x1xf32>
    %1050 = arith.addf %1047, %1049 : vector<1x1xf32>
    %c0_407 = arith.constant 0 : index
    %c0_408 = arith.constant 0 : index
    %1051 = vector.load %arg13[%c0_407, %c0_408] : memref<1x1xf32, #tpu.memory_space<vmem>>, vector<1x1xf32>
    tpu.vector_store %arg13[%c0_407, %c0_408], %1050 {strides = array<i32>} : memref<1x1xf32, #tpu.memory_space<vmem>>, vector<1x1xf32>,
    return
  }
  func.func @transform_0(%arg0: i32) -> (i32, i32, i32) {
    %c0_i32 = arith.constant 0 : i32
    %c0_i32_0 = arith.constant 0 : i32
    %c0_i32_1 = arith.constant 0 : i32
    %c0_i32_2 = arith.constant 0 : i32
    return %c0_i32, %c0_i32_0, %c0_i32_1 : i32, i32, i32
  }
  func.func @transform_1(%arg0: i32) -> (i32, i32) {
    %c0_i32 = arith.constant 0 : i32
    %c0_i32_0 = arith.constant 0 : i32
    %c0_i32_1 = arith.constant 0 : i32
    return %c0_i32, %c0_i32_0 : i32, i32
  }
  func.func @transform_2(%arg0: i32) -> (i32, i32) {
    %c0_i32 = arith.constant 0 : i32
    %c0_i32_0 = arith.constant 0 : i32
    %c0_i32_1 = arith.constant 0 : i32
    return %c0_i32, %c0_i32_0 : i32, i32
  }
  func.func @transform_3(%arg0: i32) -> (i32, i32) {
    %c0_i32 = arith.constant 0 : i32
    %c0_i32_0 = arith.constant 0 : i32
    %c0_i32_1 = arith.constant 0 : i32
    return %c0_i32, %c0_i32_0 : i32, i32
  }
  func.func @transform_4(%arg0: i32) -> (i32, i32) {
    %c0_i32 = arith.constant 0 : i32
    %c0_i32_0 = arith.constant 0 : i32
    %c0_i32_1 = arith.constant 0 : i32
    return %c0_i32, %c0_i32_0 : i32, i32
  }
  func.func @transform_5(%arg0: i32) -> (i32, i32) {
    %c0_i32 = arith.constant 0 : i32
    %c0_i32_0 = arith.constant 0 : i32
    %c0_i32_1 = arith.constant 0 : i32
    return %c0_i32, %c0_i32_0 : i32, i32
  }
  func.func @transform_6(%arg0: i32) -> (i32, i32) {
    %c0_i32 = arith.constant 0 : i32
    %c0_i32_0 = arith.constant 0 : i32
    %c0_i32_1 = arith.constant 0 : i32
    return %c0_i32, %c0_i32_0 : i32, i32
  }
  func.func @transform_11(%arg0: i32) -> (i32, i32) {
    %c0_i32 = arith.constant 0 : i32
    %c0_i32_0 = arith.constant 0 : i32
    %c0_i32_1 = arith.constant 0 : i32
    return %c0_i32, %c0_i32_0 : i32, i32
  }
  func.func @transform_12(%arg0: i32) -> (i32, i32) {
    %c0_i32 = arith.constant 0 : i32
    %c0_i32_0 = arith.constant 0 : i32
    %c0_i32_1 = arith.constant 0 : i32
    return %c0_i32, %c0_i32_0 : i32, i32
  }
}

</mosaic_0001>

<llo_original>
// kernel: model_forward.1
$region0: #{model_forward.1}
  #allocation0 [shape = 'u32[]', space=smem, size = 0x4, offset = 0x4, fixed_abs, tag = 'smem constant byte address 0x4 - core index']
  #allocation1 [shape = 'u32[72,128]{1,0:T(1,128)}', space=vmem, size = 0x9000, scoped, tag = 'internal scratch']
  #allocation2 [shape = 'f32[128,128]{1,0:T(8,128)}', space=vmem, size = 0x10000, scoped, tag = 'scratch operand']
  #allocation3 [shape = 'f32[128,128]{1,0:T(8,128)}', space=vmem, size = 0x10000, scoped, tag = 'scratch operand']
  #allocation4 [shape = 'f32[128,128]{1,0:T(8,128)}', space=vmem, size = 0x10000, scoped, tag = 'scratch operand']
  #allocation5 [shape = 'f32[128,128]{1,0:T(8,128)}', space=vmem, size = 0x10000, scoped, tag = 'scratch operand']
  #allocation6 [shape = 'f32[16,128]{1,0:T(8,128)}', space=vmem, size = 0x2000, scoped, tag = 'scratch operand']
  #allocation7 [shape = 's32[4]{0}', space=sflag, size = 0x10, scoped, tag = 'scratch operand']
  #allocation14 [shape = 's32[]', space=sflag, size = 0x4, offset = 0, fixed_abs, tag = 'sflag constant byte address 0x0 - dummy sync flag']
  #allocation15 [shape = 's32[]', space=sflag, size = 0x4, offset = 0, fixed_abs, tag = 'sflag constant byte address 0x0 - dummy sync flag']
  #allocation16 [shape = 'u32[]', space=smem, size = 0x4, offset = 0x44, fixed_abs, tag = 'smem constant byte address 0x44 - assertion arg 0']
  #allocation17 [shape = 'u32[]', space=smem, size = 0x4, offset = 0x48, fixed_abs, tag = 'smem constant byte address 0x48 - assertion arg 1']
  #allocation18 [shape = 's32[]', space=sflag, size = 0x4, offset = 0, fixed_abs, tag = 'sflag constant byte address 0x0 - dummy sync flag']
  #allocation19 [shape = 's32[]', space=sflag, size = 0x4, offset = 0, fixed_abs, tag = 'sflag constant byte address 0x0 - dummy sync flag']
  #allocation20 [shape = 's32[]', space=sflag, size = 0x4, offset = 0, fixed_abs, tag = 'sflag constant byte address 0x0 - dummy sync flag']
  #allocation21 [shape = 's32[]', space=sflag, size = 0x4, offset = 0, fixed_abs, tag = 'sflag constant byte address 0x0 - dummy sync flag']
  #allocation22 [shape = 's32[]', space=sflag, size = 0x4, offset = 0, fixed_abs, tag = 'sflag constant byte address 0x0 - dummy sync flag']
  #allocation23 [shape = 's32[]', space=sflag, size = 0x4, offset = 0, fixed_abs, tag = 'sflag constant byte address 0x0 - dummy sync flag']
  %s0 = inlined_call_operand.vmem [shape: f32[8,2,128], index: 0, kind: input, shape index: {}]
  %s1 = inlined_call_operand.hbm [shape: f32[128,128], index: 1, kind: input, shape index: {}]
  %s2 = inlined_call_operand.hbm [shape: f32[128,128], index: 2, kind: input, shape index: {}]
  %s3 = inlined_call_operand.vmem [shape: f32[1,128], index: 3, kind: input, shape index: {}]
  %s4 = inlined_call_operand.vmem [shape: f32[1,128], index: 4, kind: input, shape index: {}]
  %s5 = inlined_call_operand.vmem [shape: f32[1,128], index: 5, kind: input, shape index: {}]
  %s6 = inlined_call_operand.vmem [shape: f32[1,128], index: 6, kind: input, shape index: {}]
  %s7 = inlined_call_operand.hbm [shape: f32[128,128], index: 7, kind: input, shape index: {}]
  %s8 = inlined_call_operand.hbm [shape: f32[128,128], index: 8, kind: input, shape index: {}]
  %s9 = inlined_call_operand.hbm [shape: f32[128,128], index: 9, kind: input, shape index: {}]
  %s10 = inlined_call_operand.hbm [shape: f32[128,128], index: 10, kind: input, shape index: {}]
  %s11 = inlined_call_operand.vmem [shape: f32[16,128], index: 11, kind: output, shape index: {0}]
  %s12 = inlined_call_operand.hbm [shape: f32[1,1], index: 12, kind: output, shape index: {1}]
  %13 = xla_tuple %s11, %s12
  %s14 = sld [smem:[#allocation0]]
  $region70: #{model_forward.1} parent=0
    _
  %s16 = ssub.s32 1, %s14
  %s17 = scalar_select 0, %s16, %s14
  $region1: #{model_forward.1} parent=0
    #allocation8 [shape = 'u8[65536]{0}', space=vmem, size = 0x10000, scoped, tag = 'input window, operand 1, single buffered']
    #allocation9 [shape = 's32[1]{0}', space=sflag, size = 0x4, scoped, tag = 'scoped memory for model_forward.1']
    #allocation10 [shape = 's32[1]{0}', space=sflag, size = 0x4, scoped, tag = 'scoped memory for model_forward.1']
    #allocation11 [shape = 'u8[65536]{0}', space=vmem, size = 0x10000, scoped, tag = 'input window, operand 2, single buffered']
    #allocation12 [shape = 's32[1]{0}', space=sflag, size = 0x4, scoped, tag = 'scoped memory for model_forward.1']
    #allocation13 [shape = 'u8[512]{0}', space=vmem, size = 0x400, scoped, tag = 'output window, operand 1, single buffered']
    %18 = vsyncpa [#allocation9], 0
    %19 = vsyncpa [#allocation12], 0
    %20 = vsyncpa [#allocation10], 0
    // Predicated region
    $region2: #{model_forward.1} parent=1 // pred_check
      _
    $region3: #{model_forward.1} parent=1 // pred_check_branch
      %22 = sbr.rel (0) target = $region5
    $region4: #{model_forward.1} parent=1 // pred_region
      _
    $region5: #{model_forward.1} parent=1 // pred_fallthru
      _
    // Predicated region
    $region6: #{model_forward.1} parent=1 // pred_check
      _
    $region7: #{model_forward.1} parent=1 // pred_check_branch
      %24 = sbr.rel (0) target = $region9
    $region8: #{model_forward.1} parent=1 // pred_region
      %26 = vsyncadd [#allocation9], 0
      %s27 = sshll.u32 %s1, 4
      %s28 = int_to_ptr.hbm [resolvable:$true] %s27
      %s29 = sshll.u32 [#allocation8], 4
      %s30 = int_to_ptr.vmem [resolvable:$true] %s29
      %35 = dma.hbm_to_vmem [thread:$0]  %s28, 2048, %s30, [#allocation9], 128, 128, 8
    $region9: #{model_forward.1} parent=1 // pred_fallthru
      _
    // Predicated region
    $region10: #{model_forward.1} parent=1 // pred_check
      _
    $region11: #{model_forward.1} parent=1 // pred_check_branch
      %37 = sbr.rel (0) target = $region13
    $region12: #{model_forward.1} parent=1 // pred_region
      %39 = vsyncadd [#allocation12], 0
      %s40 = sshll.u32 %s2, 4
      %s41 = int_to_ptr.hbm [resolvable:$true] %s40
      %s42 = sshll.u32 [#allocation11], 4
      %s43 = int_to_ptr.vmem [resolvable:$true] %s42
      %48 = dma.hbm_to_vmem [thread:$0]  %s41, 2048, %s43, [#allocation12], 128, 128, 8
    $region13: #{model_forward.1} parent=1 // pred_fallthru
      _
    // Predicated region
    $region14: #{model_forward.1} parent=1 // pred_check
      _
    $region15: #{model_forward.1} parent=1 // pred_check_branch
      %50 = sbr.rel (0) target = $region17
    $region16: #{model_forward.1} parent=1 // pred_region
      _
    $region17: #{model_forward.1} parent=1 // pred_fallthru
      _
    // Predicated region
    $region18: #{model_forward.1} parent=1 // pred_check
      _
    $region19: #{model_forward.1} parent=1 // pred_check_branch
      %52 = sbr.rel (0) target = $region21
    $region20: #{model_forward.1} parent=1 // pred_region
      _
    $region21: #{model_forward.1} parent=1 // pred_fallthru
      _
    // Predicated region
    $region22: #{model_forward.1} parent=1 // pred_check
      _
    $region23: #{model_forward.1} parent=1 // pred_check_branch
      %54 = sbr.rel (0) target = $region25
    $region24: #{model_forward.1} parent=1 // pred_region
      _
    $region25: #{model_forward.1} parent=1 // pred_fallthru
      _
    // Predicated region
    $region26: #{model_forward.1} parent=1 // pred_check
      _
    $region27: #{model_forward.1} parent=1 // pred_check_branch
      %56 = sbr.rel (0) target = $region29
    $region28: #{model_forward.1} parent=1 // pred_region
      _
    $region29: #{model_forward.1} parent=1 // pred_fallthru
      _
    // Predicated region
    $region30: #{model_forward.1} parent=1 // pred_check
      _
    $region31: #{model_forward.1} parent=1 // pred_check_branch
      %58 = sbr.rel (0) target = $region33
    $region32: #{model_forward.1} parent=1 // pred_region
      %60 = dma.done [#allocation9], 2048
    $region33: #{model_forward.1} parent=1 // pred_fallthru
      _
    // Predicated region
    $region34: #{model_forward.1} parent=1 // pred_check
      _
    $region35: #{model_forward.1} parent=1 // pred_check_branch
      %62 = sbr.rel (0) target = $region37
    $region36: #{model_forward.1} parent=1 // pred_region
      %64 = dma.done [#allocation12], 2048
    $region37: #{model_forward.1} parent=1 // pred_fallthru
      _
    // Predicated region
    $region38: #{model_forward.1} parent=1 // pred_check
      _
    $region39: #{model_forward.1} parent=1 // pred_check_branch
      %66 = sbr.rel target = $region41
    $region40: #{model_forward.1} parent=1 // pred_region
      %67 = sst [smem:[#allocation16]] [#allocation15]
      %68 = sst [smem:[#allocation17]] [#allocation14]
    $region41: #{model_forward.1} parent=1 // pred_fallthru
      _
    %70 = shalt.err (0)
    %s72 = sshll.u32 %s7, 4
    %s73 = int_to_ptr.hbm [resolvable:$true] %s72
    %s74 = sshll.u32 [#allocation2], 4
    %s75 = int_to_ptr.vmem [resolvable:$true] %s74
    %77 = dma.hbm_to_vmem [thread:$0]  %s73, 2048, %s75, [#allocation7]
    %s78 = scalar_lea.sflag [#allocation7], 1
    // Predicated region
    $region42: #{model_forward.1} parent=1 // pred_check
      _
    $region43: #{model_forward.1} parent=1 // pred_check_branch
      %80 = sbr.rel target = $region45
    $region44: #{model_forward.1} parent=1 // pred_region
      %81 = sst [smem:[#allocation16]] [#allocation19]
      %82 = sst [smem:[#allocation17]] [#allocation18]
    $region45: #{model_forward.1} parent=1 // pred_fallthru
      _
    %84 = shalt.err (0)
    %s86 = sshll.u32 %s8, 4
    %s87 = int_to_ptr.hbm [resolvable:$true] %s86
    %s88 = sshll.u32 [#allocation3], 4
    %s89 = int_to_ptr.vmem [resolvable:$true] %s88
    %91 = dma.hbm_to_vmem [thread:$0]  %s87, 2048, %s89, %s78
    %s92 = scalar_lea.sflag [#allocation7], 2
    // Predicated region
    $region46: #{model_forward.1} parent=1 // pred_check
      _
    $region47: #{model_forward.1} parent=1 // pred_check_branch
      %94 = sbr.rel target = $region49
    $region48: #{model_forward.1} parent=1 // pred_region
      %95 = sst [smem:[#allocation16]] [#allocation21]
      %96 = sst [smem:[#allocation17]] [#allocation20]
    $region49: #{model_forward.1} parent=1 // pred_fallthru
      _
    %98 = shalt.err (0)
    %s100 = sshll.u32 %s9, 4
    %s101 = int_to_ptr.hbm [resolvable:$true] %s100
    %s102 = sshll.u32 [#allocation4], 4
    %s103 = int_to_ptr.vmem [resolvable:$true] %s102
    %105 = dma.hbm_to_vmem [thread:$0]  %s101, 2048, %s103, %s92
    %s106 = scalar_lea.sflag [#allocation7], 3
    // Predicated region
    $region50: #{model_forward.1} parent=1 // pred_check
      _
    $region51: #{model_forward.1} parent=1 // pred_check_branch
      %108 = sbr.rel target = $region53
    $region52: #{model_forward.1} parent=1 // pred_region
      %109 = sst [smem:[#allocation16]] [#allocation23]
      %110 = sst [smem:[#allocation17]] [#allocation22]
    $region53: #{model_forward.1} parent=1 // pred_fallthru
      _
    %112 = shalt.err (0)
    %s114 = sshll.u32 %s10, 4
    %s115 = int_to_ptr.hbm [resolvable:$true] %s114
    %s116 = sshll.u32 [#allocation5], 4
    %s117 = int_to_ptr.vmem [resolvable:$true] %s116
    %119 = dma.hbm_to_vmem [thread:$0]  %s115, 2048, %s117, %s106
    %v120 = vlaneseq
    %v121 = vand.u32 %v120, 127
    %vm122 = vcmp.lt.s32.totalorder %v121, 32
    %v123 = vsel %vm122, 1, 0
    %v124 = vcvt.s32.f32 %v123
    %v125 = vld [vmem:[%s0] sm:$0x3]
    %s126 = scalar_lea.vmem %s0, 2
    %v127 = vld [vmem:[%s126] sm:$0x3]
    %s128 = scalar_lea.vmem %s0, 4
    %v129 = vld [vmem:[%s128] sm:$0x3]
    %s130 = scalar_lea.vmem %s0, 6
    %v131 = vld [vmem:[%s130] sm:$0x3]
    %s132 = scalar_lea.vmem %s0, 8
    %v133 = vld [vmem:[%s132] sm:$0x3]
    %s134 = scalar_lea.vmem %s0, 10
    %v135 = vld [vmem:[%s134] sm:$0x3]
    %s136 = scalar_lea.vmem %s0, 12
    %v137 = vld [vmem:[%s136] sm:$0x3]
    %s138 = scalar_lea.vmem %s0, 14
    %v139 = vld [vmem:[%s138] sm:$0x3]
    %v140 = vld [vmem:[#allocation8] sm:$0xff]
    %v141 = vld [vmem:[#allocation8 + $0x8] sm:$0xff]
    %v142 = vld [vmem:[#allocation8 + $0x10] sm:$0xff]
    %v143 = vld [vmem:[#allocation8 + $0x18] sm:$0xff]
    %v144 = vld [vmem:[#allocation8 + $0x20] sm:$0xff]
    %v145 = vld [vmem:[#allocation8 + $0x28] sm:$0xff]
    %v146 = vld [vmem:[#allocation8 + $0x30] sm:$0xff]
    %v147 = vld [vmem:[#allocation8 + $0x38] sm:$0xff]
    %v148 = vld [vmem:[#allocation8 + $0x40] sm:$0xff]
    %v149 = vld [vmem:[#allocation8 + $0x48] sm:$0xff]
    %v150 = vld [vmem:[#allocation8 + $0x50] sm:$0xff]
    %v151 = vld [vmem:[#allocation8 + $0x58] sm:$0xff]
    %v152 = vld [vmem:[#allocation8 + $0x60] sm:$0xff]
    %v153 = vld [vmem:[#allocation8 + $0x68] sm:$0xff]
    %v154 = vld [vmem:[#allocation8 + $0x70] sm:$0xff]
    %v155 = vld [vmem:[#allocation8 + $0x78] sm:$0xff]
    %v156 = vld [vmem:[#allocation11] sm:$0xff]
    %v157 = vld [vmem:[#allocation11 + $0x8] sm:$0xff]
    %v158 = vld [vmem:[#allocation11 + $0x10] sm:$0xff]
    %v159 = vld [vmem:[#allocation11 + $0x18] sm:$0xff]
    %v160 = vld [vmem:[#allocation11 + $0x20] sm:$0xff]
    %v161 = vld [vmem:[#allocation11 + $0x28] sm:$0xff]
    %v162 = vld [vmem:[#allocation11 + $0x30] sm:$0xff]
    %v163 = vld [vmem:[#allocation11 + $0x38] sm:$0xff]
    %v164 = vld [vmem:[#allocation11 + $0x40] sm:$0xff]
    %v165 = vld [vmem:[#allocation11 + $0x48] sm:$0xff]
    %v166 = vld [vmem:[#allocation11 + $0x50] sm:$0xff]
    %v167 = vld [vmem:[#allocation11 + $0x58] sm:$0xff]
    %v168 = vld [vmem:[#allocation11 + $0x60] sm:$0xff]
    %v169 = vld [vmem:[#allocation11 + $0x68] sm:$0xff]
    %v170 = vld [vmem:[#allocation11 + $0x70] sm:$0xff]
    %v171 = vld [vmem:[#allocation11 + $0x78] sm:$0xff]
    %v172 = vld [vmem:[%s3] sm:$0x1]
    %v173 = vmul.f32 %v125, 256.0
    %v174 = vround.ne.pseudo %v173
    %v175 = vmax.f32 %v174, -32768.0
    %v176 = vmin.f32 %v175, 32767.0
    %v177 = vmul.f32 %v176, 0.00390625
    %v178 = vand.u32 2147483647, %v177
    %vm179 = vcmp.ge.f32.partialorder %v178, 0.1
    %v180 = vsel %vm179, %v177, 0.0
    %v181 = vadd.f32 %v180, 0.0
    %v182 = vand.u32 2147483647, %v180
    %v183 = vadd.f32 %v182, 0.0
    %184 = vst [vmem:[#allocation6] sm:$0x3] %v181
    %v185 = vmul.f32 %v127, 256.0
    %v186 = vround.ne.pseudo %v185
    %v187 = vmax.f32 %v186, -32768.0
    %v188 = vmin.f32 %v187, 32767.0
    %v189 = vmul.f32 %v188, 0.00390625
    %v190 = vsub.f32 %v189, %v181
    %v191 = vand.u32 2147483647, %v190
    %vm192 = vcmp.ge.f32.partialorder %v191, 0.1
    %v193 = vsel %vm192, %v190, 0.0
    %v194 = vadd.f32 %v181, %v193
    %v195 = vand.u32 2147483647, %v193
    %v196 = vadd.f32 %v183, %v195
    %197 = vst [vmem:[#allocation6 + $0x2] sm:$0x3] %v194
    %v198 = vmul.f32 %v129, 256.0
    %v199 = vround.ne.pseudo %v198
    %v200 = vmax.f32 %v199, -32768.0
    %v201 = vmin.f32 %v200, 32767.0
    %v202 = vmul.f32 %v201, 0.00390625
    %v203 = vsub.f32 %v202, %v194
    %v204 = vand.u32 2147483647, %v203
    %vm205 = vcmp.ge.f32.partialorder %v204, 0.1
    %v206 = vsel %vm205, %v203, 0.0
    %v207 = vadd.f32 %v194, %v206
    %v208 = vand.u32 2147483647, %v206
    %v209 = vadd.f32 %v196, %v208
    %210 = vst [vmem:[#allocation6 + $0x4] sm:$0x3] %v207
    %v211 = vmul.f32 %v131, 256.0
    %v212 = vround.ne.pseudo %v211
    %v213 = vmax.f32 %v212, -32768.0
    %v214 = vmin.f32 %v213, 32767.0
    %v215 = vmul.f32 %v214, 0.00390625
    %v216 = vsub.f32 %v215, %v207
    %v217 = vand.u32 2147483647, %v216
    %vm218 = vcmp.ge.f32.partialorder %v217, 0.1
    %v219 = vsel %vm218, %v216, 0.0
    %v220 = vadd.f32 %v207, %v219
    %v221 = vand.u32 2147483647, %v219
    %v222 = vadd.f32 %v209, %v221
    %223 = vst [vmem:[#allocation6 + $0x6] sm:$0x3] %v220
    %v224 = vmul.f32 %v133, 256.0
    %v225 = vround.ne.pseudo %v224
    %v226 = vmax.f32 %v225, -32768.0
    %v227 = vmin.f32 %v226, 32767.0
    %v228 = vmul.f32 %v227, 0.00390625
    %v229 = vsub.f32 %v228, %v220
    %v230 = vand.u32 2147483647, %v229
    %vm231 = vcmp.ge.f32.partialorder %v230, 0.1
    %v232 = vsel %vm231, %v229, 0.0
    %v233 = vadd.f32 %v220, %v232
    %v234 = vand.u32 2147483647, %v232
    %v235 = vadd.f32 %v222, %v234
    %236 = vst [vmem:[#allocation6 + $0x8] sm:$0x3] %v233
    %v237 = vmul.f32 %v135, 256.0
    %v238 = vround.ne.pseudo %v237
    %v239 = vmax.f32 %v238, -32768.0
    %v240 = vmin.f32 %v239, 32767.0
    %v241 = vmul.f32 %v240, 0.00390625
    %v242 = vsub.f32 %v241, %v233
    %v243 = vand.u32 2147483647, %v242
    %vm244 = vcmp.ge.f32.partialorder %v243, 0.1
    %v245 = vsel %vm244, %v242, 0.0
    %v246 = vadd.f32 %v233, %v245
    %v247 = vand.u32 2147483647, %v245
    %v248 = vadd.f32 %v235, %v247
    %249 = vst [vmem:[#allocation6 + $0xa] sm:$0x3] %v246
    %v250 = vmul.f32 %v137, 256.0
    %v251 = vround.ne.pseudo %v250
    %v252 = vmax.f32 %v251, -32768.0
    %v253 = vmin.f32 %v252, 32767.0
    %v254 = vmul.f32 %v253, 0.00390625
    %v255 = vsub.f32 %v254, %v246
    %v256 = vand.u32 2147483647, %v255
    %vm257 = vcmp.ge.f32.partialorder %v256, 0.1
    %v258 = vsel %vm257, %v255, 0.0
    %v259 = vadd.f32 %v246, %v258
    %v260 = vand.u32 2147483647, %v258
    %v261 = vadd.f32 %v248, %v260
    %262 = vst [vmem:[#allocation6 + $0xc] sm:$0x3] %v259
    %v263 = vmul.f32 %v139, 256.0
    %v264 = vround.ne.pseudo %v263
    %v265 = vmax.f32 %v264, -32768.0
    %v266 = vmin.f32 %v265, 32767.0
    %v267 = vmul.f32 %v266, 0.00390625
    %v268 = vsub.f32 %v267, %v259
    %v269 = vand.u32 2147483647, %v268
    %vm270 = vcmp.ge.f32.partialorder %v269, 0.1
    %v271 = vsel %vm270, %v268, 0.0
    %v272 = vadd.f32 %v259, %v271
    %v273 = vand.u32 2147483647, %v271
    %v274 = vadd.f32 %v261, %v273
    %275 = vst [vmem:[#allocation6 + $0xe] sm:$0x3] %v272
    %v276 = vld [vmem:[#allocation6] sm:$0xff]
    %v277 = vld [vmem:[#allocation6 + $0x8] sm:$0xff]
    %v279 = vperm.slane %v172, 0
    %281 = vmatpush.msra.mxu0 %v155
    %282 = vmatpush.msra.mxu0 %v154
    %283 = vmatpush.msra.mxu0 %v153
    %284 = vmatpush.msra.mxu0 %v152
    %285 = vmatpush.msra.mxu0 %v151
    %286 = vmatpush.msra.mxu0 %v150
    %287 = vmatpush.msra.mxu0 %v149
    %288 = vmatpush.msra.mxu0 %v148
    %289 = vmatpush.msra.mxu0 %v147
    %290 = vmatpush.msra.mxu0 %v146
    %291 = vmatpush.msra.mxu0 %v145
    %292 = vmatpush.msra.mxu0 %v144
    %293 = vmatpush.msra.mxu0 %v143
    %294 = vmatpush.msra.mxu0 %v142
    %295 = vmatpush.msra.mxu0 %v141
    %296 = vmatpush.msra.mxu0 %v140
    %297 = vmatmul.f32.gmra.mxu0 %v276
    %v298 = vpop.f32.mrf.mxu0
    %v299 = vadd.f32 %v279, %v298
    %300 = vmatmul.f32.gmra.mxu0 %v277
    %v301 = vpop.f32.mrf.mxu0
    %v302 = vadd.f32 %v279, %v301
    %303 = vdwg.mxu0
    %304 = vmatpush.msra.mxu0 %v171
    %305 = vmatpush.msra.mxu0 %v170
    %306 = vmatpush.msra.mxu0 %v169
    %307 = vmatpush.msra.mxu0 %v168
    %308 = vmatpush.msra.mxu0 %v167
    %309 = vmatpush.msra.mxu0 %v166
    %310 = vmatpush.msra.mxu0 %v165
    %311 = vmatpush.msra.mxu0 %v164
    %312 = vmatpush.msra.mxu0 %v163
    %313 = vmatpush.msra.mxu0 %v162
    %314 = vmatpush.msra.mxu0 %v161
    %315 = vmatpush.msra.mxu0 %v160
    %316 = vmatpush.msra.mxu0 %v159
    %317 = vmatpush.msra.mxu0 %v158
    %318 = vmatpush.msra.mxu0 %v157
    %319 = vmatpush.msra.mxu0 %v156
    %320 = vmatmul.f32.gmra.mxu0 0.0
    %v321 = vpop.f32.mrf.mxu0
    %v322 = vadd.f32 0.0, %v321
    %323 = vdwg.mxu0
    %v324 = vadd.f32 %v299, %v322
    %v325 = vxor.u32 %v324, 2147483648
    %v326 = vmul.f32 %v325, 1.442695
    %v327 = vpow.pop %v326
    %v328 = vadd.f32 %v327, 1.0
    %v329 = vrcp.pop %v328
    %v330 = vmul.f32 %v328, %v329
    %v331 = vsub.f32 1.0, %v330
    %v332 = vmul.f32 %v329, %v331
    %v333 = vadd.f32 %v329, %v332
    %vm334 = vweird.f32 %v328
    %vm335 = vweird.f32 %v329
    %vm336 = vmor %vm334, %vm335
    %v337 = vsel %vm336, %v329, %v333
    %v338 = vand.u32 2147483647, %v328
    %vm339 = vcmp.eq.f32.partialorder %v338, 8.507059e+37
    %v340 = vand.u32 %v328, 2147483648
    %v341 = vor.u32 1.1754944e-38, %v340
    %v342 = vsel %vm339, %v341, %v337
    %v343 = vmul.f32 1.0, %v342
    %344 = vrot.lane.b32.xlu0 %v343, 64
    %v345 = vpop.permute.xlu0 %344
    %v346 = vmul.f32 %v345, %v322
    %v347 = vadd.f32 %v299, %v346
    %v348 = vtanh.pop %v347
    %349 = vrot.lane.b32.xlu0 %v343, 96
    %v350 = vpop.permute.xlu0 %349
    %351 = vrot.lane.b32.xlu0 %v348, 64
    %v352 = vpop.permute.xlu0 %351
    %v353 = vsub.f32 1.0, %v350
    %v354 = vmul.f32 %v353, %v352
    %v355 = vmul.f32 %v350, 0.0
    %v356 = vadd.f32 %v354, %v355
    %v357 = vmul.f32 %v356, 256.0
    %v358 = vround.ne.pseudo %v357
    %v359 = vmax.f32 %v358, -32768.0
    %v360 = vmin.f32 %v359, 32767.0
    %v361 = vmul.f32 %v360, 0.00390625
    %v362 = vmul.f32 %v361, %v124
    %v363 = vand.u32 2147483647, %v362
    %vm364 = vcmp.ge.f32.partialorder %v363, 0.1
    %v365 = vsel %vm364, %v362, 0.0
    %v366 = vadd.f32 %v365, 0.0
    %v367 = vand.u32 2147483647, %v365
    %v368 = vadd.f32 %v367, 0.0
    %369 = vmatpush.msra.mxu0 %v171
    %370 = vmatpush.msra.mxu0 %v170
    %371 = vmatpush.msra.mxu0 %v169
    %372 = vmatpush.msra.mxu0 %v168
    %373 = vmatpush.msra.mxu0 %v167
    %374 = vmatpush.msra.mxu0 %v166
    %375 = vmatpush.msra.mxu0 %v165
    %376 = vmatpush.msra.mxu0 %v164
    %377 = vmatpush.msra.mxu0 %v163
    %378 = vmatpush.msra.mxu0 %v162
    %379 = vmatpush.msra.mxu0 %v161
    %380 = vmatpush.msra.mxu0 %v160
    %381 = vmatpush.msra.mxu0 %v159
    %382 = vmatpush.msra.mxu0 %v158
    %383 = vmatpush.msra.mxu0 %v157
    %384 = vmatpush.msra.mxu0 %v156
    %385 = vmatmul.f32.gmra.mxu0 %v365
    %v386 = vpop.f32.mrf.mxu0
    %v387 = vadd.f32 0.0, %v386
    %388 = vdwg.mxu0
    %v389 = vadd.f32 %v322, %v387
    %v391 = vrot.slane %v389, 6
    %v393 = vadd.f32 %v299, %v391
    %v394 = vxor.u32 %v393, 2147483648
    %v395 = vmul.f32 %v394, 1.442695
    %v396 = vpow.pop %v395
    %v397 = vadd.f32 %v396, 1.0
    %v398 = vrcp.pop %v397
    %v399 = vmul.f32 %v397, %v398
    %v400 = vsub.f32 1.0, %v399
    %v401 = vmul.f32 %v398, %v400
    %v402 = vadd.f32 %v398, %v401
    %vm403 = vweird.f32 %v397
    %vm404 = vweird.f32 %v398
    %vm405 = vmor %vm403, %vm404
    %v406 = vsel %vm405, %v398, %v402
    %v407 = vand.u32 2147483647, %v397
    %vm408 = vcmp.eq.f32.partialorder %v407, 8.507059e+37
    %v409 = vand.u32 %v397, 2147483648
    %v410 = vor.u32 1.1754944e-38, %v409
    %v411 = vsel %vm408, %v410, %v406
    %v412 = vmul.f32 1.0, %v411
    %v414 = vrot.slane %v412, 2
    %416 = vrot.lane.b32.xlu0 %v414, 64
    %v417 = vpop.permute.xlu0 %416
    %v418 = vmul.f32 %v417, %v389
    %v420 = vrot.slane %v418, 6
    %v422 = vadd.f32 %v299, %v420
    %v423 = vtanh.pop %v422
    %424 = vrot.lane.b32.xlu0 %v414, 96
    %v425 = vpop.permute.xlu0 %424
    %v427 = vrot.slane %v423, 2
    %429 = vrot.lane.b32.xlu0 %v427, 64
    %v430 = vpop.permute.xlu0 %429
    %v431 = vsub.f32 1.0, %v425
    %v432 = vmul.f32 %v431, %v430
    %v433 = vmul.f32 %v425, %v362
    %v434 = vadd.f32 %v432, %v433
    %v435 = vmul.f32 %v434, 256.0
    %v436 = vround.ne.pseudo %v435
    %v437 = vmax.f32 %v436, -32768.0
    %v438 = vmin.f32 %v437, 32767.0
    %v439 = vmul.f32 %v438, 0.00390625
    %v440 = vmul.f32 %v439, %v124
    %v441 = vsub.f32 %v440, %v366
    %v442 = vand.u32 2147483647, %v441
    %vm443 = vcmp.ge.f32.partialorder %v442, 0.1
    %v444 = vsel %vm443, %v441, 0.0
    %v445 = vadd.f32 %v366, %v444
    %v446 = vand.u32 2147483647, %v444
    %v447 = vadd.f32 %v368, %v446
    %448 = vmatpush.msra.mxu0 %v171
    %449 = vmatpush.msra.mxu0 %v170
    %450 = vmatpush.msra.mxu0 %v169
    %451 = vmatpush.msra.mxu0 %v168
    %452 = vmatpush.msra.mxu0 %v167
    %453 = vmatpush.msra.mxu0 %v166
    %454 = vmatpush.msra.mxu0 %v165
    %455 = vmatpush.msra.mxu0 %v164
    %456 = vmatpush.msra.mxu0 %v163
    %457 = vmatpush.msra.mxu0 %v162
    %458 = vmatpush.msra.mxu0 %v161
    %459 = vmatpush.msra.mxu0 %v160
    %460 = vmatpush.msra.mxu0 %v159
    %461 = vmatpush.msra.mxu0 %v158
    %462 = vmatpush.msra.mxu0 %v157
    %463 = vmatpush.msra.mxu0 %v156
    %464 = vmatmul.f32.gmra.mxu0 %v444
    %v465 = vpop.f32.mrf.mxu0
    %v466 = vadd.f32 0.0, %v465
    %467 = vdwg.mxu0
    %v468 = vadd.f32 %v389, %v466
    %v470 = vrot.slane %v468, 4
    %v472 = vadd.f32 %v299, %v470
    %v473 = vxor.u32 %v472, 2147483648
    %v474 = vmul.f32 %v473, 1.442695
    %v475 = vpow.pop %v474
    %v476 = vadd.f32 %v475, 1.0
    %v477 = vrcp.pop %v476
    %v478 = vmul.f32 %v476, %v477
    %v479 = vsub.f32 1.0, %v478
    %v480 = vmul.f32 %v477, %v479
    %v481 = vadd.f32 %v477, %v480
    %vm482 = vweird.f32 %v476
    %vm483 = vweird.f32 %v477
    %vm484 = vmor %vm482, %vm483
    %v485 = vsel %vm484, %v477, %v481
    %v486 = vand.u32 2147483647, %v476
    %vm487 = vcmp.eq.f32.partialorder %v486, 8.507059e+37
    %v488 = vand.u32 %v476, 2147483648
    %v489 = vor.u32 1.1754944e-38, %v488
    %v490 = vsel %vm487, %v489, %v485
    %v491 = vmul.f32 1.0, %v490
    %v493 = vrot.slane %v491, 4
    %495 = vrot.lane.b32.xlu0 %v493, 64
    %v496 = vpop.permute.xlu0 %495
    %v497 = vmul.f32 %v496, %v468
    %v499 = vrot.slane %v497, 4
    %v501 = vadd.f32 %v299, %v499
    %v502 = vtanh.pop %v501
    %503 = vrot.lane.b32.xlu0 %v493, 96
    %v504 = vpop.permute.xlu0 %503
    %v506 = vrot.slane %v502, 4
    %508 = vrot.lane.b32.xlu0 %v506, 64
    %v509 = vpop.permute.xlu0 %508
    %v510 = vsub.f32 1.0, %v504
    %v511 = vmul.f32 %v510, %v509
    %v512 = vmul.f32 %v504, %v440
    %v513 = vadd.f32 %v511, %v512
    %v514 = vmul.f32 %v513, 256.0
    %v515 = vround.ne.pseudo %v514
    %v516 = vmax.f32 %v515, -32768.0
    %v517 = vmin.f32 %v516, 32767.0
    %v518 = vmul.f32 %v517, 0.00390625
    %v519 = vmul.f32 %v518, %v124
    %v520 = vsub.f32 %v519, %v445
    %v521 = vand.u32 2147483647, %v520
    %vm522 = vcmp.ge.f32.partialorder %v521, 0.1
    %v523 = vsel %vm522, %v520, 0.0
    %v524 = vadd.f32 %v445, %v523
    %v525 = vand.u32 2147483647, %v523
    %v526 = vadd.f32 %v447, %v525
    %527 = vmatpush.msra.mxu0 %v171
    %528 = vmatpush.msra.mxu0 %v170
    %529 = vmatpush.msra.mxu0 %v169
    %530 = vmatpush.msra.mxu0 %v168
    %531 = vmatpush.msra.mxu0 %v167
    %532 = vmatpush.msra.mxu0 %v166
    %533 = vmatpush.msra.mxu0 %v165
    %534 = vmatpush.msra.mxu0 %v164
    %535 = vmatpush.msra.mxu0 %v163
    %536 = vmatpush.msra.mxu0 %v162
    %537 = vmatpush.msra.mxu0 %v161
    %538 = vmatpush.msra.mxu0 %v160
    %539 = vmatpush.msra.mxu0 %v159
    %540 = vmatpush.msra.mxu0 %v158
    %541 = vmatpush.msra.mxu0 %v157
    %542 = vmatpush.msra.mxu0 %v156
    %543 = vmatmul.f32.gmra.mxu0 %v523
    %v544 = vpop.f32.mrf.mxu0
    %v545 = vadd.f32 0.0, %v544
    %546 = vdwg.mxu0
    %v547 = vadd.f32 %v468, %v545
    %v549 = vrot.slane %v547, 2
    %v551 = vadd.f32 %v299, %v549
    %v552 = vxor.u32 %v551, 2147483648
    %v553 = vmul.f32 %v552, 1.442695
    %v554 = vpow.pop %v553
    %v555 = vadd.f32 %v554, 1.0
    %v556 = vrcp.pop %v555
    %v557 = vmul.f32 %v555, %v556
    %v558 = vsub.f32 1.0, %v557
    %v559 = vmul.f32 %v556, %v558
    %v560 = vadd.f32 %v556, %v559
    %vm561 = vweird.f32 %v555
    %vm562 = vweird.f32 %v556
    %vm563 = vmor %vm561, %vm562
    %v564 = vsel %vm563, %v556, %v560
    %v565 = vand.u32 2147483647, %v555
    %vm566 = vcmp.eq.f32.partialorder %v565, 8.507059e+37
    %v567 = vand.u32 %v555, 2147483648
    %v568 = vor.u32 1.1754944e-38, %v567
    %v569 = vsel %vm566, %v568, %v564
    %v570 = vmul.f32 1.0, %v569
    %v572 = vrot.slane %v570, 6
    %574 = vrot.lane.b32.xlu0 %v572, 64
    %v575 = vpop.permute.xlu0 %574
    %v576 = vmul.f32 %v575, %v547
    %v578 = vrot.slane %v576, 2
    %v580 = vadd.f32 %v299, %v578
    %v581 = vtanh.pop %v580
    %582 = vrot.lane.b32.xlu0 %v572, 96
    %v583 = vpop.permute.xlu0 %582
    %v585 = vrot.slane %v581, 6
    %587 = vrot.lane.b32.xlu0 %v585, 64
    %v588 = vpop.permute.xlu0 %587
    %v589 = vsub.f32 1.0, %v583
    %v590 = vmul.f32 %v589, %v588
    %v591 = vmul.f32 %v583, %v519
    %v592 = vadd.f32 %v590, %v591
    %v593 = vmul.f32 %v592, 256.0
    %v594 = vround.ne.pseudo %v593
    %v595 = vmax.f32 %v594, -32768.0
    %v596 = vmin.f32 %v595, 32767.0
    %v597 = vmul.f32 %v596, 0.00390625
    %v598 = vmul.f32 %v597, %v124
    %v599 = vsub.f32 %v598, %v524
    %v600 = vand.u32 2147483647, %v599
    %vm601 = vcmp.ge.f32.partialorder %v600, 0.1
    %v602 = vsel %vm601, %v599, 0.0
    %v603 = vadd.f32 %v524, %v602
    %v604 = vand.u32 2147483647, %v602
    %v605 = vadd.f32 %v526, %v604
    %606 = vmatpush.msra.mxu0 %v171
    %607 = vmatpush.msra.mxu0 %v170
    %608 = vmatpush.msra.mxu0 %v169
    %609 = vmatpush.msra.mxu0 %v168
    %610 = vmatpush.msra.mxu0 %v167
    %611 = vmatpush.msra.mxu0 %v166
    %612 = vmatpush.msra.mxu0 %v165
    %613 = vmatpush.msra.mxu0 %v164
    %614 = vmatpush.msra.mxu0 %v163
    %615 = vmatpush.msra.mxu0 %v162
    %616 = vmatpush.msra.mxu0 %v161
    %617 = vmatpush.msra.mxu0 %v160
    %618 = vmatpush.msra.mxu0 %v159
    %619 = vmatpush.msra.mxu0 %v158
    %620 = vmatpush.msra.mxu0 %v157
    %621 = vmatpush.msra.mxu0 %v156
    %622 = vmatmul.f32.gmra.mxu0 %v602
    %v623 = vpop.f32.mrf.mxu0
    %v624 = vadd.f32 0.0, %v623
    %625 = vdwg.mxu0
    %v626 = vadd.f32 %v547, %v624
    %v627 = vadd.f32 %v302, %v626
    %v628 = vxor.u32 %v627, 2147483648
    %v629 = vmul.f32 %v628, 1.442695
    %v630 = vpow.pop %v629
    %v631 = vadd.f32 %v630, 1.0
    %v632 = vrcp.pop %v631
    %v633 = vmul.f32 %v631, %v632
    %v634 = vsub.f32 1.0, %v633
    %v635 = vmul.f32 %v632, %v634
    %v636 = vadd.f32 %v632, %v635
    %vm637 = vweird.f32 %v631
    %vm638 = vweird.f32 %v632
    %vm639 = vmor %vm637, %vm638
    %v640 = vsel %vm639, %v632, %v636
    %v641 = vand.u32 2147483647, %v631
    %vm642 = vcmp.eq.f32.partialorder %v641, 8.507059e+37
    %v643 = vand.u32 %v631, 2147483648
    %v644 = vor.u32 1.1754944e-38, %v643
    %v645 = vsel %vm642, %v644, %v640
    %v646 = vmul.f32 1.0, %v645
    %647 = vrot.lane.b32.xlu0 %v646, 64
    %v648 = vpop.permute.xlu0 %647
    %v649 = vmul.f32 %v648, %v626
    %v650 = vadd.f32 %v302, %v649
    %v651 = vtanh.pop %v650
    %652 = vrot.lane.b32.xlu0 %v646, 96
    %v653 = vpop.permute.xlu0 %652
    %654 = vrot.lane.b32.xlu0 %v651, 64
    %v655 = vpop.permute.xlu0 %654
    %v656 = vsub.f32 1.0, %v653
    %v657 = vmul.f32 %v656, %v655
    %v658 = vmul.f32 %v653, %v598
    %v659 = vadd.f32 %v657, %v658
    %v660 = vmul.f32 %v659, 256.0
    %v661 = vround.ne.pseudo %v660
    %v662 = vmax.f32 %v661, -32768.0
    %v663 = vmin.f32 %v662, 32767.0
    %v664 = vmul.f32 %v663, 0.00390625
    %v665 = vmul.f32 %v664, %v124
    %v666 = vsub.f32 %v665, %v603
    %v667 = vand.u32 2147483647, %v666
    %vm668 = vcmp.ge.f32.partialorder %v667, 0.1
    %v669 = vsel %vm668, %v666, 0.0
    %v670 = vadd.f32 %v603, %v669
    %v671 = vand.u32 2147483647, %v669
    %v672 = vadd.f32 %v605, %v671
    %673 = vmatpush.msra.mxu0 %v171
    %674 = vmatpush.msra.mxu0 %v170
    %675 = vmatpush.msra.mxu0 %v169
    %676 = vmatpush.msra.mxu0 %v168
    %677 = vmatpush.msra.mxu0 %v167
    %678 = vmatpush.msra.mxu0 %v166
    %679 = vmatpush.msra.mxu0 %v165
    %680 = vmatpush.msra.mxu0 %v164
    %681 = vmatpush.msra.mxu0 %v163
    %682 = vmatpush.msra.mxu0 %v162
    %683 = vmatpush.msra.mxu0 %v161
    %684 = vmatpush.msra.mxu0 %v160
    %685 = vmatpush.msra.mxu0 %v159
    %686 = vmatpush.msra.mxu0 %v158
    %687 = vmatpush.msra.mxu0 %v157
    %688 = vmatpush.msra.mxu0 %v156
    %689 = vmatmul.f32.gmra.mxu0 %v669
    %v690 = vpop.f32.mrf.mxu0
    %v691 = vadd.f32 0.0, %v690
    %692 = vdwg.mxu0
    %v693 = vadd.f32 %v626, %v691
    %v695 = vrot.slane %v693, 6
    %v697 = vadd.f32 %v302, %v695
    %v698 = vxor.u32 %v697, 2147483648
    %v699 = vmul.f32 %v698, 1.442695
    %v700 = vpow.pop %v699
    %v701 = vadd.f32 %v700, 1.0
    %v702 = vrcp.pop %v701
    %v703 = vmul.f32 %v701, %v702
    %v704 = vsub.f32 1.0, %v703
    %v705 = vmul.f32 %v702, %v704
    %v706 = vadd.f32 %v702, %v705
    %vm707 = vweird.f32 %v701
    %vm708 = vweird.f32 %v702
    %vm709 = vmor %vm707, %vm708
    %v710 = vsel %vm709, %v702, %v706
    %v711 = vand.u32 2147483647, %v701
    %vm712 = vcmp.eq.f32.partialorder %v711, 8.507059e+37
    %v713 = vand.u32 %v701, 2147483648
    %v714 = vor.u32 1.1754944e-38, %v713
    %v715 = vsel %vm712, %v714, %v710
    %v716 = vmul.f32 1.0, %v715
    %v718 = vrot.slane %v716, 2
    %720 = vrot.lane.b32.xlu0 %v718, 64
    %v721 = vpop.permute.xlu0 %720
    %v722 = vmul.f32 %v721, %v693
    %v724 = vrot.slane %v722, 6
    %v726 = vadd.f32 %v302, %v724
    %v727 = vtanh.pop %v726
    %728 = vrot.lane.b32.xlu0 %v718, 96
    %v729 = vpop.permute.xlu0 %728
    %v731 = vrot.slane %v727, 2
    %733 = vrot.lane.b32.xlu0 %v731, 64
    %v734 = vpop.permute.xlu0 %733
    %v735 = vsub.f32 1.0, %v729
    %v736 = vmul.f32 %v735, %v734
    %v737 = vmul.f32 %v729, %v665
    %v738 = vadd.f32 %v736, %v737
    %v739 = vmul.f32 %v738, 256.0
    %v740 = vround.ne.pseudo %v739
    %v741 = vmax.f32 %v740, -32768.0
    %v742 = vmin.f32 %v741, 32767.0
    %v743 = vmul.f32 %v742, 0.00390625
    %v744 = vmul.f32 %v743, %v124
    %v745 = vsub.f32 %v744, %v670
    %v746 = vand.u32 2147483647, %v745
    %vm747 = vcmp.ge.f32.partialorder %v746, 0.1
    %v748 = vsel %vm747, %v745, 0.0
    %v749 = vadd.f32 %v670, %v748
    %v750 = vand.u32 2147483647, %v748
    %v751 = vadd.f32 %v672, %v750
    %752 = vmatpush.msra.mxu0 %v171
    %753 = vmatpush.msra.mxu0 %v170
    %754 = vmatpush.msra.mxu0 %v169
    %755 = vmatpush.msra.mxu0 %v168
    %756 = vmatpush.msra.mxu0 %v167
    %757 = vmatpush.msra.mxu0 %v166
    %758 = vmatpush.msra.mxu0 %v165
    %759 = vmatpush.msra.mxu0 %v164
    %760 = vmatpush.msra.mxu0 %v163
    %761 = vmatpush.msra.mxu0 %v162
    %762 = vmatpush.msra.mxu0 %v161
    %763 = vmatpush.msra.mxu0 %v160
    %764 = vmatpush.msra.mxu0 %v159
    %765 = vmatpush.msra.mxu0 %v158
    %766 = vmatpush.msra.mxu0 %v157
    %767 = vmatpush.msra.mxu0 %v156
    %768 = vmatmul.f32.gmra.mxu0 %v748
    %v769 = vpop.f32.mrf.mxu0
    %v770 = vadd.f32 0.0, %v769
    %771 = vdwg.mxu0
    %v772 = vadd.f32 %v693, %v770
    %v774 = vrot.slane %v772, 4
    %v776 = vadd.f32 %v302, %v774
    %v777 = vxor.u32 %v776, 2147483648
    %v778 = vmul.f32 %v777, 1.442695
    %v779 = vpow.pop %v778
    %v780 = vadd.f32 %v779, 1.0
    %v781 = vrcp.pop %v780
    %v782 = vmul.f32 %v780, %v781
    %v783 = vsub.f32 1.0, %v782
    %v784 = vmul.f32 %v781, %v783
    %v785 = vadd.f32 %v781, %v784
    %vm786 = vweird.f32 %v780
    %vm787 = vweird.f32 %v781
    %vm788 = vmor %vm786, %vm787
    %v789 = vsel %vm788, %v781, %v785
    %v790 = vand.u32 2147483647, %v780
    %vm791 = vcmp.eq.f32.partialorder %v790, 8.507059e+37
    %v792 = vand.u32 %v780, 2147483648
    %v793 = vor.u32 1.1754944e-38, %v792
    %v794 = vsel %vm791, %v793, %v789
    %v795 = vmul.f32 1.0, %v794
    %v797 = vrot.slane %v795, 4
    %799 = vrot.lane.b32.xlu0 %v797, 64
    %v800 = vpop.permute.xlu0 %799
    %v801 = vmul.f32 %v800, %v772
    %v803 = vrot.slane %v801, 4
    %v805 = vadd.f32 %v302, %v803
    %v806 = vtanh.pop %v805
    %807 = vrot.lane.b32.xlu0 %v797, 96
    %v808 = vpop.permute.xlu0 %807
    %v810 = vrot.slane %v806, 4
    %812 = vrot.lane.b32.xlu0 %v810, 64
    %v813 = vpop.permute.xlu0 %812
    %v814 = vsub.f32 1.0, %v808
    %v815 = vmul.f32 %v814, %v813
    %v816 = vmul.f32 %v808, %v744
    %v817 = vadd.f32 %v815, %v816
    %v818 = vmul.f32 %v817, 256.0
    %v819 = vround.ne.pseudo %v818
    %v820 = vmax.f32 %v819, -32768.0
    %v821 = vmin.f32 %v820, 32767.0
    %v822 = vmul.f32 %v821, 0.00390625
    %v823 = vmul.f32 %v822, %v124
    %v824 = vsub.f32 %v823, %v749
    %v825 = vand.u32 2147483647, %v824
    %vm826 = vcmp.ge.f32.partialorder %v825, 0.1
    %v827 = vsel %vm826, %v824, 0.0
    %v828 = vand.u32 2147483647, %v827
    %v829 = vadd.f32 %v751, %v828
    %830 = vmatpush.msra.mxu0 %v171
    %831 = vmatpush.msra.mxu0 %v170
    %832 = vmatpush.msra.mxu0 %v169
    %833 = vmatpush.msra.mxu0 %v168
    %834 = vmatpush.msra.mxu0 %v167
    %835 = vmatpush.msra.mxu0 %v166
    %836 = vmatpush.msra.mxu0 %v165
    %837 = vmatpush.msra.mxu0 %v164
    %838 = vmatpush.msra.mxu0 %v163
    %839 = vmatpush.msra.mxu0 %v162
    %840 = vmatpush.msra.mxu0 %v161
    %841 = vmatpush.msra.mxu0 %v160
    %842 = vmatpush.msra.mxu0 %v159
    %843 = vmatpush.msra.mxu0 %v158
    %844 = vmatpush.msra.mxu0 %v157
    %845 = vmatpush.msra.mxu0 %v156
    %846 = vmatmul.f32.gmra.mxu0 %v827
    %v847 = vpop.f32.mrf.mxu0
    %v848 = vadd.f32 0.0, %v847
    %849 = vdwg.mxu0
    %v850 = vadd.f32 %v772, %v848
    %v852 = vrot.slane %v850, 2
    %v854 = vadd.f32 %v302, %v852
    %v855 = vxor.u32 %v854, 2147483648
    %v856 = vmul.f32 %v855, 1.442695
    %v857 = vpow.pop %v856
    %v858 = vadd.f32 %v857, 1.0
    %v859 = vrcp.pop %v858
    %v860 = vmul.f32 %v858, %v859
    %v861 = vsub.f32 1.0, %v860
    %v862 = vmul.f32 %v859, %v861
    %v863 = vadd.f32 %v859, %v862
    %vm864 = vweird.f32 %v858
    %vm865 = vweird.f32 %v859
    %vm866 = vmor %vm864, %vm865
    %v867 = vsel %vm866, %v859, %v863
    %v868 = vand.u32 2147483647, %v858
    %vm869 = vcmp.eq.f32.partialorder %v868, 8.507059e+37
    %v870 = vand.u32 %v858, 2147483648
    %v871 = vor.u32 1.1754944e-38, %v870
    %v872 = vsel %vm869, %v871, %v867
    %v873 = vmul.f32 1.0, %v872
    %v875 = vrot.slane %v873, 6
    %877 = vrot.lane.b32.xlu0 %v875, 64
    %v878 = vpop.permute.xlu0 %877
    %v879 = vmul.f32 %v878, %v850
    %v881 = vrot.slane %v879, 2
    %v883 = vadd.f32 %v302, %v881
    %v884 = vtanh.pop %v883
    %885 = vrot.lane.b32.xlu0 %v875, 96
    %v886 = vpop.permute.xlu0 %885
    %v888 = vrot.slane %v884, 6
    %890 = vrot.lane.b32.xlu0 %v888, 64
    %v891 = vpop.permute.xlu0 %890
    %v892 = vsub.f32 1.0, %v886
    %v893 = vmul.f32 %v892, %v891
    %v894 = vmul.f32 %v886, %v823
    %v895 = vadd.f32 %v893, %v894
    %v896 = vmul.f32 %v895, 256.0
    %v897 = vround.ne.pseudo %v896
    %v898 = vmax.f32 %v897, -32768.0
    %v899 = vmin.f32 %v898, 32767.0
    %v900 = vmul.f32 %v899, 0.00390625
    %v901 = vmul.f32 %v900, %v124
    %vm902 = vcmask 1041408
    %v903 = vsel %vm902, %v274, 0.0
    %904 = vadd.xlane.f32.xlu0 %v903
    %v905 = vpop.xlane.xlu0 %904
    %v906 = vrot.slane %v905, 4
    %v907 = vadd.f32 %v905, %v906
    %v908 = vrot.slane %v907, 2
    %v909 = vadd.f32 %v907, %v908
    %v910 = vrot.slane %v909, 1
    %v911 = vadd.f32 %v909, %v910
    %s912 = vtos %v911
    %v913 = vsel %vm902, %v829, 0.0
    %914 = vadd.xlane.f32.xlu0 %v913
    %v915 = vpop.xlane.xlu0 %914
    %v916 = vrot.slane %v915, 4
    %v917 = vadd.f32 %v915, %v916
    %v918 = vrot.slane %v917, 2
    %v919 = vadd.f32 %v917, %v918
    %v920 = vrot.slane %v919, 1
    %v921 = vadd.f32 %v919, %v920
    %s922 = vtos %v921
    %s923 = sadd.f32 %s912, %s922
    %s924 = smul.u32 128, 1
    %s925 = sshll.u32 %s924, 4
    %926 = dma.done [#allocation7], %s925
    %s927 = sshll.u32 %s924, 4
    %928 = dma.done %s78, %s927
    %v929 = vld [vmem:[#allocation2] sm:$0xff]
    %v930 = vld [vmem:[#allocation2 + $0x8] sm:$0xff]
    %v931 = vld [vmem:[#allocation2 + $0x10] sm:$0xff]
    %v932 = vld [vmem:[#allocation2 + $0x18] sm:$0xff]
    %v933 = vld [vmem:[#allocation2 + $0x20] sm:$0xff]
    %v934 = vld [vmem:[#allocation2 + $0x28] sm:$0xff]
    %v935 = vld [vmem:[#allocation2 + $0x30] sm:$0xff]
    %v936 = vld [vmem:[#allocation2 + $0x38] sm:$0xff]
    %v937 = vld [vmem:[#allocation2 + $0x40] sm:$0xff]
    %v938 = vld [vmem:[#allocation2 + $0x48] sm:$0xff]
    %v939 = vld [vmem:[#allocation2 + $0x50] sm:$0xff]
    %v940 = vld [vmem:[#allocation2 + $0x58] sm:$0xff]
    %v941 = vld [vmem:[#allocation2 + $0x60] sm:$0xff]
    %v942 = vld [vmem:[#allocation2 + $0x68] sm:$0xff]
    %v943 = vld [vmem:[#allocation2 + $0x70] sm:$0xff]
    %v944 = vld [vmem:[#allocation2 + $0x78] sm:$0xff]
    %v945 = vld [vmem:[#allocation3] sm:$0xff]
    %v946 = vld [vmem:[#allocation3 + $0x8] sm:$0xff]
    %v947 = vld [vmem:[#allocation3 + $0x10] sm:$0xff]
    %v948 = vld [vmem:[#allocation3 + $0x18] sm:$0xff]
    %v949 = vld [vmem:[#allocation3 + $0x20] sm:$0xff]
    %v950 = vld [vmem:[#allocation3 + $0x28] sm:$0xff]
    %v951 = vld [vmem:[#allocation3 + $0x30] sm:$0xff]
    %v952 = vld [vmem:[#allocation3 + $0x38] sm:$0xff]
    %v953 = vld [vmem:[#allocation3 + $0x40] sm:$0xff]
    %v954 = vld [vmem:[#allocation3 + $0x48] sm:$0xff]
    %v955 = vld [vmem:[#allocation3 + $0x50] sm:$0xff]
    %v956 = vld [vmem:[#allocation3 + $0x58] sm:$0xff]
    %v957 = vld [vmem:[#allocation3 + $0x60] sm:$0xff]
    %v958 = vld [vmem:[#allocation3 + $0x68] sm:$0xff]
    %v959 = vld [vmem:[#allocation3 + $0x70] sm:$0xff]
    %v960 = vld [vmem:[#allocation3 + $0x78] sm:$0xff]
    %v961 = vld [vmem:[%s4] sm:$0x1]
    %v962 = vmul.f32 %v362, 256.0
    %v963 = vround.ne.pseudo %v962
    %v964 = vmax.f32 %v963, -32768.0
    %v965 = vmin.f32 %v964, 32767.0
    %v966 = vmul.f32 %v965, 0.00390625
    %v967 = vand.u32 2147483647, %v966
    %vm968 = vcmp.ge.f32.partialorder %v967, 0.1
    %v969 = vsel %vm968, %v966, 0.0
    %v970 = vadd.f32 %v969, 0.0
    %v971 = vand.u32 2147483647, %v969
    %v972 = vadd.f32 %v971, 0.0
    %973 = vst [vmem:[#allocation6] sm:$0x3] %v970
    %v974 = vmul.f32 %v440, 256.0
    %v975 = vround.ne.pseudo %v974
    %v976 = vmax.f32 %v975, -32768.0
    %v977 = vmin.f32 %v976, 32767.0
    %v978 = vmul.f32 %v977, 0.00390625
    %v979 = vsub.f32 %v978, %v970
    %v980 = vand.u32 2147483647, %v979
    %vm981 = vcmp.ge.f32.partialorder %v980, 0.1
    %v982 = vsel %vm981, %v979, 0.0
    %v983 = vadd.f32 %v970, %v982
    %v984 = vand.u32 2147483647, %v982
    %v985 = vadd.f32 %v972, %v984
    %986 = vst [vmem:[#allocation6 + $0x2] sm:$0x3] %v983
    %v987 = vmul.f32 %v519, 256.0
    %v988 = vround.ne.pseudo %v987
    %v989 = vmax.f32 %v988, -32768.0
    %v990 = vmin.f32 %v989, 32767.0
    %v991 = vmul.f32 %v990, 0.00390625
    %v992 = vsub.f32 %v991, %v983
    %v993 = vand.u32 2147483647, %v992
    %vm994 = vcmp.ge.f32.partialorder %v993, 0.1
    %v995 = vsel %vm994, %v992, 0.0
    %v996 = vadd.f32 %v983, %v995
    %v997 = vand.u32 2147483647, %v995
    %v998 = vadd.f32 %v985, %v997
    %999 = vst [vmem:[#allocation6 + $0x4] sm:$0x3] %v996
    %v1000 = vmul.f32 %v598, 256.0
    %v1001 = vround.ne.pseudo %v1000
    %v1002 = vmax.f32 %v1001, -32768.0
    %v1003 = vmin.f32 %v1002, 32767.0
    %v1004 = vmul.f32 %v1003, 0.00390625
    %v1005 = vsub.f32 %v1004, %v996
    %v1006 = vand.u32 2147483647, %v1005
    %vm1007 = vcmp.ge.f32.partialorder %v1006, 0.1
    %v1008 = vsel %vm1007, %v1005, 0.0
    %v1009 = vadd.f32 %v996, %v1008
    %v1010 = vand.u32 2147483647, %v1008
    %v1011 = vadd.f32 %v998, %v1010
    %1012 = vst [vmem:[#allocation6 + $0x6] sm:$0x3] %v1009
    %v1013 = vmul.f32 %v665, 256.0
    %v1014 = vround.ne.pseudo %v1013
    %v1015 = vmax.f32 %v1014, -32768.0
    %v1016 = vmin.f32 %v1015, 32767.0
    %v1017 = vmul.f32 %v1016, 0.00390625
    %v1018 = vsub.f32 %v1017, %v1009
    %v1019 = vand.u32 2147483647, %v1018
    %vm1020 = vcmp.ge.f32.partialorder %v1019, 0.1
    %v1021 = vsel %vm1020, %v1018, 0.0
    %v1022 = vadd.f32 %v1009, %v1021
    %v1023 = vand.u32 2147483647, %v1021
    %v1024 = vadd.f32 %v1011, %v1023
    %1025 = vst [vmem:[#allocation6 + $0x8] sm:$0x3] %v1022
    %v1026 = vmul.f32 %v744, 256.0
    %v1027 = vround.ne.pseudo %v1026
    %v1028 = vmax.f32 %v1027, -32768.0
    %v1029 = vmin.f32 %v1028, 32767.0
    %v1030 = vmul.f32 %v1029, 0.00390625
    %v1031 = vsub.f32 %v1030, %v1022
    %v1032 = vand.u32 2147483647, %v1031
    %vm1033 = vcmp.ge.f32.partialorder %v1032, 0.1
    %v1034 = vsel %vm1033, %v1031, 0.0
    %v1035 = vadd.f32 %v1022, %v1034
    %v1036 = vand.u32 2147483647, %v1034
    %v1037 = vadd.f32 %v1024, %v1036
    %1038 = vst [vmem:[#allocation6 + $0xa] sm:$0x3] %v1035
    %v1039 = vmul.f32 %v823, 256.0
    %v1040 = vround.ne.pseudo %v1039
    %v1041 = vmax.f32 %v1040, -32768.0
    %v1042 = vmin.f32 %v1041, 32767.0
    %v1043 = vmul.f32 %v1042, 0.00390625
    %v1044 = vsub.f32 %v1043, %v1035
    %v1045 = vand.u32 2147483647, %v1044
    %vm1046 = vcmp.ge.f32.partialorder %v1045, 0.1
    %v1047 = vsel %vm1046, %v1044, 0.0
    %v1048 = vadd.f32 %v1035, %v1047
    %v1049 = vand.u32 2147483647, %v1047
    %v1050 = vadd.f32 %v1037, %v1049
    %1051 = vst [vmem:[#allocation6 + $0xc] sm:$0x3] %v1048
    %v1052 = vmul.f32 %v901, 256.0
    %v1053 = vround.ne.pseudo %v1052
    %v1054 = vmax.f32 %v1053, -32768.0
    %v1055 = vmin.f32 %v1054, 32767.0
    %v1056 = vmul.f32 %v1055, 0.00390625
    %v1057 = vsub.f32 %v1056, %v1048
    %v1058 = vand.u32 2147483647, %v1057
    %vm1059 = vcmp.ge.f32.partialorder %v1058, 0.1
    %v1060 = vsel %vm1059, %v1057, 0.0
    %v1061 = vadd.f32 %v1048, %v1060
    %v1062 = vand.u32 2147483647, %v1060
    %v1063 = vadd.f32 %v1050, %v1062
    %1064 = vst [vmem:[#allocation6 + $0xe] sm:$0x3] %v1061
    %v1065 = vld [vmem:[#allocation6] sm:$0xff]
    %v1066 = vld [vmem:[#allocation6 + $0x8] sm:$0xff]
    %v1068 = vperm.slane %v961, 0
    %1070 = vmatpush.msra.mxu0 %v944
    %1071 = vmatpush.msra.mxu0 %v943
    %1072 = vmatpush.msra.mxu0 %v942
    %1073 = vmatpush.msra.mxu0 %v941
    %1074 = vmatpush.msra.mxu0 %v940
    %1075 = vmatpush.msra.mxu0 %v939
    %1076 = vmatpush.msra.mxu0 %v938
    %1077 = vmatpush.msra.mxu0 %v937
    %1078 = vmatpush.msra.mxu0 %v936
    %1079 = vmatpush.msra.mxu0 %v935
    %1080 = vmatpush.msra.mxu0 %v934
    %1081 = vmatpush.msra.mxu0 %v933
    %1082 = vmatpush.msra.mxu0 %v932
    %1083 = vmatpush.msra.mxu0 %v931
    %1084 = vmatpush.msra.mxu0 %v930
    %1085 = vmatpush.msra.mxu0 %v929
    %1086 = vmatmul.f32.gmra.mxu0 %v1065
    %v1087 = vpop.f32.mrf.mxu0
    %v1088 = vadd.f32 %v1068, %v1087
    %1089 = vmatmul.f32.gmra.mxu0 %v1066
    %v1090 = vpop.f32.mrf.mxu0
    %v1091 = vadd.f32 %v1068, %v1090
    %1092 = vdwg.mxu0
    %1093 = vmatpush.msra.mxu0 %v960
    %1094 = vmatpush.msra.mxu0 %v959
    %1095 = vmatpush.msra.mxu0 %v958
    %1096 = vmatpush.msra.mxu0 %v957
    %1097 = vmatpush.msra.mxu0 %v956
    %1098 = vmatpush.msra.mxu0 %v955
    %1099 = vmatpush.msra.mxu0 %v954
    %1100 = vmatpush.msra.mxu0 %v953
    %1101 = vmatpush.msra.mxu0 %v952
    %1102 = vmatpush.msra.mxu0 %v951
    %1103 = vmatpush.msra.mxu0 %v950
    %1104 = vmatpush.msra.mxu0 %v949
    %1105 = vmatpush.msra.mxu0 %v948
    %1106 = vmatpush.msra.mxu0 %v947
    %1107 = vmatpush.msra.mxu0 %v946
    %1108 = vmatpush.msra.mxu0 %v945
    %1109 = vmatmul.f32.gmra.mxu0 0.0
    %v1110 = vpop.f32.mrf.mxu0
    %v1111 = vadd.f32 0.0, %v1110
    %1112 = vdwg.mxu0
    %v1113 = vadd.f32 %v1088, %v1111
    %v1114 = vxor.u32 %v1113, 2147483648
    %v1115 = vmul.f32 %v1114, 1.442695
    %v1116 = vpow.pop %v1115
    %v1117 = vadd.f32 %v1116, 1.0
    %v1118 = vrcp.pop %v1117
    %v1119 = vmul.f32 %v1117, %v1118
    %v1120 = vsub.f32 1.0, %v1119
    %v1121 = vmul.f32 %v1118, %v1120
    %v1122 = vadd.f32 %v1118, %v1121
    %vm1123 = vweird.f32 %v1117
    %vm1124 = vweird.f32 %v1118
    %vm1125 = vmor %vm1123, %vm1124
    %v1126 = vsel %vm1125, %v1118, %v1122
    %v1127 = vand.u32 2147483647, %v1117
    %vm1128 = vcmp.eq.f32.partialorder %v1127, 8.507059e+37
    %v1129 = vand.u32 %v1117, 2147483648
    %v1130 = vor.u32 1.1754944e-38, %v1129
    %v1131 = vsel %vm1128, %v1130, %v1126
    %v1132 = vmul.f32 1.0, %v1131
    %1133 = vrot.lane.b32.xlu0 %v1132, 64
    %v1134 = vpop.permute.xlu0 %1133
    %v1135 = vmul.f32 %v1134, %v1111
    %v1136 = vadd.f32 %v1088, %v1135
    %v1137 = vtanh.pop %v1136
    %1138 = vrot.lane.b32.xlu0 %v1132, 96
    %v1139 = vpop.permute.xlu0 %1138
    %1140 = vrot.lane.b32.xlu0 %v1137, 64
    %v1141 = vpop.permute.xlu0 %1140
    %v1142 = vsub.f32 1.0, %v1139
    %v1143 = vmul.f32 %v1142, %v1141
    %v1144 = vmul.f32 %v1139, 0.0
    %v1145 = vadd.f32 %v1143, %v1144
    %v1146 = vmul.f32 %v1145, 256.0
    %v1147 = vround.ne.pseudo %v1146
    %v1148 = vmax.f32 %v1147, -32768.0
    %v1149 = vmin.f32 %v1148, 32767.0
    %v1150 = vmul.f32 %v1149, 0.00390625
    %v1151 = vmul.f32 %v1150, %v124
    %1152 = vst [vmem:[#allocation6] sm:$0x3] %v1151
    %v1153 = vand.u32 2147483647, %v1151
    %vm1154 = vcmp.ge.f32.partialorder %v1153, 0.1
    %v1155 = vsel %vm1154, %v1151, 0.0
    %v1156 = vadd.f32 %v1155, 0.0
    %v1157 = vand.u32 2147483647, %v1155
    %v1158 = vadd.f32 %v1157, 0.0
    %1159 = vmatpush.msra.mxu0 %v960
    %1160 = vmatpush.msra.mxu0 %v959
    %1161 = vmatpush.msra.mxu0 %v958
    %1162 = vmatpush.msra.mxu0 %v957
    %1163 = vmatpush.msra.mxu0 %v956
    %1164 = vmatpush.msra.mxu0 %v955
    %1165 = vmatpush.msra.mxu0 %v954
    %1166 = vmatpush.msra.mxu0 %v953
    %1167 = vmatpush.msra.mxu0 %v952
    %1168 = vmatpush.msra.mxu0 %v951
    %1169 = vmatpush.msra.mxu0 %v950
    %1170 = vmatpush.msra.mxu0 %v949
    %1171 = vmatpush.msra.mxu0 %v948
    %1172 = vmatpush.msra.mxu0 %v947
    %1173 = vmatpush.msra.mxu0 %v946
    %1174 = vmatpush.msra.mxu0 %v945
    %1175 = vmatmul.f32.gmra.mxu0 %v1155
    %v1176 = vpop.f32.mrf.mxu0
    %v1177 = vadd.f32 0.0, %v1176
    %1178 = vdwg.mxu0
    %v1179 = vadd.f32 %v1111, %v1177
    %v1181 = vrot.slane %v1179, 6
    %v1183 = vadd.f32 %v1088, %v1181
    %v1184 = vxor.u32 %v1183, 2147483648
    %v1185 = vmul.f32 %v1184, 1.442695
    %v1186 = vpow.pop %v1185
    %v1187 = vadd.f32 %v1186, 1.0
    %v1188 = vrcp.pop %v1187
    %v1189 = vmul.f32 %v1187, %v1188
    %v1190 = vsub.f32 1.0, %v1189
    %v1191 = vmul.f32 %v1188, %v1190
    %v1192 = vadd.f32 %v1188, %v1191
    %vm1193 = vweird.f32 %v1187
    %vm1194 = vweird.f32 %v1188
    %vm1195 = vmor %vm1193, %vm1194
    %v1196 = vsel %vm1195, %v1188, %v1192
    %v1197 = vand.u32 2147483647, %v1187
    %vm1198 = vcmp.eq.f32.partialorder %v1197, 8.507059e+37
    %v1199 = vand.u32 %v1187, 2147483648
    %v1200 = vor.u32 1.1754944e-38, %v1199
    %v1201 = vsel %vm1198, %v1200, %v1196
    %v1202 = vmul.f32 1.0, %v1201
    %v1204 = vrot.slane %v1202, 2
    %1206 = vrot.lane.b32.xlu0 %v1204, 64
    %v1207 = vpop.permute.xlu0 %1206
    %v1208 = vmul.f32 %v1207, %v1179
    %v1210 = vrot.slane %v1208, 6
    %v1212 = vadd.f32 %v1088, %v1210
    %v1213 = vtanh.pop %v1212
    %1214 = vrot.lane.b32.xlu0 %v1204, 96
    %v1215 = vpop.permute.xlu0 %1214
    %v1217 = vrot.slane %v1213, 2
    %1219 = vrot.lane.b32.xlu0 %v1217, 64
    %v1220 = vpop.permute.xlu0 %1219
    %v1221 = vsub.f32 1.0, %v1215
    %v1222 = vmul.f32 %v1221, %v1220
    %v1223 = vmul.f32 %v1215, %v1151
    %v1224 = vadd.f32 %v1222, %v1223
    %v1225 = vmul.f32 %v1224, 256.0
    %v1226 = vround.ne.pseudo %v1225
    %v1227 = vmax.f32 %v1226, -32768.0
    %v1228 = vmin.f32 %v1227, 32767.0
    %v1229 = vmul.f32 %v1228, 0.00390625
    %v1230 = vmul.f32 %v1229, %v124
    %1231 = vst [vmem:[#allocation6 + $0x2] sm:$0x3] %v1230
    %v1232 = vsub.f32 %v1230, %v1156
    %v1233 = vand.u32 2147483647, %v1232
    %vm1234 = vcmp.ge.f32.partialorder %v1233, 0.1
    %v1235 = vsel %vm1234, %v1232, 0.0
    %v1236 = vadd.f32 %v1156, %v1235
    %v1237 = vand.u32 2147483647, %v1235
    %v1238 = vadd.f32 %v1158, %v1237
    %1239 = vmatpush.msra.mxu0 %v960
    %1240 = vmatpush.msra.mxu0 %v959
    %1241 = vmatpush.msra.mxu0 %v958
    %1242 = vmatpush.msra.mxu0 %v957
    %1243 = vmatpush.msra.mxu0 %v956
    %1244 = vmatpush.msra.mxu0 %v955
    %1245 = vmatpush.msra.mxu0 %v954
    %1246 = vmatpush.msra.mxu0 %v953
    %1247 = vmatpush.msra.mxu0 %v952
    %1248 = vmatpush.msra.mxu0 %v951
    %1249 = vmatpush.msra.mxu0 %v950
    %1250 = vmatpush.msra.mxu0 %v949
    %1251 = vmatpush.msra.mxu0 %v948
    %1252 = vmatpush.msra.mxu0 %v947
    %1253 = vmatpush.msra.mxu0 %v946
    %1254 = vmatpush.msra.mxu0 %v945
    %1255 = vmatmul.f32.gmra.mxu0 %v1235
    %v1256 = vpop.f32.mrf.mxu0
    %v1257 = vadd.f32 0.0, %v1256
    %1258 = vdwg.mxu0
    %v1259 = vadd.f32 %v1179, %v1257
    %v1261 = vrot.slane %v1259, 4
    %v1263 = vadd.f32 %v1088, %v1261
    %v1264 = vxor.u32 %v1263, 2147483648
    %v1265 = vmul.f32 %v1264, 1.442695
    %v1266 = vpow.pop %v1265
    %v1267 = vadd.f32 %v1266, 1.0
    %v1268 = vrcp.pop %v1267
    %v1269 = vmul.f32 %v1267, %v1268
    %v1270 = vsub.f32 1.0, %v1269
    %v1271 = vmul.f32 %v1268, %v1270
    %v1272 = vadd.f32 %v1268, %v1271
    %vm1273 = vweird.f32 %v1267
    %vm1274 = vweird.f32 %v1268
    %vm1275 = vmor %vm1273, %vm1274
    %v1276 = vsel %vm1275, %v1268, %v1272
    %v1277 = vand.u32 2147483647, %v1267
    %vm1278 = vcmp.eq.f32.partialorder %v1277, 8.507059e+37
    %v1279 = vand.u32 %v1267, 2147483648
    %v1280 = vor.u32 1.1754944e-38, %v1279
    %v1281 = vsel %vm1278, %v1280, %v1276
    %v1282 = vmul.f32 1.0, %v1281
    %v1284 = vrot.slane %v1282, 4
    %1286 = vrot.lane.b32.xlu0 %v1284, 64
    %v1287 = vpop.permute.xlu0 %1286
    %v1288 = vmul.f32 %v1287, %v1259
    %v1290 = vrot.slane %v1288, 4
    %v1292 = vadd.f32 %v1088, %v1290
    %v1293 = vtanh.pop %v1292
    %1294 = vrot.lane.b32.xlu0 %v1284, 96
    %v1295 = vpop.permute.xlu0 %1294
    %v1297 = vrot.slane %v1293, 4
    %1299 = vrot.lane.b32.xlu0 %v1297, 64
    %v1300 = vpop.permute.xlu0 %1299
    %v1301 = vsub.f32 1.0, %v1295
    %v1302 = vmul.f32 %v1301, %v1300
    %v1303 = vmul.f32 %v1295, %v1230
    %v1304 = vadd.f32 %v1302, %v1303
    %v1305 = vmul.f32 %v1304, 256.0
    %v1306 = vround.ne.pseudo %v1305
    %v1307 = vmax.f32 %v1306, -32768.0
    %v1308 = vmin.f32 %v1307, 32767.0
    %v1309 = vmul.f32 %v1308, 0.00390625
    %v1310 = vmul.f32 %v1309, %v124
    %1311 = vst [vmem:[#allocation6 + $0x4] sm:$0x3] %v1310
    %v1312 = vsub.f32 %v1310, %v1236
    %v1313 = vand.u32 2147483647, %v1312
    %vm1314 = vcmp.ge.f32.partialorder %v1313, 0.1
    %v1315 = vsel %vm1314, %v1312, 0.0
    %v1316 = vadd.f32 %v1236, %v1315
    %v1317 = vand.u32 2147483647, %v1315
    %v1318 = vadd.f32 %v1238, %v1317
    %1319 = vmatpush.msra.mxu0 %v960
    %1320 = vmatpush.msra.mxu0 %v959
    %1321 = vmatpush.msra.mxu0 %v958
    %1322 = vmatpush.msra.mxu0 %v957
    %1323 = vmatpush.msra.mxu0 %v956
    %1324 = vmatpush.msra.mxu0 %v955
    %1325 = vmatpush.msra.mxu0 %v954
    %1326 = vmatpush.msra.mxu0 %v953
    %1327 = vmatpush.msra.mxu0 %v952
    %1328 = vmatpush.msra.mxu0 %v951
    %1329 = vmatpush.msra.mxu0 %v950
    %1330 = vmatpush.msra.mxu0 %v949
    %1331 = vmatpush.msra.mxu0 %v948
    %1332 = vmatpush.msra.mxu0 %v947
    %1333 = vmatpush.msra.mxu0 %v946
    %1334 = vmatpush.msra.mxu0 %v945
    %1335 = vmatmul.f32.gmra.mxu0 %v1315
    %v1336 = vpop.f32.mrf.mxu0
    %v1337 = vadd.f32 0.0, %v1336
    %1338 = vdwg.mxu0
    %v1339 = vadd.f32 %v1259, %v1337
    %v1341 = vrot.slane %v1339, 2
    %v1343 = vadd.f32 %v1088, %v1341
    %v1344 = vxor.u32 %v1343, 2147483648
    %v1345 = vmul.f32 %v1344, 1.442695
    %v1346 = vpow.pop %v1345
    %v1347 = vadd.f32 %v1346, 1.0
    %v1348 = vrcp.pop %v1347
    %v1349 = vmul.f32 %v1347, %v1348
    %v1350 = vsub.f32 1.0, %v1349
    %v1351 = vmul.f32 %v1348, %v1350
    %v1352 = vadd.f32 %v1348, %v1351
    %vm1353 = vweird.f32 %v1347
    %vm1354 = vweird.f32 %v1348
    %vm1355 = vmor %vm1353, %vm1354
    %v1356 = vsel %vm1355, %v1348, %v1352
    %v1357 = vand.u32 2147483647, %v1347
    %vm1358 = vcmp.eq.f32.partialorder %v1357, 8.507059e+37
    %v1359 = vand.u32 %v1347, 2147483648
    %v1360 = vor.u32 1.1754944e-38, %v1359
    %v1361 = vsel %vm1358, %v1360, %v1356
    %v1362 = vmul.f32 1.0, %v1361
    %v1364 = vrot.slane %v1362, 6
    %1366 = vrot.lane.b32.xlu0 %v1364, 64
    %v1367 = vpop.permute.xlu0 %1366
    %v1368 = vmul.f32 %v1367, %v1339
    %v1370 = vrot.slane %v1368, 2
    %v1372 = vadd.f32 %v1088, %v1370
    %v1373 = vtanh.pop %v1372
    %1374 = vrot.lane.b32.xlu0 %v1364, 96
    %v1375 = vpop.permute.xlu0 %1374
    %v1377 = vrot.slane %v1373, 6
    %1379 = vrot.lane.b32.xlu0 %v1377, 64
    %v1380 = vpop.permute.xlu0 %1379
    %v1381 = vsub.f32 1.0, %v1375
    %v1382 = vmul.f32 %v1381, %v1380
    %v1383 = vmul.f32 %v1375, %v1310
    %v1384 = vadd.f32 %v1382, %v1383
    %v1385 = vmul.f32 %v1384, 256.0
    %v1386 = vround.ne.pseudo %v1385
    %v1387 = vmax.f32 %v1386, -32768.0
    %v1388 = vmin.f32 %v1387, 32767.0
    %v1389 = vmul.f32 %v1388, 0.00390625
    %v1390 = vmul.f32 %v1389, %v124
    %1391 = vst [vmem:[#allocation6 + $0x6] sm:$0x3] %v1390
    %v1392 = vsub.f32 %v1390, %v1316
    %v1393 = vand.u32 2147483647, %v1392
    %vm1394 = vcmp.ge.f32.partialorder %v1393, 0.1
    %v1395 = vsel %vm1394, %v1392, 0.0
    %v1396 = vadd.f32 %v1316, %v1395
    %v1397 = vand.u32 2147483647, %v1395
    %v1398 = vadd.f32 %v1318, %v1397
    %1399 = vmatpush.msra.mxu0 %v960
    %1400 = vmatpush.msra.mxu0 %v959
    %1401 = vmatpush.msra.mxu0 %v958
    %1402 = vmatpush.msra.mxu0 %v957
    %1403 = vmatpush.msra.mxu0 %v956
    %1404 = vmatpush.msra.mxu0 %v955
    %1405 = vmatpush.msra.mxu0 %v954
    %1406 = vmatpush.msra.mxu0 %v953
    %1407 = vmatpush.msra.mxu0 %v952
    %1408 = vmatpush.msra.mxu0 %v951
    %1409 = vmatpush.msra.mxu0 %v950
    %1410 = vmatpush.msra.mxu0 %v949
    %1411 = vmatpush.msra.mxu0 %v948
    %1412 = vmatpush.msra.mxu0 %v947
    %1413 = vmatpush.msra.mxu0 %v946
    %1414 = vmatpush.msra.mxu0 %v945
    %1415 = vmatmul.f32.gmra.mxu0 %v1395
    %v1416 = vpop.f32.mrf.mxu0
    %v1417 = vadd.f32 0.0, %v1416
    %1418 = vdwg.mxu0
    %v1419 = vadd.f32 %v1339, %v1417
    %v1420 = vadd.f32 %v1091, %v1419
    %v1421 = vxor.u32 %v1420, 2147483648
    %v1422 = vmul.f32 %v1421, 1.442695
    %v1423 = vpow.pop %v1422
    %v1424 = vadd.f32 %v1423, 1.0
    %v1425 = vrcp.pop %v1424
    %v1426 = vmul.f32 %v1424, %v1425
    %v1427 = vsub.f32 1.0, %v1426
    %v1428 = vmul.f32 %v1425, %v1427
    %v1429 = vadd.f32 %v1425, %v1428
    %vm1430 = vweird.f32 %v1424
    %vm1431 = vweird.f32 %v1425
    %vm1432 = vmor %vm1430, %vm1431
    %v1433 = vsel %vm1432, %v1425, %v1429
    %v1434 = vand.u32 2147483647, %v1424
    %vm1435 = vcmp.eq.f32.partialorder %v1434, 8.507059e+37
    %v1436 = vand.u32 %v1424, 2147483648
    %v1437 = vor.u32 1.1754944e-38, %v1436
    %v1438 = vsel %vm1435, %v1437, %v1433
    %v1439 = vmul.f32 1.0, %v1438
    %1440 = vrot.lane.b32.xlu0 %v1439, 64
    %v1441 = vpop.permute.xlu0 %1440
    %v1442 = vmul.f32 %v1441, %v1419
    %v1443 = vadd.f32 %v1091, %v1442
    %v1444 = vtanh.pop %v1443
    %1445 = vrot.lane.b32.xlu0 %v1439, 96
    %v1446 = vpop.permute.xlu0 %1445
    %1447 = vrot.lane.b32.xlu0 %v1444, 64
    %v1448 = vpop.permute.xlu0 %1447
    %v1449 = vsub.f32 1.0, %v1446
    %v1450 = vmul.f32 %v1449, %v1448
    %v1451 = vmul.f32 %v1446, %v1390
    %v1452 = vadd.f32 %v1450, %v1451
    %v1453 = vmul.f32 %v1452, 256.0
    %v1454 = vround.ne.pseudo %v1453
    %v1455 = vmax.f32 %v1454, -32768.0
    %v1456 = vmin.f32 %v1455, 32767.0
    %v1457 = vmul.f32 %v1456, 0.00390625
    %v1458 = vmul.f32 %v1457, %v124
    %1459 = vst [vmem:[#allocation6 + $0x8] sm:$0x3] %v1458
    %v1460 = vsub.f32 %v1458, %v1396
    %v1461 = vand.u32 2147483647, %v1460
    %vm1462 = vcmp.ge.f32.partialorder %v1461, 0.1
    %v1463 = vsel %vm1462, %v1460, 0.0
    %v1464 = vadd.f32 %v1396, %v1463
    %v1465 = vand.u32 2147483647, %v1463
    %v1466 = vadd.f32 %v1398, %v1465
    %1467 = vmatpush.msra.mxu0 %v960
    %1468 = vmatpush.msra.mxu0 %v959
    %1469 = vmatpush.msra.mxu0 %v958
    %1470 = vmatpush.msra.mxu0 %v957
    %1471 = vmatpush.msra.mxu0 %v956
    %1472 = vmatpush.msra.mxu0 %v955
    %1473 = vmatpush.msra.mxu0 %v954
    %1474 = vmatpush.msra.mxu0 %v953
    %1475 = vmatpush.msra.mxu0 %v952
    %1476 = vmatpush.msra.mxu0 %v951
    %1477 = vmatpush.msra.mxu0 %v950
    %1478 = vmatpush.msra.mxu0 %v949
    %1479 = vmatpush.msra.mxu0 %v948
    %1480 = vmatpush.msra.mxu0 %v947
    %1481 = vmatpush.msra.mxu0 %v946
    %1482 = vmatpush.msra.mxu0 %v945
    %1483 = vmatmul.f32.gmra.mxu0 %v1463
    %v1484 = vpop.f32.mrf.mxu0
    %v1485 = vadd.f32 0.0, %v1484
    %1486 = vdwg.mxu0
    %v1487 = vadd.f32 %v1419, %v1485
    %v1489 = vrot.slane %v1487, 6
    %v1491 = vadd.f32 %v1091, %v1489
    %v1492 = vxor.u32 %v1491, 2147483648
    %v1493 = vmul.f32 %v1492, 1.442695
    %v1494 = vpow.pop %v1493
    %v1495 = vadd.f32 %v1494, 1.0
    %v1496 = vrcp.pop %v1495
    %v1497 = vmul.f32 %v1495, %v1496
    %v1498 = vsub.f32 1.0, %v1497
    %v1499 = vmul.f32 %v1496, %v1498
    %v1500 = vadd.f32 %v1496, %v1499
    %vm1501 = vweird.f32 %v1495
    %vm1502 = vweird.f32 %v1496
    %vm1503 = vmor %vm1501, %vm1502
    %v1504 = vsel %vm1503, %v1496, %v1500
    %v1505 = vand.u32 2147483647, %v1495
    %vm1506 = vcmp.eq.f32.partialorder %v1505, 8.507059e+37
    %v1507 = vand.u32 %v1495, 2147483648
    %v1508 = vor.u32 1.1754944e-38, %v1507
    %v1509 = vsel %vm1506, %v1508, %v1504
    %v1510 = vmul.f32 1.0, %v1509
    %v1512 = vrot.slane %v1510, 2
    %1514 = vrot.lane.b32.xlu0 %v1512, 64
    %v1515 = vpop.permute.xlu0 %1514
    %v1516 = vmul.f32 %v1515, %v1487
    %v1518 = vrot.slane %v1516, 6
    %v1520 = vadd.f32 %v1091, %v1518
    %v1521 = vtanh.pop %v1520
    %1522 = vrot.lane.b32.xlu0 %v1512, 96
    %v1523 = vpop.permute.xlu0 %1522
    %v1525 = vrot.slane %v1521, 2
    %1527 = vrot.lane.b32.xlu0 %v1525, 64
    %v1528 = vpop.permute.xlu0 %1527
    %v1529 = vsub.f32 1.0, %v1523
    %v1530 = vmul.f32 %v1529, %v1528
    %v1531 = vmul.f32 %v1523, %v1458
    %v1532 = vadd.f32 %v1530, %v1531
    %v1533 = vmul.f32 %v1532, 256.0
    %v1534 = vround.ne.pseudo %v1533
    %v1535 = vmax.f32 %v1534, -32768.0
    %v1536 = vmin.f32 %v1535, 32767.0
    %v1537 = vmul.f32 %v1536, 0.00390625
    %v1538 = vmul.f32 %v1537, %v124
    %1539 = vst [vmem:[#allocation6 + $0xa] sm:$0x3] %v1538
    %v1540 = vsub.f32 %v1538, %v1464
    %v1541 = vand.u32 2147483647, %v1540
    %vm1542 = vcmp.ge.f32.partialorder %v1541, 0.1
    %v1543 = vsel %vm1542, %v1540, 0.0
    %v1544 = vadd.f32 %v1464, %v1543
    %v1545 = vand.u32 2147483647, %v1543
    %v1546 = vadd.f32 %v1466, %v1545
    %1547 = vmatpush.msra.mxu0 %v960
    %1548 = vmatpush.msra.mxu0 %v959
    %1549 = vmatpush.msra.mxu0 %v958
    %1550 = vmatpush.msra.mxu0 %v957
    %1551 = vmatpush.msra.mxu0 %v956
    %1552 = vmatpush.msra.mxu0 %v955
    %1553 = vmatpush.msra.mxu0 %v954
    %1554 = vmatpush.msra.mxu0 %v953
    %1555 = vmatpush.msra.mxu0 %v952
    %1556 = vmatpush.msra.mxu0 %v951
    %1557 = vmatpush.msra.mxu0 %v950
    %1558 = vmatpush.msra.mxu0 %v949
    %1559 = vmatpush.msra.mxu0 %v948
    %1560 = vmatpush.msra.mxu0 %v947
    %1561 = vmatpush.msra.mxu0 %v946
    %1562 = vmatpush.msra.mxu0 %v945
    %1563 = vmatmul.f32.gmra.mxu0 %v1543
    %v1564 = vpop.f32.mrf.mxu0
    %v1565 = vadd.f32 0.0, %v1564
    %1566 = vdwg.mxu0
    %v1567 = vadd.f32 %v1487, %v1565
    %v1569 = vrot.slane %v1567, 4
    %v1571 = vadd.f32 %v1091, %v1569
    %v1572 = vxor.u32 %v1571, 2147483648
    %v1573 = vmul.f32 %v1572, 1.442695
    %v1574 = vpow.pop %v1573
    %v1575 = vadd.f32 %v1574, 1.0
    %v1576 = vrcp.pop %v1575
    %v1577 = vmul.f32 %v1575, %v1576
    %v1578 = vsub.f32 1.0, %v1577
    %v1579 = vmul.f32 %v1576, %v1578
    %v1580 = vadd.f32 %v1576, %v1579
    %vm1581 = vweird.f32 %v1575
    %vm1582 = vweird.f32 %v1576
    %vm1583 = vmor %vm1581, %vm1582
    %v1584 = vsel %vm1583, %v1576, %v1580
    %v1585 = vand.u32 2147483647, %v1575
    %vm1586 = vcmp.eq.f32.partialorder %v1585, 8.507059e+37
    %v1587 = vand.u32 %v1575, 2147483648
    %v1588 = vor.u32 1.1754944e-38, %v1587
    %v1589 = vsel %vm1586, %v1588, %v1584
    %v1590 = vmul.f32 1.0, %v1589
    %v1592 = vrot.slane %v1590, 4
    %1594 = vrot.lane.b32.xlu0 %v1592, 64
    %v1595 = vpop.permute.xlu0 %1594
    %v1596 = vmul.f32 %v1595, %v1567
    %v1598 = vrot.slane %v1596, 4
    %v1600 = vadd.f32 %v1091, %v1598
    %v1601 = vtanh.pop %v1600
    %1602 = vrot.lane.b32.xlu0 %v1592, 96
    %v1603 = vpop.permute.xlu0 %1602
    %v1605 = vrot.slane %v1601, 4
    %1607 = vrot.lane.b32.xlu0 %v1605, 64
    %v1608 = vpop.permute.xlu0 %1607
    %v1609 = vsub.f32 1.0, %v1603
    %v1610 = vmul.f32 %v1609, %v1608
    %v1611 = vmul.f32 %v1603, %v1538
    %v1612 = vadd.f32 %v1610, %v1611
    %v1613 = vmul.f32 %v1612, 256.0
    %v1614 = vround.ne.pseudo %v1613
    %v1615 = vmax.f32 %v1614, -32768.0
    %v1616 = vmin.f32 %v1615, 32767.0
    %v1617 = vmul.f32 %v1616, 0.00390625
    %v1618 = vmul.f32 %v1617, %v124
    %1619 = vst [vmem:[#allocation6 + $0xc] sm:$0x3] %v1618
    %v1620 = vsub.f32 %v1618, %v1544
    %v1621 = vand.u32 2147483647, %v1620
    %vm1622 = vcmp.ge.f32.partialorder %v1621, 0.1
    %v1623 = vsel %vm1622, %v1620, 0.0
    %v1624 = vand.u32 2147483647, %v1623
    %v1625 = vadd.f32 %v1546, %v1624
    %1626 = vmatpush.msra.mxu0 %v960
    %1627 = vmatpush.msra.mxu0 %v959
    %1628 = vmatpush.msra.mxu0 %v958
    %1629 = vmatpush.msra.mxu0 %v957
    %1630 = vmatpush.msra.mxu0 %v956
    %1631 = vmatpush.msra.mxu0 %v955
    %1632 = vmatpush.msra.mxu0 %v954
    %1633 = vmatpush.msra.mxu0 %v953
    %1634 = vmatpush.msra.mxu0 %v952
    %1635 = vmatpush.msra.mxu0 %v951
    %1636 = vmatpush.msra.mxu0 %v950
    %1637 = vmatpush.msra.mxu0 %v949
    %1638 = vmatpush.msra.mxu0 %v948
    %1639 = vmatpush.msra.mxu0 %v947
    %1640 = vmatpush.msra.mxu0 %v946
    %1641 = vmatpush.msra.mxu0 %v945
    %1642 = vmatmul.f32.gmra.mxu0 %v1623
    %v1643 = vpop.f32.mrf.mxu0
    %v1644 = vadd.f32 0.0, %v1643
    %1645 = vdwg.mxu0
    %v1646 = vadd.f32 %v1567, %v1644
    %v1648 = vrot.slane %v1646, 2
    %v1650 = vadd.f32 %v1091, %v1648
    %v1651 = vxor.u32 %v1650, 2147483648
    %v1652 = vmul.f32 %v1651, 1.442695
    %v1653 = vpow.pop %v1652
    %v1654 = vadd.f32 %v1653, 1.0
    %v1655 = vrcp.pop %v1654
    %v1656 = vmul.f32 %v1654, %v1655
    %v1657 = vsub.f32 1.0, %v1656
    %v1658 = vmul.f32 %v1655, %v1657
    %v1659 = vadd.f32 %v1655, %v1658
    %vm1660 = vweird.f32 %v1654
    %vm1661 = vweird.f32 %v1655
    %vm1662 = vmor %vm1660, %vm1661
    %v1663 = vsel %vm1662, %v1655, %v1659
    %v1664 = vand.u32 2147483647, %v1654
    %vm1665 = vcmp.eq.f32.partialorder %v1664, 8.507059e+37
    %v1666 = vand.u32 %v1654, 2147483648
    %v1667 = vor.u32 1.1754944e-38, %v1666
    %v1668 = vsel %vm1665, %v1667, %v1663
    %v1669 = vmul.f32 1.0, %v1668
    %v1671 = vrot.slane %v1669, 6
    %1673 = vrot.lane.b32.xlu0 %v1671, 64
    %v1674 = vpop.permute.xlu0 %1673
    %v1675 = vmul.f32 %v1674, %v1646
    %v1677 = vrot.slane %v1675, 2
    %v1679 = vadd.f32 %v1091, %v1677
    %v1680 = vtanh.pop %v1679
    %1681 = vrot.lane.b32.xlu0 %v1671, 96
    %v1682 = vpop.permute.xlu0 %1681
    %v1684 = vrot.slane %v1680, 6
    %1686 = vrot.lane.b32.xlu0 %v1684, 64
    %v1687 = vpop.permute.xlu0 %1686
    %v1688 = vsub.f32 1.0, %v1682
    %v1689 = vmul.f32 %v1688, %v1687
    %v1690 = vmul.f32 %v1682, %v1618
    %v1691 = vadd.f32 %v1689, %v1690
    %v1692 = vmul.f32 %v1691, 256.0
    %v1693 = vround.ne.pseudo %v1692
    %v1694 = vmax.f32 %v1693, -32768.0
    %v1695 = vmin.f32 %v1694, 32767.0
    %v1696 = vmul.f32 %v1695, 0.00390625
    %v1697 = vmul.f32 %v1696, %v124
    %1698 = vst [vmem:[#allocation6 + $0xe] sm:$0x3] %v1697
    %v1699 = vsel %vm902, %v1063, 0.0
    %1700 = vadd.xlane.f32.xlu0 %v1699
    %v1701 = vpop.xlane.xlu0 %1700
    %v1702 = vrot.slane %v1701, 4
    %v1703 = vadd.f32 %v1701, %v1702
    %v1704 = vrot.slane %v1703, 2
    %v1705 = vadd.f32 %v1703, %v1704
    %v1706 = vrot.slane %v1705, 1
    %v1707 = vadd.f32 %v1705, %v1706
    %s1708 = vtos %v1707
    %v1709 = vsel %vm902, %v1625, 0.0
    %1710 = vadd.xlane.f32.xlu0 %v1709
    %v1711 = vpop.xlane.xlu0 %1710
    %v1712 = vrot.slane %v1711, 4
    %v1713 = vadd.f32 %v1711, %v1712
    %v1714 = vrot.slane %v1713, 2
    %v1715 = vadd.f32 %v1713, %v1714
    %v1716 = vrot.slane %v1715, 1
    %v1717 = vadd.f32 %v1715, %v1716
    %s1718 = vtos %v1717
    %s1719 = sadd.f32 %s1708, %s1718
    %s1720 = sshll.u32 %s924, 4
    %1721 = dma.done %s92, %s1720
    %s1722 = sshll.u32 %s924, 4
    %1723 = dma.done %s106, %s1722
    %v1724 = vld [vmem:[#allocation6] sm:$0xff]
    %v1725 = vld [vmem:[#allocation6 + $0x8] sm:$0xff]
    %v1726 = vld [vmem:[#allocation4] sm:$0xff]
    %v1727 = vld [vmem:[#allocation4 + $0x8] sm:$0xff]
    %v1728 = vld [vmem:[#allocation4 + $0x10] sm:$0xff]
    %v1729 = vld [vmem:[#allocation4 + $0x18] sm:$0xff]
    %v1730 = vld [vmem:[#allocation4 + $0x20] sm:$0xff]
    %v1731 = vld [vmem:[#allocation4 + $0x28] sm:$0xff]
    %v1732 = vld [vmem:[#allocation4 + $0x30] sm:$0xff]
    %v1733 = vld [vmem:[#allocation4 + $0x38] sm:$0xff]
    %v1734 = vld [vmem:[#allocation4 + $0x40] sm:$0xff]
    %v1735 = vld [vmem:[#allocation4 + $0x48] sm:$0xff]
    %v1736 = vld [vmem:[#allocation4 + $0x50] sm:$0xff]
    %v1737 = vld [vmem:[#allocation4 + $0x58] sm:$0xff]
    %v1738 = vld [vmem:[#allocation4 + $0x60] sm:$0xff]
    %v1739 = vld [vmem:[#allocation4 + $0x68] sm:$0xff]
    %v1740 = vld [vmem:[#allocation4 + $0x70] sm:$0xff]
    %v1741 = vld [vmem:[#allocation4 + $0x78] sm:$0xff]
    %v1742 = vld [vmem:[%s5] sm:$0x1]
    %v1744 = vperm.slane %v1742, 0
    %1746 = vmatpush.msra.mxu0 %v1741
    %1747 = vmatpush.msra.mxu0 %v1740
    %1748 = vmatpush.msra.mxu0 %v1739
    %1749 = vmatpush.msra.mxu0 %v1738
    %1750 = vmatpush.msra.mxu0 %v1737
    %1751 = vmatpush.msra.mxu0 %v1736
    %1752 = vmatpush.msra.mxu0 %v1735
    %1753 = vmatpush.msra.mxu0 %v1734
    %1754 = vmatpush.msra.mxu0 %v1733
    %1755 = vmatpush.msra.mxu0 %v1732
    %1756 = vmatpush.msra.mxu0 %v1731
    %1757 = vmatpush.msra.mxu0 %v1730
    %1758 = vmatpush.msra.mxu0 %v1729
    %1759 = vmatpush.msra.mxu0 %v1728
    %1760 = vmatpush.msra.mxu0 %v1727
    %1761 = vmatpush.msra.mxu0 %v1726
    %1762 = vmatmul.f32.gmra.mxu0 %v1724
    %v1763 = vpop.f32.mrf.mxu0
    %v1764 = vadd.f32 %v1744, %v1763
    %1765 = vmatmul.f32.gmra.mxu0 %v1725
    %v1766 = vpop.f32.mrf.mxu0
    %v1767 = vadd.f32 %v1744, %v1766
    %1768 = vdwg.mxu0
    %v1769 = vmax.f32 %v1764, 0.0
    %v1770 = vmax.f32 %v1767, 0.0
    %v1771 = vmul.f32 %v1769, 256.0
    %v1772 = vmul.f32 %v1770, 256.0
    %v1773 = vround.ne.pseudo %v1771
    %v1774 = vround.ne.pseudo %v1772
    %v1775 = vmax.f32 %v1773, -32768.0
    %v1776 = vmax.f32 %v1774, -32768.0
    %v1777 = vmin.f32 %v1775, 32767.0
    %v1778 = vmin.f32 %v1776, 32767.0
    %v1779 = vmul.f32 %v1777, 0.00390625
    %v1780 = vmul.f32 %v1778, 0.00390625
    %v1781 = vld [vmem:[#allocation5] sm:$0xff]
    %v1782 = vld [vmem:[#allocation5 + $0x8] sm:$0xff]
    %v1783 = vld [vmem:[#allocation5 + $0x10] sm:$0xff]
    %v1784 = vld [vmem:[#allocation5 + $0x18] sm:$0xff]
    %v1785 = vld [vmem:[#allocation5 + $0x20] sm:$0xff]
    %v1786 = vld [vmem:[#allocation5 + $0x28] sm:$0xff]
    %v1787 = vld [vmem:[#allocation5 + $0x30] sm:$0xff]
    %v1788 = vld [vmem:[#allocation5 + $0x38] sm:$0xff]
    %v1789 = vld [vmem:[#allocation5 + $0x40] sm:$0xff]
    %v1790 = vld [vmem:[#allocation5 + $0x48] sm:$0xff]
    %v1791 = vld [vmem:[#allocation5 + $0x50] sm:$0xff]
    %v1792 = vld [vmem:[#allocation5 + $0x58] sm:$0xff]
    %v1793 = vld [vmem:[#allocation5 + $0x60] sm:$0xff]
    %v1794 = vld [vmem:[#allocation5 + $0x68] sm:$0xff]
    %v1795 = vld [vmem:[#allocation5 + $0x70] sm:$0xff]
    %v1796 = vld [vmem:[#allocation5 + $0x78] sm:$0xff]
    %v1797 = vld [vmem:[%s6] sm:$0x1]
    %v1799 = vperm.slane %v1797, 0
    %1801 = vmatpush.msra.mxu0 %v1796
    %1802 = vmatpush.msra.mxu0 %v1795
    %1803 = vmatpush.msra.mxu0 %v1794
    %1804 = vmatpush.msra.mxu0 %v1793
    %1805 = vmatpush.msra.mxu0 %v1792
    %1806 = vmatpush.msra.mxu0 %v1791
    %1807 = vmatpush.msra.mxu0 %v1790
    %1808 = vmatpush.msra.mxu0 %v1789
    %1809 = vmatpush.msra.mxu0 %v1788
    %1810 = vmatpush.msra.mxu0 %v1787
    %1811 = vmatpush.msra.mxu0 %v1786
    %1812 = vmatpush.msra.mxu0 %v1785
    %1813 = vmatpush.msra.mxu0 %v1784
    %1814 = vmatpush.msra.mxu0 %v1783
    %1815 = vmatpush.msra.mxu0 %v1782
    %1816 = vmatpush.msra.mxu0 %v1781
    %1817 = vmatmul.f32.gmra.mxu0 %v1779
    %v1818 = vpop.f32.mrf.mxu0
    %v1819 = vadd.f32 %v1799, %v1818
    %1820 = vmatmul.f32.gmra.mxu0 %v1780
    %v1821 = vpop.f32.mrf.mxu0
    %v1822 = vadd.f32 %v1799, %v1821
    %1823 = vdwg.mxu0
    %v1824 = vmul.f32 %v1819, 256.0
    %v1825 = vmul.f32 %v1822, 256.0
    %v1826 = vround.ne.pseudo %v1824
    %v1827 = vround.ne.pseudo %v1825
    %v1828 = vmax.f32 %v1826, -32768.0
    %v1829 = vmax.f32 %v1827, -32768.0
    %v1830 = vmin.f32 %v1828, 32767.0
    %v1831 = vmin.f32 %v1829, 32767.0
    %v1832 = vmul.f32 %v1830, 0.00390625
    %v1833 = vmul.f32 %v1831, 0.00390625
    %1834 = vst [vmem:[%s11] sm:$0xff] %v1832
    %1835 = vst [vmem:[%s11 + $0x8] sm:$0xff] %v1833
    %s1836 = sadd.f32 %s923, %s1719
    %v1837 = vstv %s1836
    %v1838 = vadd.f32 %v1837, 0.0
    %vm1839 = vcmask 0
    %1840 = vst.msk [vmem:[#allocation13] sm:$0x1] %vm1839, %v1838
    // Predicated region
    $region54: #{model_forward.1} parent=1 // pred_check
      _
    $region55: #{model_forward.1} parent=1 // pred_check_branch
      %1842 = sbr.rel (0) target = $region57
    $region56: #{model_forward.1} parent=1 // pred_region
      _
    $region57: #{model_forward.1} parent=1 // pred_fallthru
      _
    // Predicated region
    $region58: #{model_forward.1} parent=1 // pred_check
      _
    $region59: #{model_forward.1} parent=1 // pred_check_branch
      %1844 = sbr.rel (0) target = $region61
    $region60: #{model_forward.1} parent=1 // pred_region
      %1846 = vsyncadd [#allocation10], 0
      %s1848 = sshll.u32 [#allocation13], 4
      %s1849 = int_to_ptr.vmem [resolvable:$true] %s1848
      %s1850 = sshll.u32 %s12, 4
      %s1851 = int_to_ptr.hbm [resolvable:$true] %s1850
      %1853 = dma.vmem_to_hbm [thread:$0]  %s1849, 16, %s1851, [#allocation10]
    $region61: #{model_forward.1} parent=1 // pred_fallthru
      _
    // Predicated region
    $region62: #{model_forward.1} parent=1 // pred_check
      _
    $region63: #{model_forward.1} parent=1 // pred_check_branch
      %1855 = sbr.rel (0) target = $region65
    $region64: #{model_forward.1} parent=1 // pred_region
      _
    $region65: #{model_forward.1} parent=1 // pred_fallthru
      _
    // Predicated region
    $region66: #{model_forward.1} parent=1 // pred_check
      _
    $region67: #{model_forward.1} parent=1 // pred_check_branch
      %1857 = sbr.rel (0) target = $region69
    $region68: #{model_forward.1} parent=1 // pred_region
      %1859 = dma.done [#allocation10], 16
    $region69: #{model_forward.1} parent=1 // pred_fallthru
      _
    %1860 = vsyncpa [#allocation9], 1
    %1861 = vsyncpa [#allocation12], 1
    %1862 = vsyncpa [#allocation10], 1
  %1863 = vsyncmov [#allocation7]
  %s1864 = vpop.sfrf %1863
  %p1865 = scmp.eq.s32.totalorder %s1864, 0
  %p1866 = pneg %p1865
  %1868 = shalt.err (%p1866)
  %s1869 = scalar_lea.sflag [#allocation7], 1
  %1870 = vsyncmov %s1869
  %s1871 = vpop.sfrf %1870
  %p1872 = scmp.eq.s32.totalorder %s1871, 0
  %p1873 = pneg %p1872
  %1875 = shalt.err (%p1873)
  %s1876 = scalar_lea.sflag [#allocation7], 2
  %1877 = vsyncmov %s1876
  %s1878 = vpop.sfrf %1877
  %p1879 = scmp.eq.s32.totalorder %s1878, 0
  %p1880 = pneg %p1879
  %1882 = shalt.err (%p1880)
  %s1883 = scalar_lea.sflag [#allocation7], 3
  %1884 = vsyncmov %s1883
  %s1885 = vpop.sfrf %1884
  %p1886 = scmp.eq.s32.totalorder %s1885, 0
  %p1887 = pneg %p1886
  %1889 = shalt.err (%p1887)

</llo_original>
